<compile_context>
chip_gen: v5e
topology: v5e:2x2
jax: 0.10.0
libtpu: 0.0.40
codegen_flags: <defaults>
</compile_context>

<pallas_src>
import functools

import jax
import jax.numpy as jnp
from jax import lax
from jax.experimental import pallas as pl
from jax.experimental.pallas import tpu as pltpu

_CNT_EPS = 1e-6          # matches the +1e-06 in the PyTorch class-mean division
_COS_EPS = 1e-8          # nn.CosineSimilarity default eps


# --------------------------------------------------------------------------
# Shared in-kernel math
# --------------------------------------------------------------------------
def _cosine(a, b):
    """Cosine similarity over the channel (sublane) axis -> (1, S)."""
    w12 = jnp.sum(a * b, axis=0, keepdims=True)
    w1 = jnp.sum(a * a, axis=0, keepdims=True)
    w2 = jnp.sum(b * b, axis=0, keepdims=True)
    return w12 * lax.rsqrt(jnp.maximum(w1 * w2, _COS_EPS * _COS_EPS))


_DN_BT = (((1,), (1,)), ((), ()))     # (m, s) . (k, s) -> (m, k)


# --------------------------------------------------------------------------
# Kernel 1: single-pass fast path (whole (C, S) slab resident in VMEM)
# --------------------------------------------------------------------------
def _ifv_single_pass_kernel(fs_ref, ft_ref, lab_ref, out_ref, *,
                            num_classes, padded_classes):
    """One grid step per batch element; features are read from HBM once."""
    K = padded_classes
    lo = 1 if num_classes == 2 else 0

    lab = lab_ref[0]                                     # (1, S) int32
    fs = fs_ref[0]                                       # (C, S) feat dtype
    ft = ft_ref[0]
    sc = lab.shape[1]

    k_iota = lax.broadcasted_iota(jnp.int32, (K, sc), 0)
    valid_k = jnp.logical_and(k_iota >= lo, k_iota < num_classes)
    oh_bool = jnp.logical_and(k_iota == lab, valid_k)    # (K, S)
    cov_bool = jnp.logical_and(lab >= lo, lab < num_classes)   # (1, S)

    # Per-class feature sums / pixel counts (native-dtype MXU, exact f32 acc).
    oh_mm = oh_bool.astype(fs.dtype)
    cov_mm = cov_bool.astype(fs.dtype)
    sum_s = lax.dot_general(fs, oh_mm, _DN_BT, preferred_element_type=jnp.float32)
    sum_t = lax.dot_general(ft, oh_mm, _DN_BT, preferred_element_type=jnp.float32)
    cnt = lax.dot_general(cov_mm, oh_mm, _DN_BT, preferred_element_type=jnp.float32)

    inv_cnt = pl.reciprocal(cnt + _CNT_EPS)              # exact (approx=False)
    mean_s = sum_s * inv_cnt                             # (C, K)
    mean_t = sum_t * inv_cnt

    # Scatter class means back to positions, blend with uncovered pixels.
    oh_f32 = oh_bool.astype(jnp.float32)
    cand_s = jnp.dot(mean_s, oh_f32, preferred_element_type=jnp.float32)   # (C, S)
    cand_t = jnp.dot(mean_t, oh_f32, preferred_element_type=jnp.float32)

    covered = cov_bool.astype(jnp.float32)
    not_cov = 1.0 - covered
    fs32 = fs.astype(jnp.float32)
    ft32 = ft.astype(jnp.float32)
    cen_s = covered * cand_s + not_cov * fs32
    cen_t = covered * cand_t + not_cov * ft32

    diff = _cosine(fs32, cen_s) - _cosine(ft32, cen_t)   # (1, S)
    out_ref[...] = jnp.sum(diff * diff, axis=1, keepdims=True).reshape(1, 1, 1)


# --------------------------------------------------------------------------
# Kernel 2: two-phase streaming path (accumulate means, then re-stream)
# --------------------------------------------------------------------------
def _ifv_two_phase_kernel(fs_ref, ft_ref, lab_ref, out_ref, csum_ref, cnt_ref, *,
                          num_classes, channels, padded_classes, true_s,
                          chunk_size):
    """Grid (B, 2, n_chunks): phase 0 accumulates class sums/counts, phase 1
    re-streams the chunks, scatters the means and reduces the squared cosine
    difference to a per-batch scalar."""
    C = channels
    K = padded_classes
    lo = 1 if num_classes == 2 else 0
    phase = pl.program_id(1)
    chunk = pl.program_id(2)

    lab = lab_ref[0]                                     # (1, Sc) int32
    fs = fs_ref[0]                                       # (C, Sc) feat dtype
    ft = ft_ref[0]
    sc = lab.shape[1]

    if true_s % chunk_size != 0:
        # The last block extends past S; those reads are unspecified, so mask
        # by lane position (labels -> -1, features -> 0) before any math.
        pos = chunk * chunk_size + lax.broadcasted_iota(jnp.int32, (1, sc), 1)
        in_range = pos < true_s
        lab = jnp.where(in_range, lab, -1)
        fs = jnp.where(in_range, fs, jnp.zeros_like(fs))
        ft = jnp.where(in_range, ft, jnp.zeros_like(ft))

    k_iota = lax.broadcasted_iota(jnp.int32, (K, sc), 0)
    valid_k = jnp.logical_and(k_iota >= lo, k_iota < num_classes)
    oh_bool = jnp.logical_and(k_iota == lab, valid_k)    # (K, Sc)
    cov_bool = jnp.logical_and(lab >= lo, lab < num_classes)   # (1, Sc)

    @pl.when(jnp.logical_and(phase == 0, chunk == 0))
    def _init():
        csum_ref[...] = jnp.zeros_like(csum_ref)
        cnt_ref[...] = jnp.zeros_like(cnt_ref)
        out_ref[...] = jnp.zeros_like(out_ref)

    @pl.when(phase == 0)
    def _accumulate():
        oh_mm = oh_bool.astype(fs.dtype)                 # native MXU dtype
        cov_mm = cov_bool.astype(fs.dtype)
        csum_ref[0:C, :] += lax.dot_general(
            fs, oh_mm, _DN_BT, preferred_element_type=jnp.float32)
        csum_ref[C:2 * C, :] += lax.dot_general(
            ft, oh_mm, _DN_BT, preferred_element_type=jnp.float32)
        cnt_ref[...] += lax.dot_general(
            cov_mm, oh_mm, _DN_BT, preferred_element_type=jnp.float32)

    @pl.when(jnp.logical_and(phase == 1, chunk == 0))
    def _sums_to_means():
        # Hoisted once per batch: convert stacked per-class sums to means in
        # place so each phase-1 chunk only does the (2C,K)@(K,Sc) scatter.
        csum_ref[...] *= pl.reciprocal(cnt_ref[...] + _CNT_EPS)

    @pl.when(phase == 1)
    def _finalize():
        oh_f32 = oh_bool.astype(jnp.float32)
        cand = jnp.dot(csum_ref[...], oh_f32,
                       preferred_element_type=jnp.float32)      # (2C, Sc)
        covered = cov_bool.astype(jnp.float32)
        not_cov = 1.0 - covered
        fs32 = fs.astype(jnp.float32)
        ft32 = ft.astype(jnp.float32)
        cen_s = covered * cand[0:C, :] + not_cov * fs32
        cen_t = covered * cand[C:2 * C, :] + not_cov * ft32
        diff = _cosine(fs32, cen_s) - _cosine(ft32, cen_t)      # (1, Sc)
        out_ref[...] += jnp.sum(diff * diff, axis=1, keepdims=True).reshape(1, 1, 1)


# --------------------------------------------------------------------------
# Sizing helpers
# --------------------------------------------------------------------------
def _round_up(x, m):
    return ((x + m - 1) // m) * m


def _cdiv(a, b):
    return (a + b - 1) // b


def _vmem_budgets():
    """(chunk working-set budget, vmem_limit cap) per TPU generation."""
    cap = 64 * 2**20
    try:
        info = pltpu.get_tpu_info()
        cap = int(getattr(info, "vmem_capacity_bytes", cap))
    except Exception:
        pass
    if cap <= 64 * 2**20:                   # v7x-class part (64 MiB VMEM)
        return 14 * 2**20, 40 * 2**20
    return 32 * 2**20, 64 * 2**20           # v5e / v6e (128 MiB VMEM)


def _vmem_estimate(sc, C, K, in_bytes):
    """Rough per-chunk VMEM footprint (double-buffered inputs + temporaries)."""
    inputs = 2 * (2 * C * sc * in_bytes + sc * 4)
    temps = (K * (4 + in_bytes) + 8 * C * 4 + 8 * 4) * sc
    return inputs + temps


def _choose_chunk(S, C, K, in_bytes, budget_bytes):
    """Largest lane-aligned S-chunk whose working set fits the VMEM budget."""
    s_al = _round_up(max(S, 1), 128)
    for cand in (32768, 16384, 8192, 4096, 2048, 1024, 512, 256, 128):
        sc = min(cand, s_al)
        if _vmem_estimate(sc, C, K, in_bytes) <= budget_bytes:
            return sc
    return min(128, s_al)


def _nearest_upsample_3d(t, out_dhw):
    """Nearest-neighbour upsample of (B, 1, d, h, w) to (B, 1, D, H, W)."""
    d_in, h_in, w_in = t.shape[2], t.shape[3], t.shape[4]
    D, H, W = out_dhw
    di = (jnp.arange(D) * d_in) // D
    hi = (jnp.arange(H) * h_in) // H
    wi = (jnp.arange(W) * w_in) // W
    return t[:, :, di][:, :, :, hi][:, :, :, :, wi]


# --------------------------------------------------------------------------
# Wrapper
# --------------------------------------------------------------------------
@functools.partial(
    jax.jit,
    static_argnames=("num_classes", "loss_weight", "force_two_phase",
                     "chunk_override"))
def criterion_ifv(feat_S, feat_T, target, *, num_classes, loss_weight,
                  force_two_phase=False, chunk_override=None):
    B, C, D, H, W = feat_S.shape
    S = D * H * W
    K = max(8, _round_up(num_classes, 8))

    # Stream features in their caller-provided dtype (bf16 halves HBM traffic);
    # all VPU/EUP math is upcast to f32 inside the kernel.
    if feat_S.dtype in (jnp.dtype(jnp.bfloat16), jnp.dtype(jnp.float32)):
        feat_dtype = jnp.dtype(feat_S.dtype)
    else:
        feat_dtype = jnp.dtype(jnp.float32)
    in_bytes = feat_dtype.itemsize

    lab = _nearest_upsample_3d(target.astype(jnp.int32), (D, H, W)).reshape(B, 1, S)
    fs = feat_S.reshape(B, C, S).astype(feat_dtype)
    ft = feat_T.reshape(B, C, S).astype(feat_dtype)

    chunk_budget, limit_cap = _vmem_budgets()
    single_bytes = _vmem_estimate(_round_up(S, 128), C, K, in_bytes)

    # TODO(synk): split the chunk axis across v7x's two TensorCores (per-core
    # partial csum/cnt/out reduced in the wrapper) so B == 1 doesn't idle a core.
    if (not force_two_phase) and chunk_override is None and \
            single_bytes <= chunk_budget:
        # ---- Single-pass fast path: whole (C, S) slab resident in VMEM ------
        vmem_limit = int(min(limit_cap,
                             max(32 * 2**20, 2 * single_bytes + (4 << 20))))
        kernel = functools.partial(_ifv_single_pass_kernel,
                                   num_classes=num_classes, padded_classes=K)
        sq_sums = pl.pallas_call(
            kernel,
            out_shape=jax.ShapeDtypeStruct((B, 1, 1), jnp.float32),
            grid=(B,),
            in_specs=[
                pl.BlockSpec((1, C, S), lambda b: (b, 0, 0)),
                pl.BlockSpec((1, C, S), lambda b: (b, 0, 0)),
                pl.BlockSpec((1, 1, S), lambda b: (b, 0, 0)),
            ],
            out_specs=pl.BlockSpec((1, 1, 1), lambda b: (b, 0, 0)),
            compiler_params=pltpu.CompilerParams(
                dimension_semantics=("parallel",),
                vmem_limit_bytes=vmem_limit),
        )(fs, ft, lab)
    else:
        # ---- Two-phase streaming path ---------------------------------------
        if chunk_override is not None:
            Sc = int(chunk_override)
        else:
            Sc = _choose_chunk(S, C, K, in_bytes, chunk_budget)
        Sc = min(_round_up(max(Sc, 128), 128), _round_up(S, 128))
        num_chunks = _cdiv(S, Sc)
        est = _vmem_estimate(Sc, C, K, in_bytes)
        vmem_limit = int(min(limit_cap, max(32 * 2**20, 2 * est + (4 << 20))))

        kernel = functools.partial(
            _ifv_two_phase_kernel, num_classes=num_classes, channels=C,
            padded_classes=K, true_s=S, chunk_size=Sc)
        sq_sums = pl.pallas_call(
            kernel,
            out_shape=jax.ShapeDtypeStruct((B, 1, 1), jnp.float32),
            grid=(B, 2, num_chunks),
            in_specs=[
                pl.BlockSpec((1, C, Sc), lambda b, p, s: (b, 0, s)),
                pl.BlockSpec((1, C, Sc), lambda b, p, s: (b, 0, s)),
                pl.BlockSpec((1, 1, Sc), lambda b, p, s: (b, 0, s)),
            ],
            out_specs=pl.BlockSpec((1, 1, 1), lambda b, p, s: (b, 0, 0)),
            scratch_shapes=[
                pltpu.VMEM((2 * C, K), jnp.float32),   # stacked S/T class sums
                pltpu.VMEM((1, K), jnp.float32),       # per-class pixel counts
            ],
            compiler_params=pltpu.CompilerParams(
                dimension_semantics=("parallel", "arbitrary", "arbitrary"),
                vmem_limit_bytes=vmem_limit),
        )(fs, ft, lab)

    # MSELoss = mean over the (B, D, H, W) cosine-similarity difference map.
    return loss_weight * (jnp.sum(sq_sums) / (B * S))


# --------------------------------------------------------------------------
# Pure-JAX reference (literal port of the PyTorch module)
# --------------------------------------------------------------------------
def criterion_ifv_ref(feat_S, feat_T, target, *, num_classes, loss_weight):
    B, C, D, H, W = feat_S.shape
    lab = _nearest_upsample_3d(target.astype(jnp.int32), (D, H, W))
    tar = jnp.broadcast_to(lab, feat_S.shape)

    fS = feat_S.astype(jnp.float32)
    fT = feat_T.astype(jnp.float32)
    center_S = fS
    center_T = fT
    for i in range(num_classes):
        if num_classes == 2 and i == 0:
            continue
        m = (tar == i).astype(jnp.float32)
        mean_S = (m * fS).sum((-1, -2, -3)) / (m.sum((-1, -2, -3)) + _CNT_EPS)
        mean_T = (m * fT).sum((-1, -2, -3)) / (m.sum((-1, -2, -3)) + _CNT_EPS)
        center_S = (1 - m) * center_S + m * mean_S[..., None, None, None]
        center_T = (1 - m) * center_T + m * mean_T[..., None, None, None]

    def cos(a, b):
        w12 = (a * b).sum(1)
        w1 = (a * a).sum(1)
        w2 = (b * b).sum(1)
        return w12 / jnp.sqrt(jnp.maximum(w1 * w2, _COS_EPS * _COS_EPS))

    pc_S = cos(fS, center_S)
    pc_T = cos(fT, center_T)
    return loss_weight * jnp.mean((pc_S - pc_T) ** 2)


if __name__ == "__main__":
    key = jax.random.PRNGKey(0)
    k1, k2, k3, k4, k5, k6 = jax.random.split(key, 6)

    NUM_CLASSES = 5
    LOSS_WEIGHT = 25.0

    # --- Test A: f32 features, auto dispatch (single-pass VMEM-resident) -----
    B, C, D, H, W = 2, 8, 8, 16, 32          # S = 4096
    feat_S = jax.random.normal(k1, (B, C, D, H, W), dtype=jnp.float32)
    feat_T = jax.random.normal(k2, (B, C, D, H, W), dtype=jnp.float32)
    target = jax.random.randint(k3, (B, 1, 4, 8, 16), 0, NUM_CLASSES, dtype=jnp.int32)

    loss = criterion_ifv(feat_S, feat_T, target,
                         num_classes=NUM_CLASSES, loss_weight=LOSS_WEIGHT)
    jax.block_until_ready(loss)
    ref = criterion_ifv_ref(feat_S, feat_T, target,
                            num_classes=NUM_CLASSES, loss_weight=LOSS_WEIGHT)
    assert jnp.allclose(loss, ref, rtol=1e-4, atol=1e-5), ("single-pass f32", loss, ref)

    # --- Test B: f32, forced two-phase streaming path with a partial tail ----
    B2, C2, D2, H2, W2 = 2, 8, 4, 8, 24      # S = 768, chunk 512 -> masked tail
    fS2 = jax.random.normal(k4, (B2, C2, D2, H2, W2), dtype=jnp.float32)
    fT2 = jax.random.normal(k5, (B2, C2, D2, H2, W2), dtype=jnp.float32)
    tgt2 = jax.random.randint(k6, (B2, 1, 2, 4, 12), 0, NUM_CLASSES, dtype=jnp.int32)
    loss2 = criterion_ifv(fS2, fT2, tgt2, num_classes=NUM_CLASSES,
                          loss_weight=LOSS_WEIGHT,
                          force_two_phase=True, chunk_override=512)
    jax.block_until_ready(loss2)
    ref2 = criterion_ifv_ref(fS2, fT2, tgt2, num_classes=NUM_CLASSES,
                             loss_weight=LOSS_WEIGHT)
    assert jnp.allclose(loss2, ref2, rtol=1e-4, atol=1e-5), ("two-phase f32", loss2, ref2)

    # --- Test C: bf16 feature DMA (two-phase) vs bf16-rounded f32 reference --
    fS_b = feat_S.astype(jnp.bfloat16)
    fT_b = feat_T.astype(jnp.bfloat16)
    loss3 = criterion_ifv(fS_b, fT_b, target, num_classes=NUM_CLASSES,
                          loss_weight=LOSS_WEIGHT,
                          force_two_phase=True, chunk_override=1024)
    jax.block_until_ready(loss3)
    ref3 = criterion_ifv_ref(fS_b.astype(jnp.float32), fT_b.astype(jnp.float32),
                             target, num_classes=NUM_CLASSES,
                             loss_weight=LOSS_WEIGHT)
    assert jnp.allclose(loss3, ref3, rtol=1e-3, atol=1e-4), ("two-phase bf16", loss3, ref3)

    print("KERNEL_OK")
</pallas_src>

<mosaic_0001>
module attributes {stable_mosaic.version = 11 : i64} {
  func.func @_ifv_single_pass_kernel(%arg0: i32, %arg1: memref<1x8x4096xf32, #tpu.memory_space<vmem>>, %arg2: memref<1x8x4096xf32, #tpu.memory_space<vmem>>, %arg3: memref<1x1x4096xi32, #tpu.memory_space<vmem>>, %arg4: memref<1x1x1xf32, #tpu.memory_space<vmem>>) attributes {dimension_semantics = [#tpu.dimension_semantics<parallel>], iteration_bounds = array<i64: 2>, scalar_prefetch = 0 : i64, scratch_operands = 0 : i64, tpu.core_type = #tpu.core_type<tc>, window_params = [{transform_indices = @transform_0, window_bounds = array<i64: 1, 8, 4096>}, {transform_indices = @transform_1, window_bounds = array<i64: 1, 8, 4096>}, {transform_indices = @transform_2, window_bounds = array<i64: 1, 1, 4096>}, {transform_indices = @transform_3, window_bounds = array<i64: 1, 1, 1>}]} {
    %c0 = arith.constant 0 : index
    %c0_0 = arith.constant 0 : index
    %c0_1 = arith.constant 0 : index
    %0 = vector.load %arg3[%c0, %c0_0, %c0_1] : memref<1x1x4096xi32, #tpu.memory_space<vmem>>, vector<1x1x4096xi32>
    %1 = vector.shape_cast %0 : vector<1x1x4096xi32> to vector<1x4096xi32>
    %c0_2 = arith.constant 0 : index
    %c0_3 = arith.constant 0 : index
    %c0_4 = arith.constant 0 : index
    %2 = vector.load %arg1[%c0_2, %c0_3, %c0_4] : memref<1x8x4096xf32, #tpu.memory_space<vmem>>, vector<1x8x4096xf32>
    %3 = vector.shape_cast %2 : vector<1x8x4096xf32> to vector<8x4096xf32>
    %c0_5 = arith.constant 0 : index
    %c0_6 = arith.constant 0 : index
    %c0_7 = arith.constant 0 : index
    %4 = vector.load %arg2[%c0_5, %c0_6, %c0_7] : memref<1x8x4096xf32, #tpu.memory_space<vmem>>, vector<1x8x4096xf32>
    %5 = vector.shape_cast %4 : vector<1x8x4096xf32> to vector<8x4096xf32>
    %6 = tpu.iota {dimensions = array<i32: 0>} : vector<8x4096xi32>
    %c0_i32 = arith.constant 0 : i32
    %7 = vector.broadcast %c0_i32 : i32 to vector<8x4096xi32>
    %8 = arith.cmpi sge, %6, %7 : vector<8x4096xi32>
    %c5_i32 = arith.constant 5 : i32
    %9 = vector.broadcast %c5_i32 : i32 to vector<8x4096xi32>
    %10 = arith.cmpi slt, %6, %9 : vector<8x4096xi32>
    %11 = arith.andi %8, %10 : vector<8x4096xi1>
    %12 = vector.broadcast %1 : vector<1x4096xi32> to vector<8x4096xi32>
    %13 = arith.cmpi eq, %6, %12 : vector<8x4096xi32>
    %14 = arith.andi %13, %11 : vector<8x4096xi1>
    %c0_i32_8 = arith.constant 0 : i32
    %15 = vector.broadcast %c0_i32_8 : i32 to vector<1x4096xi32>
    %16 = arith.cmpi sge, %1, %15 : vector<1x4096xi32>
    %c5_i32_9 = arith.constant 5 : i32
    %17 = vector.broadcast %c5_i32_9 : i32 to vector<1x4096xi32>
    %18 = arith.cmpi slt, %1, %17 : vector<1x4096xi32>
    %19 = arith.andi %16, %18 : vector<1x4096xi1>
    %20 = arith.extui %14 : vector<8x4096xi1> to vector<8x4096xi32>
    %21 = arith.sitofp %20 : vector<8x4096xi32> to vector<8x4096xf32>
    %22 = arith.extui %19 : vector<1x4096xi1> to vector<1x4096xi32>
    %23 = arith.sitofp %22 : vector<1x4096xi32> to vector<1x4096xf32>
    %cst = arith.constant dense<0.000000e+00> : vector<8x8xf32>
    %24 = tpu.matmul %3, %21, %cst {dimension_numbers = #tpu.dot_dimension_numbers<[1], [1], [0], [0], [0, 0, 1, 0], [], []>} : vector<8x4096xf32>, vector<8x4096xf32>, vector<8x8xf32> -> vector<8x8xf32>
    %cst_10 = arith.constant dense<0.000000e+00> : vector<8x8xf32>
    %25 = tpu.matmul %5, %21, %cst_10 {dimension_numbers = #tpu.dot_dimension_numbers<[1], [1], [0], [0], [0, 0, 1, 0], [], []>} : vector<8x4096xf32>, vector<8x4096xf32>, vector<8x8xf32> -> vector<8x8xf32>
    %cst_11 = arith.constant dense<0.000000e+00> : vector<1x8xf32>
    %26 = tpu.matmul %23, %21, %cst_11 {dimension_numbers = #tpu.dot_dimension_numbers<[1], [1], [0], [0], [0, 0, 1, 0], [], []>} : vector<1x4096xf32>, vector<8x4096xf32>, vector<1x8xf32> -> vector<1x8xf32>
    %cst_12 = arith.constant 9.99999997E-7 : f32
    %27 = vector.broadcast %cst_12 : f32 to vector<1x8xf32>
    %28 = arith.addf %26, %27 : vector<1x8xf32>
    %29 = tpu.reciprocal %28 : vector<1x8xf32> -> vector<1x8xf32>
    %30 = vector.broadcast %29 : vector<1x8xf32> to vector<8x8xf32>
    %31 = arith.mulf %24, %30 : vector<8x8xf32>
    %32 = vector.broadcast %29 : vector<1x8xf32> to vector<8x8xf32>
    %33 = arith.mulf %25, %32 : vector<8x8xf32>
    %34 = arith.extui %14 : vector<8x4096xi1> to vector<8x4096xi32>
    %35 = arith.sitofp %34 : vector<8x4096xi32> to vector<8x4096xf32>
    %cst_13 = arith.constant dense<0.000000e+00> : vector<8x4096xf32>
    %36 = tpu.matmul %31, %35, %cst_13 {dimension_numbers = #tpu.dot_dimension_numbers<[1], [0], [0], [1], [0, 0, 1, 1], [], []>} : vector<8x8xf32>, vector<8x4096xf32>, vector<8x4096xf32> -> vector<8x4096xf32>
    %cst_14 = arith.constant dense<0.000000e+00> : vector<8x4096xf32>
    %37 = tpu.matmul %33, %35, %cst_14 {dimension_numbers = #tpu.dot_dimension_numbers<[1], [0], [0], [1], [0, 0, 1, 1], [], []>} : vector<8x8xf32>, vector<8x4096xf32>, vector<8x4096xf32> -> vector<8x4096xf32>
    %38 = arith.extui %19 : vector<1x4096xi1> to vector<1x4096xi32>
    %39 = arith.sitofp %38 : vector<1x4096xi32> to vector<1x4096xf32>
    %cst_15 = arith.constant 1.000000e+00 : f32
    %40 = vector.broadcast %cst_15 : f32 to vector<1x4096xf32>
    %41 = arith.subf %40, %39 : vector<1x4096xf32>
    %42 = vector.broadcast %39 : vector<1x4096xf32> to vector<8x4096xf32>
    %43 = arith.mulf %42, %36 : vector<8x4096xf32>
    %44 = vector.broadcast %41 : vector<1x4096xf32> to vector<8x4096xf32>
    %45 = arith.mulf %44, %3 : vector<8x4096xf32>
    %46 = arith.addf %43, %45 : vector<8x4096xf32>
    %47 = vector.broadcast %39 : vector<1x4096xf32> to vector<8x4096xf32>
    %48 = arith.mulf %47, %37 : vector<8x4096xf32>
    %49 = vector.broadcast %41 : vector<1x4096xf32> to vector<8x4096xf32>
    %50 = arith.mulf %49, %5 : vector<8x4096xf32>
    %51 = arith.addf %48, %50 : vector<8x4096xf32>
    %52 = arith.mulf %3, %46 : vector<8x4096xf32>
    %cst_16 = arith.constant dense<0.000000e+00> : vector<4096xf32>
    %53 = vector.multi_reduction <add>, %52, %cst_16 [0] : vector<8x4096xf32> to vector<4096xf32>
    %54 = vector.shape_cast %53 : vector<4096xf32> to vector<1x4096xf32>
    %55 = arith.mulf %3, %3 : vector<8x4096xf32>
    %cst_17 = arith.constant dense<0.000000e+00> : vector<4096xf32>
    %56 = vector.multi_reduction <add>, %55, %cst_17 [0] : vector<8x4096xf32> to vector<4096xf32>
    %57 = vector.shape_cast %56 : vector<4096xf32> to vector<1x4096xf32>
    %58 = arith.mulf %46, %46 : vector<8x4096xf32>
    %cst_18 = arith.constant dense<0.000000e+00> : vector<4096xf32>
    %59 = vector.multi_reduction <add>, %58, %cst_18 [0] : vector<8x4096xf32> to vector<4096xf32>
    %60 = vector.shape_cast %59 : vector<4096xf32> to vector<1x4096xf32>
    %61 = arith.mulf %57, %60 : vector<1x4096xf32>
    %cst_19 = arith.constant 1.000000e-16 : f32
    %62 = vector.broadcast %cst_19 : f32 to vector<1x4096xf32>
    %63 = arith.maximumf %61, %62 : vector<1x4096xf32>
    %64 = math.rsqrt %63 : vector<1x4096xf32>
    %65 = arith.mulf %54, %64 : vector<1x4096xf32>
    %66 = arith.mulf %5, %51 : vector<8x4096xf32>
    %cst_20 = arith.constant dense<0.000000e+00> : vector<4096xf32>
    %67 = vector.multi_reduction <add>, %66, %cst_20 [0] : vector<8x4096xf32> to vector<4096xf32>
    %68 = vector.shape_cast %67 : vector<4096xf32> to vector<1x4096xf32>
    %69 = arith.mulf %5, %5 : vector<8x4096xf32>
    %cst_21 = arith.constant dense<0.000000e+00> : vector<4096xf32>
    %70 = vector.multi_reduction <add>, %69, %cst_21 [0] : vector<8x4096xf32> to vector<4096xf32>
    %71 = vector.shape_cast %70 : vector<4096xf32> to vector<1x4096xf32>
    %72 = arith.mulf %51, %51 : vector<8x4096xf32>
    %cst_22 = arith.constant dense<0.000000e+00> : vector<4096xf32>
    %73 = vector.multi_reduction <add>, %72, %cst_22 [0] : vector<8x4096xf32> to vector<4096xf32>
    %74 = vector.shape_cast %73 : vector<4096xf32> to vector<1x4096xf32>
    %75 = arith.mulf %71, %74 : vector<1x4096xf32>
    %cst_23 = arith.constant 1.000000e-16 : f32
    %76 = vector.broadcast %cst_23 : f32 to vector<1x4096xf32>
    %77 = arith.maximumf %75, %76 : vector<1x4096xf32>
    %78 = math.rsqrt %77 : vector<1x4096xf32>
    %79 = arith.mulf %68, %78 : vector<1x4096xf32>
    %80 = arith.subf %65, %79 : vector<1x4096xf32>
    %81 = arith.mulf %80, %80 : vector<1x4096xf32>
    %cst_24 = arith.constant dense<0.000000e+00> : vector<1xf32>
    %82 = vector.multi_reduction <add>, %81, %cst_24 [1] : vector<1x4096xf32> to vector<1xf32>
    %83 = vector.shape_cast %82 : vector<1xf32> to vector<1x1xf32>
    %84 = vector.shape_cast %83 : vector<1x1xf32> to vector<1x1x1xf32>
    %c0_25 = arith.constant 0 : index
    %c0_26 = arith.constant 0 : index
    %c0_27 = arith.constant 0 : index
    %85 = vector.load %arg4[%c0_25, %c0_26, %c0_27] : memref<1x1x1xf32, #tpu.memory_space<vmem>>, vector<1x1x1xf32>
    tpu.vector_store %arg4[%c0_25, %c0_26, %c0_27], %84 {strides = array<i32>} : memref<1x1x1xf32, #tpu.memory_space<vmem>>, vector<1x1x1xf32>,
    return
  }
  func.func @transform_0(%arg0: i32) -> (i32, i32, i32) {
    %c0_i32 = arith.constant 0 : i32
    %c0_i32_0 = arith.constant 0 : i32
    %c0_i32_1 = arith.constant 0 : i32
    return %arg0, %c0_i32, %c0_i32_0 : i32, i32, i32
  }
  func.func @transform_1(%arg0: i32) -> (i32, i32, i32) {
    %c0_i32 = arith.constant 0 : i32
    %c0_i32_0 = arith.constant 0 : i32
    %c0_i32_1 = arith.constant 0 : i32
    return %arg0, %c0_i32, %c0_i32_0 : i32, i32, i32
  }
  func.func @transform_2(%arg0: i32) -> (i32, i32, i32) {
    %c0_i32 = arith.constant 0 : i32
    %c0_i32_0 = arith.constant 0 : i32
    %c0_i32_1 = arith.constant 0 : i32
    return %arg0, %c0_i32, %c0_i32_0 : i32, i32, i32
  }
  func.func @transform_3(%arg0: i32) -> (i32, i32, i32) {
    %c0_i32 = arith.constant 0 : i32
    %c0_i32_0 = arith.constant 0 : i32
    %c0_i32_1 = arith.constant 0 : i32
    return %arg0, %c0_i32, %c0_i32_0 : i32, i32, i32
  }
}

</mosaic_0001>

<llo_original>
// kernel: criterion_ifv.1
$region0: #{criterion_ifv.1}
  #allocation0 [shape = 'u32[]', space=smem, size = 0x4, offset = 0x4, fixed_abs, tag = 'smem constant byte address 0x4 - core index']
  #allocation1 [shape = 'u32[72,128]{1,0:T(1,128)}', space=vmem, size = 0x9000, scoped, tag = 'internal scratch']
  %s0 = inlined_call_operand.vmem [shape: f32[2,8,4096], index: 0, kind: input, shape index: {}]
  %s1 = inlined_call_operand.vmem [shape: f32[2,8,4096], index: 1, kind: input, shape index: {}]
  %s2 = inlined_call_operand.vmem [shape: s32[2,1,4096], index: 2, kind: input, shape index: {}]
  %s3 = inlined_call_operand.vmem [shape: f32[2,1,1], index: 3, kind: output, shape index: {}]
  %s4 = sld [smem:[#allocation0]]
  $region45: #{criterion_ifv.1} parent=0
    _
  %s6 = ssub.s32 1, %s4
  %s7 = scalar_select 0, %s6, %s4
  loop: start=0, step=1, limit=4
  $region2: #{criterion_ifv.1} parent=0 // loop_pre_header
    _
  $region3: #{criterion_ifv.1} parent=0 // loop_header
    %s9 = sphi 0, %s13
    %p10 = scmp.ge.s32.totalorder %s9, 4
    %s19 = sphi 0, %s21
    %s22 = sphi 0, %s19
    %s23 = sphi 0, %s22
    %s39 = sphi 0, %s23
    %s45 = sphi 0, %s47
    %s48 = sphi 0, %s45
    %s49 = sphi 0, %s48
    %s65 = sphi 0, %s49
    %s71 = sphi 0, %s73
    %s74 = sphi 0, %s71
    %s75 = sphi 0, %s74
    %s91 = sphi 0, %s75
    %s97 = sphi 0, %s99
    %s100 = sphi 0, %s97
    %s101 = sphi 0, %s100
    %s117 = sphi 0, %s101
  $region4: #{criterion_ifv.1} parent=0 // loop_header_branch
    %12 = sbr.rel (%p10) target = $region8
  $region5: #{criterion_ifv.1} parent=0 // loop_body
    %s14 = ssub.s32 %s9, 1
    %s15 = ssub.s32 %s9, 2
    %s16 = sadd.s32 %s9, 1
    %s17 = ssub.s32 %s9, %s16
    %p18 = scmp.eq.s32.totalorder %s17, 0
    %s20 = sadd.s32 %s19, 1
    %s21 = scalar_select %p18, %s19, %s20
    %p24 = pneg %p18
    %p25 = scmp.eq.s32.totalorder %s9, 1
    %p26 = por %p24, %p25
    %p27 = scmp.ne.s32.totalorder %s19, %s22
    %p28 = scmp.eq.s32.totalorder %s9, 0
    %p29 = por %p27, %p28
    %p30 = scmp.ne.s32.totalorder %s19, %s22
    %p31 = scmp.eq.s32.totalorder %s14, 1
    %p32 = por %p30, %p31
    %p33 = scmp.ne.s32.totalorder %s22, %s23
    %p34 = scmp.eq.s32.totalorder %s14, 0
    %p35 = por %p33, %p34
    %p36 = scmp.ne.s32.totalorder %s22, %s23
    %p37 = scmp.eq.s32.totalorder %s15, 1
    %p38 = por %p36, %p37
    %p40 = scmp.ne.s32.totalorder %s23, %s39
    %p41 = scmp.eq.s32.totalorder %s15, 0
    %p42 = por %p40, %p41
    %s43 = ssub.s32 %s9, %s16
    %p44 = scmp.eq.s32.totalorder %s43, 0
    %s46 = sadd.s32 %s45, 1
    %s47 = scalar_select %p44, %s45, %s46
    %p50 = pneg %p44
    %p51 = scmp.eq.s32.totalorder %s9, 1
    %p52 = por %p50, %p51
    %p53 = scmp.ne.s32.totalorder %s45, %s48
    %p54 = scmp.eq.s32.totalorder %s9, 0
    %p55 = por %p53, %p54
    %p56 = scmp.ne.s32.totalorder %s45, %s48
    %p57 = scmp.eq.s32.totalorder %s14, 1
    %p58 = por %p56, %p57
    %p59 = scmp.ne.s32.totalorder %s48, %s49
    %p60 = scmp.eq.s32.totalorder %s14, 0
    %p61 = por %p59, %p60
    %p62 = scmp.ne.s32.totalorder %s48, %s49
    %p63 = scmp.eq.s32.totalorder %s15, 1
    %p64 = por %p62, %p63
    %p66 = scmp.ne.s32.totalorder %s49, %s65
    %p67 = scmp.eq.s32.totalorder %s15, 0
    %p68 = por %p66, %p67
    %s69 = ssub.s32 %s9, %s16
    %p70 = scmp.eq.s32.totalorder %s69, 0
    %s72 = sadd.s32 %s71, 1
    %s73 = scalar_select %p70, %s71, %s72
    %p76 = pneg %p70
    %p77 = scmp.eq.s32.totalorder %s9, 1
    %p78 = por %p76, %p77
    %p79 = scmp.ne.s32.totalorder %s71, %s74
    %p80 = scmp.eq.s32.totalorder %s9, 0
    %p81 = por %p79, %p80
    %p82 = scmp.ne.s32.totalorder %s71, %s74
    %p83 = scmp.eq.s32.totalorder %s14, 1
    %p84 = por %p82, %p83
    %p85 = scmp.ne.s32.totalorder %s74, %s75
    %p86 = scmp.eq.s32.totalorder %s14, 0
    %p87 = por %p85, %p86
    %p88 = scmp.ne.s32.totalorder %s74, %s75
    %p89 = scmp.eq.s32.totalorder %s15, 1
    %p90 = por %p88, %p89
    %p92 = scmp.ne.s32.totalorder %s75, %s91
    %p93 = scmp.eq.s32.totalorder %s15, 0
    %p94 = por %p92, %p93
    %s95 = ssub.s32 %s9, %s16
    %p96 = scmp.eq.s32.totalorder %s95, 0
    %s98 = sadd.s32 %s97, 1
    %s99 = scalar_select %p96, %s97, %s98
    %p102 = pneg %p96
    %p103 = scmp.eq.s32.totalorder %s9, 1
    %p104 = por %p102, %p103
    %p105 = scmp.ne.s32.totalorder %s97, %s100
    %p106 = scmp.eq.s32.totalorder %s9, 0
    %p107 = por %p105, %p106
    %p108 = scmp.ne.s32.totalorder %s97, %s100
    %p109 = scmp.eq.s32.totalorder %s14, 1
    %p110 = por %p108, %p109
    %p111 = scmp.ne.s32.totalorder %s100, %s101
    %p112 = scmp.eq.s32.totalorder %s14, 0
    %p113 = por %p111, %p112
    %p114 = scmp.ne.s32.totalorder %s100, %s101
    %p115 = scmp.eq.s32.totalorder %s15, 1
    %p116 = por %p114, %p115
    %p118 = scmp.ne.s32.totalorder %s101, %s117
    %p119 = scmp.eq.s32.totalorder %s15, 0
    %p120 = por %p118, %p119
    %p121 = scmp.le.s32.totalorder 1, %s9
    %p122 = scmp.lt.s32.totalorder %s9, 3
    %p123 = pnand %p121, %p122
    %p124 = pneg %p123
    // Predicated region
    $region9: #{criterion_ifv.1} parent=5 // pred_check
      _
    $region10: #{criterion_ifv.1} parent=5 // pred_check_branch
      %126 = sbr.rel (%p123) target = $region12
    $region11: #{criterion_ifv.1} parent=5 // pred_region
      %s127 = ssub.s32 %s9, 1
    $region12: #{criterion_ifv.1} parent=5 // pred_fallthru
      _
    %p128 = scmp.lt.s32.totalorder %s9, 2
    // Predicated region
    $region13: #{criterion_ifv.1} parent=5 // pred_check
      %p129 = pneg %p128
    $region14: #{criterion_ifv.1} parent=5 // pred_check_branch
      %131 = sbr.rel (%p129) target = $region16
    $region15: #{criterion_ifv.1} parent=5 // pred_region
      // Predicated region
      $region17: #{criterion_ifv.1} parent=15 // pred_check
        %p132 = pneg %p29
      $region18: #{criterion_ifv.1} parent=15 // pred_check_branch
        %134 = sbr.rel (%p132) target = $region20
      $region19: #{criterion_ifv.1} parent=15 // pred_region
        %p135 = scmp.lt.s32.totalorder %s9, 1
        %s136 = scalar_select %p135, %s9, 1
        %s137 = smul.addr %s136, 32
        %s138 = smul.addr %s137, 8
        %s139 = scalar_lea.vmem %s0, %s138
      $region20: #{criterion_ifv.1} parent=15 // pred_fallthru
        _
      // Predicated region
      $region21: #{criterion_ifv.1} parent=15 // pred_check
        %p140 = pneg %p55
      $region22: #{criterion_ifv.1} parent=15 // pred_check_branch
        %142 = sbr.rel (%p140) target = $region24
      $region23: #{criterion_ifv.1} parent=15 // pred_region
        %p143 = scmp.lt.s32.totalorder %s9, 1
        %s144 = scalar_select %p143, %s9, 1
        %s145 = smul.addr %s144, 32
        %s146 = smul.addr %s145, 8
        %s147 = scalar_lea.vmem %s1, %s146
      $region24: #{criterion_ifv.1} parent=15 // pred_fallthru
        _
      // Predicated region
      $region25: #{criterion_ifv.1} parent=15 // pred_check
        %p148 = pneg %p81
      $region26: #{criterion_ifv.1} parent=15 // pred_check_branch
        %150 = sbr.rel (%p148) target = $region28
      $region27: #{criterion_ifv.1} parent=15 // pred_region
        %p151 = scmp.lt.s32.totalorder %s9, 1
        %s152 = scalar_select %p151, %s9, 1
        %s153 = smul.addr %s152, 32
        %s154 = scalar_lea.vmem %s2, %s153
      $region28: #{criterion_ifv.1} parent=15 // pred_fallthru
        _
    $region16: #{criterion_ifv.1} parent=5 // pred_fallthru
      _
    %p155 = scmp.le.s32.totalorder 1, %s9
    %p156 = scmp.lt.s32.totalorder %s9, 3
    %p157 = pnand %p155, %p156
    %p158 = pneg %p157
    // Predicated region
    $region29: #{criterion_ifv.1} parent=5 // pred_check
      _
    $region30: #{criterion_ifv.1} parent=5 // pred_check_branch
      %160 = sbr.rel (%p157) target = $region32
    $region31: #{criterion_ifv.1} parent=5 // pred_region
      %s161 = ssub.s32 %s9, 1
      %p162 = scmp.lt.s32.totalorder %s14, 1
      %s163 = scalar_select %p162, %s14, 1
      %s164 = smul.addr %s163, 32
      %s165 = smul.addr %s164, 8
      %s166 = scalar_lea.vmem %s0, %s165
      %p167 = pneg %p35
      %p168 = pneg %p32
      %p169 = scmp.lt.s32.totalorder %s14, 1
      %s170 = scalar_select %p169, %s14, 1
      %s171 = smul.addr %s170, 32
      %s172 = smul.addr %s171, 8
      %s173 = scalar_lea.vmem %s1, %s172
      %p174 = pneg %p61
      %p175 = pneg %p58
      %p176 = scmp.lt.s32.totalorder %s14, 1
      %s177 = scalar_select %p176, %s14, 1
      %s178 = smul.addr %s177, 32
      %s179 = scalar_lea.vmem %s2, %s178
      %p180 = pneg %p87
      %p181 = pneg %p84
      %p182 = pneg %p113
      %p183 = pneg %p110
      %p184 = scmp.lt.s32.totalorder %s14, 1
      %s185 = scalar_select %p184, %s14, 1
      %s186 = scalar_lea.vmem %s3, %s185
      %p187 = scmp.lt.s32.totalorder %s14, 1
      %s188 = scalar_select %p187, %s14, 1
      %s189 = smul.addr %s188, 32
      %s190 = smul.addr %s189, 8
      %s191 = scalar_lea.vmem %s0, %s190
      %p192 = scmp.lt.s32.totalorder %s14, 1
      %s193 = scalar_select %p192, %s14, 1
      %s194 = smul.addr %s193, 32
      %s195 = smul.addr %s194, 8
      %s196 = scalar_lea.vmem %s1, %s195
      %p197 = scmp.lt.s32.totalorder %s14, 1
      %s198 = scalar_select %p197, %s14, 1
      %s199 = smul.addr %s198, 32
      %s200 = scalar_lea.vmem %s2, %s199
      %p201 = scmp.lt.s32.totalorder %s14, 1
      %s202 = scalar_select %p201, %s14, 1
      %s203 = scalar_lea.vmem %s3, %s202
      %v204 = vld [vmem:[%s200] sm:$0xff]
      %v205 = vld [vmem:[%s200 + $0x8] sm:$0xff]
      %v206 = vld [vmem:[%s200 + $0x10] sm:$0xff]
      %v207 = vld [vmem:[%s200 + $0x18] sm:$0xff]
      %v208 = vld [vmem:[%s191] sm:$0xff]
      %v209 = vld [vmem:[%s191 + $0x8] sm:$0xff]
      %v210 = vld [vmem:[%s191 + $0x10] sm:$0xff]
      %v211 = vld [vmem:[%s191 + $0x18] sm:$0xff]
      %v212 = vld [vmem:[%s191 + $0x20] sm:$0xff]
      %v213 = vld [vmem:[%s191 + $0x28] sm:$0xff]
      %v214 = vld [vmem:[%s191 + $0x30] sm:$0xff]
      %v215 = vld [vmem:[%s191 + $0x38] sm:$0xff]
      %v216 = vld [vmem:[%s191 + $0x40] sm:$0xff]
      %v217 = vld [vmem:[%s191 + $0x48] sm:$0xff]
      %v218 = vld [vmem:[%s191 + $0x50] sm:$0xff]
      %v219 = vld [vmem:[%s191 + $0x58] sm:$0xff]
      %v220 = vld [vmem:[%s191 + $0x60] sm:$0xff]
      %v221 = vld [vmem:[%s191 + $0x68] sm:$0xff]
      %v222 = vld [vmem:[%s191 + $0x70] sm:$0xff]
      %v223 = vld [vmem:[%s191 + $0x78] sm:$0xff]
      %v224 = vld [vmem:[%s191 + $0x80] sm:$0xff]
      %v225 = vld [vmem:[%s191 + $0x88] sm:$0xff]
      %v226 = vld [vmem:[%s191 + $0x90] sm:$0xff]
      %v227 = vld [vmem:[%s191 + $0x98] sm:$0xff]
      %v228 = vld [vmem:[%s191 + $0xa0] sm:$0xff]
      %v229 = vld [vmem:[%s191 + $0xa8] sm:$0xff]
      %v230 = vld [vmem:[%s191 + $0xb0] sm:$0xff]
      %v231 = vld [vmem:[%s191 + $0xb8] sm:$0xff]
      %v232 = vld [vmem:[%s191 + $0xc0] sm:$0xff]
      %v233 = vld [vmem:[%s191 + $0xc8] sm:$0xff]
      %v234 = vld [vmem:[%s191 + $0xd0] sm:$0xff]
      %v235 = vld [vmem:[%s191 + $0xd8] sm:$0xff]
      %v236 = vld [vmem:[%s191 + $0xe0] sm:$0xff]
      %v237 = vld [vmem:[%s191 + $0xe8] sm:$0xff]
      %v238 = vld [vmem:[%s191 + $0xf0] sm:$0xff]
      %v239 = vld [vmem:[%s191 + $0xf8] sm:$0xff]
      %v240 = vld [vmem:[%s196] sm:$0xff]
      %v241 = vld [vmem:[%s196 + $0x8] sm:$0xff]
      %v242 = vld [vmem:[%s196 + $0x10] sm:$0xff]
      %v243 = vld [vmem:[%s196 + $0x18] sm:$0xff]
      %v244 = vld [vmem:[%s196 + $0x20] sm:$0xff]
      %v245 = vld [vmem:[%s196 + $0x28] sm:$0xff]
      %v246 = vld [vmem:[%s196 + $0x30] sm:$0xff]
      %v247 = vld [vmem:[%s196 + $0x38] sm:$0xff]
      %v248 = vld [vmem:[%s196 + $0x40] sm:$0xff]
      %v249 = vld [vmem:[%s196 + $0x48] sm:$0xff]
      %v250 = vld [vmem:[%s196 + $0x50] sm:$0xff]
      %v251 = vld [vmem:[%s196 + $0x58] sm:$0xff]
      %v252 = vld [vmem:[%s196 + $0x60] sm:$0xff]
      %v253 = vld [vmem:[%s196 + $0x68] sm:$0xff]
      %v254 = vld [vmem:[%s196 + $0x70] sm:$0xff]
      %v255 = vld [vmem:[%s196 + $0x78] sm:$0xff]
      %v256 = vld [vmem:[%s196 + $0x80] sm:$0xff]
      %v257 = vld [vmem:[%s196 + $0x88] sm:$0xff]
      %v258 = vld [vmem:[%s196 + $0x90] sm:$0xff]
      %v259 = vld [vmem:[%s196 + $0x98] sm:$0xff]
      %v260 = vld [vmem:[%s196 + $0xa0] sm:$0xff]
      %v261 = vld [vmem:[%s196 + $0xa8] sm:$0xff]
      %v262 = vld [vmem:[%s196 + $0xb0] sm:$0xff]
      %v263 = vld [vmem:[%s196 + $0xb8] sm:$0xff]
      %v264 = vld [vmem:[%s196 + $0xc0] sm:$0xff]
      %v265 = vld [vmem:[%s196 + $0xc8] sm:$0xff]
      %v266 = vld [vmem:[%s196 + $0xd0] sm:$0xff]
      %v267 = vld [vmem:[%s196 + $0xd8] sm:$0xff]
      %v268 = vld [vmem:[%s196 + $0xe0] sm:$0xff]
      %v269 = vld [vmem:[%s196 + $0xe8] sm:$0xff]
      %v270 = vld [vmem:[%s196 + $0xf0] sm:$0xff]
      %v271 = vld [vmem:[%s196 + $0xf8] sm:$0xff]
      %v272 = vlaneseq
      %v273 = vshrl.u32 %v272, 7
      %vm274 = vcmp.ge.s32.totalorder %v273, 0
      %vm275 = vcmp.lt.s32.totalorder %v273, 5
      %vm276 = vmand %vm274, %vm275
      %v277 = vperm.slane %v204, 0
      %v278 = vperm.slane %v204, 1
      %v279 = vperm.slane %v204, 2
      %v280 = vperm.slane %v204, 3
      %v281 = vperm.slane %v204, 4
      %v282 = vperm.slane %v204, 5
      %v283 = vperm.slane %v204, 6
      %v284 = vperm.slane %v204, 7
      %v285 = vperm.slane %v205, 0
      %v286 = vperm.slane %v205, 1
      %v287 = vperm.slane %v205, 2
      %v288 = vperm.slane %v205, 3
      %v289 = vperm.slane %v205, 4
      %v290 = vperm.slane %v205, 5
      %v291 = vperm.slane %v205, 6
      %v292 = vperm.slane %v205, 7
      %v293 = vperm.slane %v206, 0
      %v294 = vperm.slane %v206, 1
      %v295 = vperm.slane %v206, 2
      %v296 = vperm.slane %v206, 3
      %v297 = vperm.slane %v206, 4
      %v298 = vperm.slane %v206, 5
      %v299 = vperm.slane %v206, 6
      %v300 = vperm.slane %v206, 7
      %v301 = vperm.slane %v207, 0
      %v302 = vperm.slane %v207, 1
      %v303 = vperm.slane %v207, 2
      %v304 = vperm.slane %v207, 3
      %v305 = vperm.slane %v207, 4
      %v306 = vperm.slane %v207, 5
      %v307 = vperm.slane %v207, 6
      %v308 = vperm.slane %v207, 7
      %vm309 = vcmp.eq.s32.totalorder %v273, %v277
      %vm310 = vcmp.eq.s32.totalorder %v273, %v278
      %vm311 = vcmp.eq.s32.totalorder %v273, %v279
      %vm312 = vcmp.eq.s32.totalorder %v273, %v280
      %vm313 = vcmp.eq.s32.totalorder %v273, %v281
      %vm314 = vcmp.eq.s32.totalorder %v273, %v282
      %vm315 = vcmp.eq.s32.totalorder %v273, %v283
      %vm316 = vcmp.eq.s32.totalorder %v273, %v284
      %vm317 = vcmp.eq.s32.totalorder %v273, %v285
      %vm318 = vcmp.eq.s32.totalorder %v273, %v286
      %vm319 = vcmp.eq.s32.totalorder %v273, %v287
      %vm320 = vcmp.eq.s32.totalorder %v273, %v288
      %vm321 = vcmp.eq.s32.totalorder %v273, %v289
      %vm322 = vcmp.eq.s32.totalorder %v273, %v290
      %vm323 = vcmp.eq.s32.totalorder %v273, %v291
      %vm324 = vcmp.eq.s32.totalorder %v273, %v292
      %vm325 = vcmp.eq.s32.totalorder %v273, %v293
      %vm326 = vcmp.eq.s32.totalorder %v273, %v294
      %vm327 = vcmp.eq.s32.totalorder %v273, %v295
      %vm328 = vcmp.eq.s32.totalorder %v273, %v296
      %vm329 = vcmp.eq.s32.totalorder %v273, %v297
      %vm330 = vcmp.eq.s32.totalorder %v273, %v298
      %vm331 = vcmp.eq.s32.totalorder %v273, %v299
      %vm332 = vcmp.eq.s32.totalorder %v273, %v300
      %vm333 = vcmp.eq.s32.totalorder %v273, %v301
      %vm334 = vcmp.eq.s32.totalorder %v273, %v302
      %vm335 = vcmp.eq.s32.totalorder %v273, %v303
      %vm336 = vcmp.eq.s32.totalorder %v273, %v304
      %vm337 = vcmp.eq.s32.totalorder %v273, %v305
      %vm338 = vcmp.eq.s32.totalorder %v273, %v306
      %vm339 = vcmp.eq.s32.totalorder %v273, %v307
      %vm340 = vcmp.eq.s32.totalorder %v273, %v308
      %vm341 = vmand %vm309, %vm276
      %vm342 = vmand %vm310, %vm276
      %vm343 = vmand %vm311, %vm276
      %vm344 = vmand %vm312, %vm276
      %vm345 = vmand %vm313, %vm276
      %vm346 = vmand %vm314, %vm276
      %vm347 = vmand %vm315, %vm276
      %vm348 = vmand %vm316, %vm276
      %vm349 = vmand %vm317, %vm276
      %vm350 = vmand %vm318, %vm276
      %vm351 = vmand %vm319, %vm276
      %vm352 = vmand %vm320, %vm276
      %vm353 = vmand %vm321, %vm276
      %vm354 = vmand %vm322, %vm276
      %vm355 = vmand %vm323, %vm276
      %vm356 = vmand %vm324, %vm276
      %vm357 = vmand %vm325, %vm276
      %vm358 = vmand %vm326, %vm276
      %vm359 = vmand %vm327, %vm276
      %vm360 = vmand %vm328, %vm276
      %vm361 = vmand %vm329, %vm276
      %vm362 = vmand %vm330, %vm276
      %vm363 = vmand %vm331, %vm276
      %vm364 = vmand %vm332, %vm276
      %vm365 = vmand %vm333, %vm276
      %vm366 = vmand %vm334, %vm276
      %vm367 = vmand %vm335, %vm276
      %vm368 = vmand %vm336, %vm276
      %vm369 = vmand %vm337, %vm276
      %vm370 = vmand %vm338, %vm276
      %vm371 = vmand %vm339, %vm276
      %vm372 = vmand %vm340, %vm276
      %vm373 = vcmp.ge.s32.totalorder %v204, 0
      %vm374 = vcmp.ge.s32.totalorder %v205, 0
      %vm375 = vcmp.ge.s32.totalorder %v206, 0
      %vm376 = vcmp.ge.s32.totalorder %v207, 0
      %vm377 = vcmp.lt.s32.totalorder %v204, 5
      %vm378 = vcmp.lt.s32.totalorder %v205, 5
      %vm379 = vcmp.lt.s32.totalorder %v206, 5
      %vm380 = vcmp.lt.s32.totalorder %v207, 5
      %vm381 = vmand %vm373, %vm377
      %vm382 = vmand %vm374, %vm378
      %vm383 = vmand %vm375, %vm379
      %vm384 = vmand %vm376, %vm380
      %v385 = vsel %vm341, 1, 0
      %v386 = vsel %vm342, 1, 0
      %v387 = vsel %vm343, 1, 0
      %v388 = vsel %vm344, 1, 0
      %v389 = vsel %vm345, 1, 0
      %v390 = vsel %vm346, 1, 0
      %v391 = vsel %vm347, 1, 0
      %v392 = vsel %vm348, 1, 0
      %v393 = vsel %vm349, 1, 0
      %v394 = vsel %vm350, 1, 0
      %v395 = vsel %vm351, 1, 0
      %v396 = vsel %vm352, 1, 0
      %v397 = vsel %vm353, 1, 0
      %v398 = vsel %vm354, 1, 0
      %v399 = vsel %vm355, 1, 0
      %v400 = vsel %vm356, 1, 0
      %v401 = vsel %vm357, 1, 0
      %v402 = vsel %vm358, 1, 0
      %v403 = vsel %vm359, 1, 0
      %v404 = vsel %vm360, 1, 0
      %v405 = vsel %vm361, 1, 0
      %v406 = vsel %vm362, 1, 0
      %v407 = vsel %vm363, 1, 0
      %v408 = vsel %vm364, 1, 0
      %v409 = vsel %vm365, 1, 0
      %v410 = vsel %vm366, 1, 0
      %v411 = vsel %vm367, 1, 0
      %v412 = vsel %vm368, 1, 0
      %v413 = vsel %vm369, 1, 0
      %v414 = vsel %vm370, 1, 0
      %v415 = vsel %vm371, 1, 0
      %v416 = vsel %vm372, 1, 0
      %v417 = vcvt.s32.f32 %v385
      %v418 = vcvt.s32.f32 %v386
      %v419 = vcvt.s32.f32 %v387
      %v420 = vcvt.s32.f32 %v388
      %v421 = vcvt.s32.f32 %v389
      %v422 = vcvt.s32.f32 %v390
      %v423 = vcvt.s32.f32 %v391
      %v424 = vcvt.s32.f32 %v392
      %v425 = vcvt.s32.f32 %v393
      %v426 = vcvt.s32.f32 %v394
      %v427 = vcvt.s32.f32 %v395
      %v428 = vcvt.s32.f32 %v396
      %v429 = vcvt.s32.f32 %v397
      %v430 = vcvt.s32.f32 %v398
      %v431 = vcvt.s32.f32 %v399
      %v432 = vcvt.s32.f32 %v400
      %v433 = vcvt.s32.f32 %v401
      %v434 = vcvt.s32.f32 %v402
      %v435 = vcvt.s32.f32 %v403
      %v436 = vcvt.s32.f32 %v404
      %v437 = vcvt.s32.f32 %v405
      %v438 = vcvt.s32.f32 %v406
      %v439 = vcvt.s32.f32 %v407
      %v440 = vcvt.s32.f32 %v408
      %v441 = vcvt.s32.f32 %v409
      %v442 = vcvt.s32.f32 %v410
      %v443 = vcvt.s32.f32 %v411
      %v444 = vcvt.s32.f32 %v412
      %v445 = vcvt.s32.f32 %v413
      %v446 = vcvt.s32.f32 %v414
      %v447 = vcvt.s32.f32 %v415
      %v448 = vcvt.s32.f32 %v416
      %v449 = vsel %vm381, 1, 0
      %v450 = vsel %vm382, 1, 0
      %v451 = vsel %vm383, 1, 0
      %v452 = vsel %vm384, 1, 0
      %v453 = vcvt.s32.f32 %v449
      %v454 = vcvt.s32.f32 %v450
      %v455 = vcvt.s32.f32 %v451
      %v456 = vcvt.s32.f32 %v452
      %457 = vmatpush.xpose.msra.mxu0 0.0
      %458 = vmatpush.xpose.msra.mxu0 0.0
      %459 = vmatpush.xpose.msra.mxu0 0.0
      %460 = vmatpush.xpose.msra.mxu0 0.0
      %461 = vmatpush.xpose.msra.mxu0 0.0
      %462 = vmatpush.xpose.msra.mxu0 0.0
      %463 = vmatpush.xpose.msra.mxu0 0.0
      %464 = vmatpush.xpose.msra.mxu0 0.0
      %465 = vmatpush.xpose.msra.mxu0 0.0
      %466 = vmatpush.xpose.msra.mxu0 0.0
      %467 = vmatpush.xpose.msra.mxu0 0.0
      %468 = vmatpush.xpose.msra.mxu0 0.0
      %469 = vmatpush.xpose.msra.mxu0 0.0
      %470 = vmatpush.xpose.msra.mxu0 0.0
      %471 = vmatpush.xpose.msra.mxu0 0.0
      %472 = vmatpush.xpose.msra.mxu0 %v417
      %473 = vmatmul.f32.gmra.mxu0 %v208
      %v474 = vpop.f32.mrf.mxu0
      %v475 = vadd.f32 0.0, %v474
      %476 = vdwg.mxu0
      %477 = vmatpush.xpose.msra.mxu0 0.0
      %478 = vmatpush.xpose.msra.mxu0 0.0
      %479 = vmatpush.xpose.msra.mxu0 0.0
      %480 = vmatpush.xpose.msra.mxu0 0.0
      %481 = vmatpush.xpose.msra.mxu0 0.0
      %482 = vmatpush.xpose.msra.mxu0 0.0
      %483 = vmatpush.xpose.msra.mxu0 0.0
      %484 = vmatpush.xpose.msra.mxu0 0.0
      %485 = vmatpush.xpose.msra.mxu0 0.0
      %486 = vmatpush.xpose.msra.mxu0 0.0
      %487 = vmatpush.xpose.msra.mxu0 0.0
      %488 = vmatpush.xpose.msra.mxu0 0.0
      %489 = vmatpush.xpose.msra.mxu0 0.0
      %490 = vmatpush.xpose.msra.mxu0 0.0
      %491 = vmatpush.xpose.msra.mxu0 0.0
      %492 = vmatpush.xpose.msra.mxu0 %v418
      %493 = vmatmul.f32.gmra.mxu0 %v209
      %v494 = vpop.f32.mrf.mxu0
      %v495 = vadd.f32 %v475, %v494
      %496 = vdwg.mxu0
      %497 = vmatpush.xpose.msra.mxu0 0.0
      %498 = vmatpush.xpose.msra.mxu0 0.0
      %499 = vmatpush.xpose.msra.mxu0 0.0
      %500 = vmatpush.xpose.msra.mxu0 0.0
      %501 = vmatpush.xpose.msra.mxu0 0.0
      %502 = vmatpush.xpose.msra.mxu0 0.0
      %503 = vmatpush.xpose.msra.mxu0 0.0
      %504 = vmatpush.xpose.msra.mxu0 0.0
      %505 = vmatpush.xpose.msra.mxu0 0.0
      %506 = vmatpush.xpose.msra.mxu0 0.0
      %507 = vmatpush.xpose.msra.mxu0 0.0
      %508 = vmatpush.xpose.msra.mxu0 0.0
      %509 = vmatpush.xpose.msra.mxu0 0.0
      %510 = vmatpush.xpose.msra.mxu0 0.0
      %511 = vmatpush.xpose.msra.mxu0 0.0
      %512 = vmatpush.xpose.msra.mxu0 %v419
      %513 = vmatmul.f32.gmra.mxu0 %v210
      %v514 = vpop.f32.mrf.mxu0
      %v515 = vadd.f32 %v495, %v514
      %516 = vdwg.mxu0
      %517 = vmatpush.xpose.msra.mxu0 0.0
      %518 = vmatpush.xpose.msra.mxu0 0.0
      %519 = vmatpush.xpose.msra.mxu0 0.0
      %520 = vmatpush.xpose.msra.mxu0 0.0
      %521 = vmatpush.xpose.msra.mxu0 0.0
      %522 = vmatpush.xpose.msra.mxu0 0.0
      %523 = vmatpush.xpose.msra.mxu0 0.0
      %524 = vmatpush.xpose.msra.mxu0 0.0
      %525 = vmatpush.xpose.msra.mxu0 0.0
      %526 = vmatpush.xpose.msra.mxu0 0.0
      %527 = vmatpush.xpose.msra.mxu0 0.0
      %528 = vmatpush.xpose.msra.mxu0 0.0
      %529 = vmatpush.xpose.msra.mxu0 0.0
      %530 = vmatpush.xpose.msra.mxu0 0.0
      %531 = vmatpush.xpose.msra.mxu0 0.0
      %532 = vmatpush.xpose.msra.mxu0 %v420
      %533 = vmatmul.f32.gmra.mxu0 %v211
      %v534 = vpop.f32.mrf.mxu0
      %v535 = vadd.f32 %v515, %v534
      %536 = vdwg.mxu0
      %537 = vmatpush.xpose.msra.mxu0 0.0
      %538 = vmatpush.xpose.msra.mxu0 0.0
      %539 = vmatpush.xpose.msra.mxu0 0.0
      %540 = vmatpush.xpose.msra.mxu0 0.0
      %541 = vmatpush.xpose.msra.mxu0 0.0
      %542 = vmatpush.xpose.msra.mxu0 0.0
      %543 = vmatpush.xpose.msra.mxu0 0.0
      %544 = vmatpush.xpose.msra.mxu0 0.0
      %545 = vmatpush.xpose.msra.mxu0 0.0
      %546 = vmatpush.xpose.msra.mxu0 0.0
      %547 = vmatpush.xpose.msra.mxu0 0.0
      %548 = vmatpush.xpose.msra.mxu0 0.0
      %549 = vmatpush.xpose.msra.mxu0 0.0
      %550 = vmatpush.xpose.msra.mxu0 0.0
      %551 = vmatpush.xpose.msra.mxu0 0.0
      %552 = vmatpush.xpose.msra.mxu0 %v421
      %553 = vmatmul.f32.gmra.mxu0 %v212
      %v554 = vpop.f32.mrf.mxu0
      %v555 = vadd.f32 %v535, %v554
      %556 = vdwg.mxu0
      %557 = vmatpush.xpose.msra.mxu0 0.0
      %558 = vmatpush.xpose.msra.mxu0 0.0
      %559 = vmatpush.xpose.msra.mxu0 0.0
      %560 = vmatpush.xpose.msra.mxu0 0.0
      %561 = vmatpush.xpose.msra.mxu0 0.0
      %562 = vmatpush.xpose.msra.mxu0 0.0
      %563 = vmatpush.xpose.msra.mxu0 0.0
      %564 = vmatpush.xpose.msra.mxu0 0.0
      %565 = vmatpush.xpose.msra.mxu0 0.0
      %566 = vmatpush.xpose.msra.mxu0 0.0
      %567 = vmatpush.xpose.msra.mxu0 0.0
      %568 = vmatpush.xpose.msra.mxu0 0.0
      %569 = vmatpush.xpose.msra.mxu0 0.0
      %570 = vmatpush.xpose.msra.mxu0 0.0
      %571 = vmatpush.xpose.msra.mxu0 0.0
      %572 = vmatpush.xpose.msra.mxu0 %v422
      %573 = vmatmul.f32.gmra.mxu0 %v213
      %v574 = vpop.f32.mrf.mxu0
      %v575 = vadd.f32 %v555, %v574
      %576 = vdwg.mxu0
      %577 = vmatpush.xpose.msra.mxu0 0.0
      %578 = vmatpush.xpose.msra.mxu0 0.0
      %579 = vmatpush.xpose.msra.mxu0 0.0
      %580 = vmatpush.xpose.msra.mxu0 0.0
      %581 = vmatpush.xpose.msra.mxu0 0.0
      %582 = vmatpush.xpose.msra.mxu0 0.0
      %583 = vmatpush.xpose.msra.mxu0 0.0
      %584 = vmatpush.xpose.msra.mxu0 0.0
      %585 = vmatpush.xpose.msra.mxu0 0.0
      %586 = vmatpush.xpose.msra.mxu0 0.0
      %587 = vmatpush.xpose.msra.mxu0 0.0
      %588 = vmatpush.xpose.msra.mxu0 0.0
      %589 = vmatpush.xpose.msra.mxu0 0.0
      %590 = vmatpush.xpose.msra.mxu0 0.0
      %591 = vmatpush.xpose.msra.mxu0 0.0
      %592 = vmatpush.xpose.msra.mxu0 %v423
      %593 = vmatmul.f32.gmra.mxu0 %v214
      %v594 = vpop.f32.mrf.mxu0
      %v595 = vadd.f32 %v575, %v594
      %596 = vdwg.mxu0
      %597 = vmatpush.xpose.msra.mxu0 0.0
      %598 = vmatpush.xpose.msra.mxu0 0.0
      %599 = vmatpush.xpose.msra.mxu0 0.0
      %600 = vmatpush.xpose.msra.mxu0 0.0
      %601 = vmatpush.xpose.msra.mxu0 0.0
      %602 = vmatpush.xpose.msra.mxu0 0.0
      %603 = vmatpush.xpose.msra.mxu0 0.0
      %604 = vmatpush.xpose.msra.mxu0 0.0
      %605 = vmatpush.xpose.msra.mxu0 0.0
      %606 = vmatpush.xpose.msra.mxu0 0.0
      %607 = vmatpush.xpose.msra.mxu0 0.0
      %608 = vmatpush.xpose.msra.mxu0 0.0
      %609 = vmatpush.xpose.msra.mxu0 0.0
      %610 = vmatpush.xpose.msra.mxu0 0.0
      %611 = vmatpush.xpose.msra.mxu0 0.0
      %612 = vmatpush.xpose.msra.mxu0 %v424
      %613 = vmatmul.f32.gmra.mxu0 %v215
      %v614 = vpop.f32.mrf.mxu0
      %v615 = vadd.f32 %v595, %v614
      %616 = vdwg.mxu0
      %617 = vmatpush.xpose.msra.mxu0 0.0
      %618 = vmatpush.xpose.msra.mxu0 0.0
      %619 = vmatpush.xpose.msra.mxu0 0.0
      %620 = vmatpush.xpose.msra.mxu0 0.0
      %621 = vmatpush.xpose.msra.mxu0 0.0
      %622 = vmatpush.xpose.msra.mxu0 0.0
      %623 = vmatpush.xpose.msra.mxu0 0.0
      %624 = vmatpush.xpose.msra.mxu0 0.0
      %625 = vmatpush.xpose.msra.mxu0 0.0
      %626 = vmatpush.xpose.msra.mxu0 0.0
      %627 = vmatpush.xpose.msra.mxu0 0.0
      %628 = vmatpush.xpose.msra.mxu0 0.0
      %629 = vmatpush.xpose.msra.mxu0 0.0
      %630 = vmatpush.xpose.msra.mxu0 0.0
      %631 = vmatpush.xpose.msra.mxu0 0.0
      %632 = vmatpush.xpose.msra.mxu0 %v425
      %633 = vmatmul.f32.gmra.mxu0 %v216
      %v634 = vpop.f32.mrf.mxu0
      %v635 = vadd.f32 %v615, %v634
      %636 = vdwg.mxu0
      %637 = vmatpush.xpose.msra.mxu0 0.0
      %638 = vmatpush.xpose.msra.mxu0 0.0
      %639 = vmatpush.xpose.msra.mxu0 0.0
      %640 = vmatpush.xpose.msra.mxu0 0.0
      %641 = vmatpush.xpose.msra.mxu0 0.0
      %642 = vmatpush.xpose.msra.mxu0 0.0
      %643 = vmatpush.xpose.msra.mxu0 0.0
      %644 = vmatpush.xpose.msra.mxu0 0.0
      %645 = vmatpush.xpose.msra.mxu0 0.0
      %646 = vmatpush.xpose.msra.mxu0 0.0
      %647 = vmatpush.xpose.msra.mxu0 0.0
      %648 = vmatpush.xpose.msra.mxu0 0.0
      %649 = vmatpush.xpose.msra.mxu0 0.0
      %650 = vmatpush.xpose.msra.mxu0 0.0
      %651 = vmatpush.xpose.msra.mxu0 0.0
      %652 = vmatpush.xpose.msra.mxu0 %v426
      %653 = vmatmul.f32.gmra.mxu0 %v217
      %v654 = vpop.f32.mrf.mxu0
      %v655 = vadd.f32 %v635, %v654
      %656 = vdwg.mxu0
      %657 = vmatpush.xpose.msra.mxu0 0.0
      %658 = vmatpush.xpose.msra.mxu0 0.0
      %659 = vmatpush.xpose.msra.mxu0 0.0
      %660 = vmatpush.xpose.msra.mxu0 0.0
      %661 = vmatpush.xpose.msra.mxu0 0.0
      %662 = vmatpush.xpose.msra.mxu0 0.0
      %663 = vmatpush.xpose.msra.mxu0 0.0
      %664 = vmatpush.xpose.msra.mxu0 0.0
      %665 = vmatpush.xpose.msra.mxu0 0.0
      %666 = vmatpush.xpose.msra.mxu0 0.0
      %667 = vmatpush.xpose.msra.mxu0 0.0
      %668 = vmatpush.xpose.msra.mxu0 0.0
      %669 = vmatpush.xpose.msra.mxu0 0.0
      %670 = vmatpush.xpose.msra.mxu0 0.0
      %671 = vmatpush.xpose.msra.mxu0 0.0
      %672 = vmatpush.xpose.msra.mxu0 %v427
      %673 = vmatmul.f32.gmra.mxu0 %v218
      %v674 = vpop.f32.mrf.mxu0
      %v675 = vadd.f32 %v655, %v674
      %676 = vdwg.mxu0
      %677 = vmatpush.xpose.msra.mxu0 0.0
      %678 = vmatpush.xpose.msra.mxu0 0.0
      %679 = vmatpush.xpose.msra.mxu0 0.0
      %680 = vmatpush.xpose.msra.mxu0 0.0
      %681 = vmatpush.xpose.msra.mxu0 0.0
      %682 = vmatpush.xpose.msra.mxu0 0.0
      %683 = vmatpush.xpose.msra.mxu0 0.0
      %684 = vmatpush.xpose.msra.mxu0 0.0
      %685 = vmatpush.xpose.msra.mxu0 0.0
      %686 = vmatpush.xpose.msra.mxu0 0.0
      %687 = vmatpush.xpose.msra.mxu0 0.0
      %688 = vmatpush.xpose.msra.mxu0 0.0
      %689 = vmatpush.xpose.msra.mxu0 0.0
      %690 = vmatpush.xpose.msra.mxu0 0.0
      %691 = vmatpush.xpose.msra.mxu0 0.0
      %692 = vmatpush.xpose.msra.mxu0 %v428
      %693 = vmatmul.f32.gmra.mxu0 %v219
      %v694 = vpop.f32.mrf.mxu0
      %v695 = vadd.f32 %v675, %v694
      %696 = vdwg.mxu0
      %697 = vmatpush.xpose.msra.mxu0 0.0
      %698 = vmatpush.xpose.msra.mxu0 0.0
      %699 = vmatpush.xpose.msra.mxu0 0.0
      %700 = vmatpush.xpose.msra.mxu0 0.0
      %701 = vmatpush.xpose.msra.mxu0 0.0
      %702 = vmatpush.xpose.msra.mxu0 0.0
      %703 = vmatpush.xpose.msra.mxu0 0.0
      %704 = vmatpush.xpose.msra.mxu0 0.0
      %705 = vmatpush.xpose.msra.mxu0 0.0
      %706 = vmatpush.xpose.msra.mxu0 0.0
      %707 = vmatpush.xpose.msra.mxu0 0.0
      %708 = vmatpush.xpose.msra.mxu0 0.0
      %709 = vmatpush.xpose.msra.mxu0 0.0
      %710 = vmatpush.xpose.msra.mxu0 0.0
      %711 = vmatpush.xpose.msra.mxu0 0.0
      %712 = vmatpush.xpose.msra.mxu0 %v429
      %713 = vmatmul.f32.gmra.mxu0 %v220
      %v714 = vpop.f32.mrf.mxu0
      %v715 = vadd.f32 %v695, %v714
      %716 = vdwg.mxu0
      %717 = vmatpush.xpose.msra.mxu0 0.0
      %718 = vmatpush.xpose.msra.mxu0 0.0
      %719 = vmatpush.xpose.msra.mxu0 0.0
      %720 = vmatpush.xpose.msra.mxu0 0.0
      %721 = vmatpush.xpose.msra.mxu0 0.0
      %722 = vmatpush.xpose.msra.mxu0 0.0
      %723 = vmatpush.xpose.msra.mxu0 0.0
      %724 = vmatpush.xpose.msra.mxu0 0.0
      %725 = vmatpush.xpose.msra.mxu0 0.0
      %726 = vmatpush.xpose.msra.mxu0 0.0
      %727 = vmatpush.xpose.msra.mxu0 0.0
      %728 = vmatpush.xpose.msra.mxu0 0.0
      %729 = vmatpush.xpose.msra.mxu0 0.0
      %730 = vmatpush.xpose.msra.mxu0 0.0
      %731 = vmatpush.xpose.msra.mxu0 0.0
      %732 = vmatpush.xpose.msra.mxu0 %v430
      %733 = vmatmul.f32.gmra.mxu0 %v221
      %v734 = vpop.f32.mrf.mxu0
      %v735 = vadd.f32 %v715, %v734
      %736 = vdwg.mxu0
      %737 = vmatpush.xpose.msra.mxu0 0.0
      %738 = vmatpush.xpose.msra.mxu0 0.0
      %739 = vmatpush.xpose.msra.mxu0 0.0
      %740 = vmatpush.xpose.msra.mxu0 0.0
      %741 = vmatpush.xpose.msra.mxu0 0.0
      %742 = vmatpush.xpose.msra.mxu0 0.0
      %743 = vmatpush.xpose.msra.mxu0 0.0
      %744 = vmatpush.xpose.msra.mxu0 0.0
      %745 = vmatpush.xpose.msra.mxu0 0.0
      %746 = vmatpush.xpose.msra.mxu0 0.0
      %747 = vmatpush.xpose.msra.mxu0 0.0
      %748 = vmatpush.xpose.msra.mxu0 0.0
      %749 = vmatpush.xpose.msra.mxu0 0.0
      %750 = vmatpush.xpose.msra.mxu0 0.0
      %751 = vmatpush.xpose.msra.mxu0 0.0
      %752 = vmatpush.xpose.msra.mxu0 %v431
      %753 = vmatmul.f32.gmra.mxu0 %v222
      %v754 = vpop.f32.mrf.mxu0
      %v755 = vadd.f32 %v735, %v754
      %756 = vdwg.mxu0
      %757 = vmatpush.xpose.msra.mxu0 0.0
      %758 = vmatpush.xpose.msra.mxu0 0.0
      %759 = vmatpush.xpose.msra.mxu0 0.0
      %760 = vmatpush.xpose.msra.mxu0 0.0
      %761 = vmatpush.xpose.msra.mxu0 0.0
      %762 = vmatpush.xpose.msra.mxu0 0.0
      %763 = vmatpush.xpose.msra.mxu0 0.0
      %764 = vmatpush.xpose.msra.mxu0 0.0
      %765 = vmatpush.xpose.msra.mxu0 0.0
      %766 = vmatpush.xpose.msra.mxu0 0.0
      %767 = vmatpush.xpose.msra.mxu0 0.0
      %768 = vmatpush.xpose.msra.mxu0 0.0
      %769 = vmatpush.xpose.msra.mxu0 0.0
      %770 = vmatpush.xpose.msra.mxu0 0.0
      %771 = vmatpush.xpose.msra.mxu0 0.0
      %772 = vmatpush.xpose.msra.mxu0 %v432
      %773 = vmatmul.f32.gmra.mxu0 %v223
      %v774 = vpop.f32.mrf.mxu0
      %v775 = vadd.f32 %v755, %v774
      %776 = vdwg.mxu0
      %777 = vmatpush.xpose.msra.mxu0 0.0
      %778 = vmatpush.xpose.msra.mxu0 0.0
      %779 = vmatpush.xpose.msra.mxu0 0.0
      %780 = vmatpush.xpose.msra.mxu0 0.0
      %781 = vmatpush.xpose.msra.mxu0 0.0
      %782 = vmatpush.xpose.msra.mxu0 0.0
      %783 = vmatpush.xpose.msra.mxu0 0.0
      %784 = vmatpush.xpose.msra.mxu0 0.0
      %785 = vmatpush.xpose.msra.mxu0 0.0
      %786 = vmatpush.xpose.msra.mxu0 0.0
      %787 = vmatpush.xpose.msra.mxu0 0.0
      %788 = vmatpush.xpose.msra.mxu0 0.0
      %789 = vmatpush.xpose.msra.mxu0 0.0
      %790 = vmatpush.xpose.msra.mxu0 0.0
      %791 = vmatpush.xpose.msra.mxu0 0.0
      %792 = vmatpush.xpose.msra.mxu0 %v433
      %793 = vmatmul.f32.gmra.mxu0 %v224
      %v794 = vpop.f32.mrf.mxu0
      %v795 = vadd.f32 %v775, %v794
      %796 = vdwg.mxu0
      %797 = vmatpush.xpose.msra.mxu0 0.0
      %798 = vmatpush.xpose.msra.mxu0 0.0
      %799 = vmatpush.xpose.msra.mxu0 0.0
      %800 = vmatpush.xpose.msra.mxu0 0.0
      %801 = vmatpush.xpose.msra.mxu0 0.0
      %802 = vmatpush.xpose.msra.mxu0 0.0
      %803 = vmatpush.xpose.msra.mxu0 0.0
      %804 = vmatpush.xpose.msra.mxu0 0.0
      %805 = vmatpush.xpose.msra.mxu0 0.0
      %806 = vmatpush.xpose.msra.mxu0 0.0
      %807 = vmatpush.xpose.msra.mxu0 0.0
      %808 = vmatpush.xpose.msra.mxu0 0.0
      %809 = vmatpush.xpose.msra.mxu0 0.0
      %810 = vmatpush.xpose.msra.mxu0 0.0
      %811 = vmatpush.xpose.msra.mxu0 0.0
      %812 = vmatpush.xpose.msra.mxu0 %v434
      %813 = vmatmul.f32.gmra.mxu0 %v225
      %v814 = vpop.f32.mrf.mxu0
      %v815 = vadd.f32 %v795, %v814
      %816 = vdwg.mxu0
      %817 = vmatpush.xpose.msra.mxu0 0.0
      %818 = vmatpush.xpose.msra.mxu0 0.0
      %819 = vmatpush.xpose.msra.mxu0 0.0
      %820 = vmatpush.xpose.msra.mxu0 0.0
      %821 = vmatpush.xpose.msra.mxu0 0.0
      %822 = vmatpush.xpose.msra.mxu0 0.0
      %823 = vmatpush.xpose.msra.mxu0 0.0
      %824 = vmatpush.xpose.msra.mxu0 0.0
      %825 = vmatpush.xpose.msra.mxu0 0.0
      %826 = vmatpush.xpose.msra.mxu0 0.0
      %827 = vmatpush.xpose.msra.mxu0 0.0
      %828 = vmatpush.xpose.msra.mxu0 0.0
      %829 = vmatpush.xpose.msra.mxu0 0.0
      %830 = vmatpush.xpose.msra.mxu0 0.0
      %831 = vmatpush.xpose.msra.mxu0 0.0
      %832 = vmatpush.xpose.msra.mxu0 %v435
      %833 = vmatmul.f32.gmra.mxu0 %v226
      %v834 = vpop.f32.mrf.mxu0
      %v835 = vadd.f32 %v815, %v834
      %836 = vdwg.mxu0
      %837 = vmatpush.xpose.msra.mxu0 0.0
      %838 = vmatpush.xpose.msra.mxu0 0.0
      %839 = vmatpush.xpose.msra.mxu0 0.0
      %840 = vmatpush.xpose.msra.mxu0 0.0
      %841 = vmatpush.xpose.msra.mxu0 0.0
      %842 = vmatpush.xpose.msra.mxu0 0.0
      %843 = vmatpush.xpose.msra.mxu0 0.0
      %844 = vmatpush.xpose.msra.mxu0 0.0
      %845 = vmatpush.xpose.msra.mxu0 0.0
      %846 = vmatpush.xpose.msra.mxu0 0.0
      %847 = vmatpush.xpose.msra.mxu0 0.0
      %848 = vmatpush.xpose.msra.mxu0 0.0
      %849 = vmatpush.xpose.msra.mxu0 0.0
      %850 = vmatpush.xpose.msra.mxu0 0.0
      %851 = vmatpush.xpose.msra.mxu0 0.0
      %852 = vmatpush.xpose.msra.mxu0 %v436
      %853 = vmatmul.f32.gmra.mxu0 %v227
      %v854 = vpop.f32.mrf.mxu0
      %v855 = vadd.f32 %v835, %v854
      %856 = vdwg.mxu0
      %857 = vmatpush.xpose.msra.mxu0 0.0
      %858 = vmatpush.xpose.msra.mxu0 0.0
      %859 = vmatpush.xpose.msra.mxu0 0.0
      %860 = vmatpush.xpose.msra.mxu0 0.0
      %861 = vmatpush.xpose.msra.mxu0 0.0
      %862 = vmatpush.xpose.msra.mxu0 0.0
      %863 = vmatpush.xpose.msra.mxu0 0.0
      %864 = vmatpush.xpose.msra.mxu0 0.0
      %865 = vmatpush.xpose.msra.mxu0 0.0
      %866 = vmatpush.xpose.msra.mxu0 0.0
      %867 = vmatpush.xpose.msra.mxu0 0.0
      %868 = vmatpush.xpose.msra.mxu0 0.0
      %869 = vmatpush.xpose.msra.mxu0 0.0
      %870 = vmatpush.xpose.msra.mxu0 0.0
      %871 = vmatpush.xpose.msra.mxu0 0.0
      %872 = vmatpush.xpose.msra.mxu0 %v437
      %873 = vmatmul.f32.gmra.mxu0 %v228
      %v874 = vpop.f32.mrf.mxu0
      %v875 = vadd.f32 %v855, %v874
      %876 = vdwg.mxu0
      %877 = vmatpush.xpose.msra.mxu0 0.0
      %878 = vmatpush.xpose.msra.mxu0 0.0
      %879 = vmatpush.xpose.msra.mxu0 0.0
      %880 = vmatpush.xpose.msra.mxu0 0.0
      %881 = vmatpush.xpose.msra.mxu0 0.0
      %882 = vmatpush.xpose.msra.mxu0 0.0
      %883 = vmatpush.xpose.msra.mxu0 0.0
      %884 = vmatpush.xpose.msra.mxu0 0.0
      %885 = vmatpush.xpose.msra.mxu0 0.0
      %886 = vmatpush.xpose.msra.mxu0 0.0
      %887 = vmatpush.xpose.msra.mxu0 0.0
      %888 = vmatpush.xpose.msra.mxu0 0.0
      %889 = vmatpush.xpose.msra.mxu0 0.0
      %890 = vmatpush.xpose.msra.mxu0 0.0
      %891 = vmatpush.xpose.msra.mxu0 0.0
      %892 = vmatpush.xpose.msra.mxu0 %v438
      %893 = vmatmul.f32.gmra.mxu0 %v229
      %v894 = vpop.f32.mrf.mxu0
      %v895 = vadd.f32 %v875, %v894
      %896 = vdwg.mxu0
      %897 = vmatpush.xpose.msra.mxu0 0.0
      %898 = vmatpush.xpose.msra.mxu0 0.0
      %899 = vmatpush.xpose.msra.mxu0 0.0
      %900 = vmatpush.xpose.msra.mxu0 0.0
      %901 = vmatpush.xpose.msra.mxu0 0.0
      %902 = vmatpush.xpose.msra.mxu0 0.0
      %903 = vmatpush.xpose.msra.mxu0 0.0
      %904 = vmatpush.xpose.msra.mxu0 0.0
      %905 = vmatpush.xpose.msra.mxu0 0.0
      %906 = vmatpush.xpose.msra.mxu0 0.0
      %907 = vmatpush.xpose.msra.mxu0 0.0
      %908 = vmatpush.xpose.msra.mxu0 0.0
      %909 = vmatpush.xpose.msra.mxu0 0.0
      %910 = vmatpush.xpose.msra.mxu0 0.0
      %911 = vmatpush.xpose.msra.mxu0 0.0
      %912 = vmatpush.xpose.msra.mxu0 %v439
      %913 = vmatmul.f32.gmra.mxu0 %v230
      %v914 = vpop.f32.mrf.mxu0
      %v915 = vadd.f32 %v895, %v914
      %916 = vdwg.mxu0
      %917 = vmatpush.xpose.msra.mxu0 0.0
      %918 = vmatpush.xpose.msra.mxu0 0.0
      %919 = vmatpush.xpose.msra.mxu0 0.0
      %920 = vmatpush.xpose.msra.mxu0 0.0
      %921 = vmatpush.xpose.msra.mxu0 0.0
      %922 = vmatpush.xpose.msra.mxu0 0.0
      %923 = vmatpush.xpose.msra.mxu0 0.0
      %924 = vmatpush.xpose.msra.mxu0 0.0
      %925 = vmatpush.xpose.msra.mxu0 0.0
      %926 = vmatpush.xpose.msra.mxu0 0.0
      %927 = vmatpush.xpose.msra.mxu0 0.0
      %928 = vmatpush.xpose.msra.mxu0 0.0
      %929 = vmatpush.xpose.msra.mxu0 0.0
      %930 = vmatpush.xpose.msra.mxu0 0.0
      %931 = vmatpush.xpose.msra.mxu0 0.0
      %932 = vmatpush.xpose.msra.mxu0 %v440
      %933 = vmatmul.f32.gmra.mxu0 %v231
      %v934 = vpop.f32.mrf.mxu0
      %v935 = vadd.f32 %v915, %v934
      %936 = vdwg.mxu0
      %937 = vmatpush.xpose.msra.mxu0 0.0
      %938 = vmatpush.xpose.msra.mxu0 0.0
      %939 = vmatpush.xpose.msra.mxu0 0.0
      %940 = vmatpush.xpose.msra.mxu0 0.0
      %941 = vmatpush.xpose.msra.mxu0 0.0
      %942 = vmatpush.xpose.msra.mxu0 0.0
      %943 = vmatpush.xpose.msra.mxu0 0.0
      %944 = vmatpush.xpose.msra.mxu0 0.0
      %945 = vmatpush.xpose.msra.mxu0 0.0
      %946 = vmatpush.xpose.msra.mxu0 0.0
      %947 = vmatpush.xpose.msra.mxu0 0.0
      %948 = vmatpush.xpose.msra.mxu0 0.0
      %949 = vmatpush.xpose.msra.mxu0 0.0
      %950 = vmatpush.xpose.msra.mxu0 0.0
      %951 = vmatpush.xpose.msra.mxu0 0.0
      %952 = vmatpush.xpose.msra.mxu0 %v441
      %953 = vmatmul.f32.gmra.mxu0 %v232
      %v954 = vpop.f32.mrf.mxu0
      %v955 = vadd.f32 %v935, %v954
      %956 = vdwg.mxu0
      %957 = vmatpush.xpose.msra.mxu0 0.0
      %958 = vmatpush.xpose.msra.mxu0 0.0
      %959 = vmatpush.xpose.msra.mxu0 0.0
      %960 = vmatpush.xpose.msra.mxu0 0.0
      %961 = vmatpush.xpose.msra.mxu0 0.0
      %962 = vmatpush.xpose.msra.mxu0 0.0
      %963 = vmatpush.xpose.msra.mxu0 0.0
      %964 = vmatpush.xpose.msra.mxu0 0.0
      %965 = vmatpush.xpose.msra.mxu0 0.0
      %966 = vmatpush.xpose.msra.mxu0 0.0
      %967 = vmatpush.xpose.msra.mxu0 0.0
      %968 = vmatpush.xpose.msra.mxu0 0.0
      %969 = vmatpush.xpose.msra.mxu0 0.0
      %970 = vmatpush.xpose.msra.mxu0 0.0
      %971 = vmatpush.xpose.msra.mxu0 0.0
      %972 = vmatpush.xpose.msra.mxu0 %v442
      %973 = vmatmul.f32.gmra.mxu0 %v233
      %v974 = vpop.f32.mrf.mxu0
      %v975 = vadd.f32 %v955, %v974
      %976 = vdwg.mxu0
      %977 = vmatpush.xpose.msra.mxu0 0.0
      %978 = vmatpush.xpose.msra.mxu0 0.0
      %979 = vmatpush.xpose.msra.mxu0 0.0
      %980 = vmatpush.xpose.msra.mxu0 0.0
      %981 = vmatpush.xpose.msra.mxu0 0.0
      %982 = vmatpush.xpose.msra.mxu0 0.0
      %983 = vmatpush.xpose.msra.mxu0 0.0
      %984 = vmatpush.xpose.msra.mxu0 0.0
      %985 = vmatpush.xpose.msra.mxu0 0.0
      %986 = vmatpush.xpose.msra.mxu0 0.0
      %987 = vmatpush.xpose.msra.mxu0 0.0
      %988 = vmatpush.xpose.msra.mxu0 0.0
      %989 = vmatpush.xpose.msra.mxu0 0.0
      %990 = vmatpush.xpose.msra.mxu0 0.0
      %991 = vmatpush.xpose.msra.mxu0 0.0
      %992 = vmatpush.xpose.msra.mxu0 %v443
      %993 = vmatmul.f32.gmra.mxu0 %v234
      %v994 = vpop.f32.mrf.mxu0
      %v995 = vadd.f32 %v975, %v994
      %996 = vdwg.mxu0
      %997 = vmatpush.xpose.msra.mxu0 0.0
      %998 = vmatpush.xpose.msra.mxu0 0.0
      %999 = vmatpush.xpose.msra.mxu0 0.0
      %1000 = vmatpush.xpose.msra.mxu0 0.0
      %1001 = vmatpush.xpose.msra.mxu0 0.0
      %1002 = vmatpush.xpose.msra.mxu0 0.0
      %1003 = vmatpush.xpose.msra.mxu0 0.0
      %1004 = vmatpush.xpose.msra.mxu0 0.0
      %1005 = vmatpush.xpose.msra.mxu0 0.0
      %1006 = vmatpush.xpose.msra.mxu0 0.0
      %1007 = vmatpush.xpose.msra.mxu0 0.0
      %1008 = vmatpush.xpose.msra.mxu0 0.0
      %1009 = vmatpush.xpose.msra.mxu0 0.0
      %1010 = vmatpush.xpose.msra.mxu0 0.0
      %1011 = vmatpush.xpose.msra.mxu0 0.0
      %1012 = vmatpush.xpose.msra.mxu0 %v444
      %1013 = vmatmul.f32.gmra.mxu0 %v235
      %v1014 = vpop.f32.mrf.mxu0
      %v1015 = vadd.f32 %v995, %v1014
      %1016 = vdwg.mxu0
      %1017 = vmatpush.xpose.msra.mxu0 0.0
      %1018 = vmatpush.xpose.msra.mxu0 0.0
      %1019 = vmatpush.xpose.msra.mxu0 0.0
      %1020 = vmatpush.xpose.msra.mxu0 0.0
      %1021 = vmatpush.xpose.msra.mxu0 0.0
      %1022 = vmatpush.xpose.msra.mxu0 0.0
      %1023 = vmatpush.xpose.msra.mxu0 0.0
      %1024 = vmatpush.xpose.msra.mxu0 0.0
      %1025 = vmatpush.xpose.msra.mxu0 0.0
      %1026 = vmatpush.xpose.msra.mxu0 0.0
      %1027 = vmatpush.xpose.msra.mxu0 0.0
      %1028 = vmatpush.xpose.msra.mxu0 0.0
      %1029 = vmatpush.xpose.msra.mxu0 0.0
      %1030 = vmatpush.xpose.msra.mxu0 0.0
      %1031 = vmatpush.xpose.msra.mxu0 0.0
      %1032 = vmatpush.xpose.msra.mxu0 %v445
      %1033 = vmatmul.f32.gmra.mxu0 %v236
      %v1034 = vpop.f32.mrf.mxu0
      %v1035 = vadd.f32 %v1015, %v1034
      %1036 = vdwg.mxu0
      %1037 = vmatpush.xpose.msra.mxu0 0.0
      %1038 = vmatpush.xpose.msra.mxu0 0.0
      %1039 = vmatpush.xpose.msra.mxu0 0.0
      %1040 = vmatpush.xpose.msra.mxu0 0.0
      %1041 = vmatpush.xpose.msra.mxu0 0.0
      %1042 = vmatpush.xpose.msra.mxu0 0.0
      %1043 = vmatpush.xpose.msra.mxu0 0.0
      %1044 = vmatpush.xpose.msra.mxu0 0.0
      %1045 = vmatpush.xpose.msra.mxu0 0.0
      %1046 = vmatpush.xpose.msra.mxu0 0.0
      %1047 = vmatpush.xpose.msra.mxu0 0.0
      %1048 = vmatpush.xpose.msra.mxu0 0.0
      %1049 = vmatpush.xpose.msra.mxu0 0.0
      %1050 = vmatpush.xpose.msra.mxu0 0.0
      %1051 = vmatpush.xpose.msra.mxu0 0.0
      %1052 = vmatpush.xpose.msra.mxu0 %v446
      %1053 = vmatmul.f32.gmra.mxu0 %v237
      %v1054 = vpop.f32.mrf.mxu0
      %v1055 = vadd.f32 %v1035, %v1054
      %1056 = vdwg.mxu0
      %1057 = vmatpush.xpose.msra.mxu0 0.0
      %1058 = vmatpush.xpose.msra.mxu0 0.0
      %1059 = vmatpush.xpose.msra.mxu0 0.0
      %1060 = vmatpush.xpose.msra.mxu0 0.0
      %1061 = vmatpush.xpose.msra.mxu0 0.0
      %1062 = vmatpush.xpose.msra.mxu0 0.0
      %1063 = vmatpush.xpose.msra.mxu0 0.0
      %1064 = vmatpush.xpose.msra.mxu0 0.0
      %1065 = vmatpush.xpose.msra.mxu0 0.0
      %1066 = vmatpush.xpose.msra.mxu0 0.0
      %1067 = vmatpush.xpose.msra.mxu0 0.0
      %1068 = vmatpush.xpose.msra.mxu0 0.0
      %1069 = vmatpush.xpose.msra.mxu0 0.0
      %1070 = vmatpush.xpose.msra.mxu0 0.0
      %1071 = vmatpush.xpose.msra.mxu0 0.0
      %1072 = vmatpush.xpose.msra.mxu0 %v447
      %1073 = vmatmul.f32.gmra.mxu0 %v238
      %v1074 = vpop.f32.mrf.mxu0
      %v1075 = vadd.f32 %v1055, %v1074
      %1076 = vdwg.mxu0
      %1077 = vmatpush.xpose.msra.mxu0 0.0
      %1078 = vmatpush.xpose.msra.mxu0 0.0
      %1079 = vmatpush.xpose.msra.mxu0 0.0
      %1080 = vmatpush.xpose.msra.mxu0 0.0
      %1081 = vmatpush.xpose.msra.mxu0 0.0
      %1082 = vmatpush.xpose.msra.mxu0 0.0
      %1083 = vmatpush.xpose.msra.mxu0 0.0
      %1084 = vmatpush.xpose.msra.mxu0 0.0
      %1085 = vmatpush.xpose.msra.mxu0 0.0
      %1086 = vmatpush.xpose.msra.mxu0 0.0
      %1087 = vmatpush.xpose.msra.mxu0 0.0
      %1088 = vmatpush.xpose.msra.mxu0 0.0
      %1089 = vmatpush.xpose.msra.mxu0 0.0
      %1090 = vmatpush.xpose.msra.mxu0 0.0
      %1091 = vmatpush.xpose.msra.mxu0 0.0
      %1092 = vmatpush.xpose.msra.mxu0 %v448
      %1093 = vmatmul.f32.gmra.mxu0 %v239
      %v1094 = vpop.f32.mrf.mxu0
      %v1095 = vadd.f32 %v1075, %v1094
      %1096 = vdwg.mxu0
      %1097 = vmatpush.xpose.msra.mxu0 0.0
      %1098 = vmatpush.xpose.msra.mxu0 0.0
      %1099 = vmatpush.xpose.msra.mxu0 0.0
      %1100 = vmatpush.xpose.msra.mxu0 0.0
      %1101 = vmatpush.xpose.msra.mxu0 0.0
      %1102 = vmatpush.xpose.msra.mxu0 0.0
      %1103 = vmatpush.xpose.msra.mxu0 0.0
      %1104 = vmatpush.xpose.msra.mxu0 0.0
      %1105 = vmatpush.xpose.msra.mxu0 0.0
      %1106 = vmatpush.xpose.msra.mxu0 0.0
      %1107 = vmatpush.xpose.msra.mxu0 0.0
      %1108 = vmatpush.xpose.msra.mxu0 0.0
      %1109 = vmatpush.xpose.msra.mxu0 0.0
      %1110 = vmatpush.xpose.msra.mxu0 0.0
      %1111 = vmatpush.xpose.msra.mxu0 0.0
      %1112 = vmatpush.xpose.msra.mxu0 %v417
      %1113 = vmatmul.f32.gmra.mxu0 %v240
      %v1114 = vpop.f32.mrf.mxu0
      %v1115 = vadd.f32 0.0, %v1114
      %1116 = vdwg.mxu0
      %1117 = vmatpush.xpose.msra.mxu0 0.0
      %1118 = vmatpush.xpose.msra.mxu0 0.0
      %1119 = vmatpush.xpose.msra.mxu0 0.0
      %1120 = vmatpush.xpose.msra.mxu0 0.0
      %1121 = vmatpush.xpose.msra.mxu0 0.0
      %1122 = vmatpush.xpose.msra.mxu0 0.0
      %1123 = vmatpush.xpose.msra.mxu0 0.0
      %1124 = vmatpush.xpose.msra.mxu0 0.0
      %1125 = vmatpush.xpose.msra.mxu0 0.0
      %1126 = vmatpush.xpose.msra.mxu0 0.0
      %1127 = vmatpush.xpose.msra.mxu0 0.0
      %1128 = vmatpush.xpose.msra.mxu0 0.0
      %1129 = vmatpush.xpose.msra.mxu0 0.0
      %1130 = vmatpush.xpose.msra.mxu0 0.0
      %1131 = vmatpush.xpose.msra.mxu0 0.0
      %1132 = vmatpush.xpose.msra.mxu0 %v418
      %1133 = vmatmul.f32.gmra.mxu0 %v241
      %v1134 = vpop.f32.mrf.mxu0
      %v1135 = vadd.f32 %v1115, %v1134
      %1136 = vdwg.mxu0
      %1137 = vmatpush.xpose.msra.mxu0 0.0
      %1138 = vmatpush.xpose.msra.mxu0 0.0
      %1139 = vmatpush.xpose.msra.mxu0 0.0
      %1140 = vmatpush.xpose.msra.mxu0 0.0
      %1141 = vmatpush.xpose.msra.mxu0 0.0
      %1142 = vmatpush.xpose.msra.mxu0 0.0
      %1143 = vmatpush.xpose.msra.mxu0 0.0
      %1144 = vmatpush.xpose.msra.mxu0 0.0
      %1145 = vmatpush.xpose.msra.mxu0 0.0
      %1146 = vmatpush.xpose.msra.mxu0 0.0
      %1147 = vmatpush.xpose.msra.mxu0 0.0
      %1148 = vmatpush.xpose.msra.mxu0 0.0
      %1149 = vmatpush.xpose.msra.mxu0 0.0
      %1150 = vmatpush.xpose.msra.mxu0 0.0
      %1151 = vmatpush.xpose.msra.mxu0 0.0
      %1152 = vmatpush.xpose.msra.mxu0 %v419
      %1153 = vmatmul.f32.gmra.mxu0 %v242
      %v1154 = vpop.f32.mrf.mxu0
      %v1155 = vadd.f32 %v1135, %v1154
      %1156 = vdwg.mxu0
      %1157 = vmatpush.xpose.msra.mxu0 0.0
      %1158 = vmatpush.xpose.msra.mxu0 0.0
      %1159 = vmatpush.xpose.msra.mxu0 0.0
      %1160 = vmatpush.xpose.msra.mxu0 0.0
      %1161 = vmatpush.xpose.msra.mxu0 0.0
      %1162 = vmatpush.xpose.msra.mxu0 0.0
      %1163 = vmatpush.xpose.msra.mxu0 0.0
      %1164 = vmatpush.xpose.msra.mxu0 0.0
      %1165 = vmatpush.xpose.msra.mxu0 0.0
      %1166 = vmatpush.xpose.msra.mxu0 0.0
      %1167 = vmatpush.xpose.msra.mxu0 0.0
      %1168 = vmatpush.xpose.msra.mxu0 0.0
      %1169 = vmatpush.xpose.msra.mxu0 0.0
      %1170 = vmatpush.xpose.msra.mxu0 0.0
      %1171 = vmatpush.xpose.msra.mxu0 0.0
      %1172 = vmatpush.xpose.msra.mxu0 %v420
      %1173 = vmatmul.f32.gmra.mxu0 %v243
      %v1174 = vpop.f32.mrf.mxu0
      %v1175 = vadd.f32 %v1155, %v1174
      %1176 = vdwg.mxu0
      %1177 = vmatpush.xpose.msra.mxu0 0.0
      %1178 = vmatpush.xpose.msra.mxu0 0.0
      %1179 = vmatpush.xpose.msra.mxu0 0.0
      %1180 = vmatpush.xpose.msra.mxu0 0.0
      %1181 = vmatpush.xpose.msra.mxu0 0.0
      %1182 = vmatpush.xpose.msra.mxu0 0.0
      %1183 = vmatpush.xpose.msra.mxu0 0.0
      %1184 = vmatpush.xpose.msra.mxu0 0.0
      %1185 = vmatpush.xpose.msra.mxu0 0.0
      %1186 = vmatpush.xpose.msra.mxu0 0.0
      %1187 = vmatpush.xpose.msra.mxu0 0.0
      %1188 = vmatpush.xpose.msra.mxu0 0.0
      %1189 = vmatpush.xpose.msra.mxu0 0.0
      %1190 = vmatpush.xpose.msra.mxu0 0.0
      %1191 = vmatpush.xpose.msra.mxu0 0.0
      %1192 = vmatpush.xpose.msra.mxu0 %v421
      %1193 = vmatmul.f32.gmra.mxu0 %v244
      %v1194 = vpop.f32.mrf.mxu0
      %v1195 = vadd.f32 %v1175, %v1194
      %1196 = vdwg.mxu0
      %1197 = vmatpush.xpose.msra.mxu0 0.0
      %1198 = vmatpush.xpose.msra.mxu0 0.0
      %1199 = vmatpush.xpose.msra.mxu0 0.0
      %1200 = vmatpush.xpose.msra.mxu0 0.0
      %1201 = vmatpush.xpose.msra.mxu0 0.0
      %1202 = vmatpush.xpose.msra.mxu0 0.0
      %1203 = vmatpush.xpose.msra.mxu0 0.0
      %1204 = vmatpush.xpose.msra.mxu0 0.0
      %1205 = vmatpush.xpose.msra.mxu0 0.0
      %1206 = vmatpush.xpose.msra.mxu0 0.0
      %1207 = vmatpush.xpose.msra.mxu0 0.0
      %1208 = vmatpush.xpose.msra.mxu0 0.0
      %1209 = vmatpush.xpose.msra.mxu0 0.0
      %1210 = vmatpush.xpose.msra.mxu0 0.0
      %1211 = vmatpush.xpose.msra.mxu0 0.0
      %1212 = vmatpush.xpose.msra.mxu0 %v422
      %1213 = vmatmul.f32.gmra.mxu0 %v245
      %v1214 = vpop.f32.mrf.mxu0
      %v1215 = vadd.f32 %v1195, %v1214
      %1216 = vdwg.mxu0
      %1217 = vmatpush.xpose.msra.mxu0 0.0
      %1218 = vmatpush.xpose.msra.mxu0 0.0
      %1219 = vmatpush.xpose.msra.mxu0 0.0
      %1220 = vmatpush.xpose.msra.mxu0 0.0
      %1221 = vmatpush.xpose.msra.mxu0 0.0
      %1222 = vmatpush.xpose.msra.mxu0 0.0
      %1223 = vmatpush.xpose.msra.mxu0 0.0
      %1224 = vmatpush.xpose.msra.mxu0 0.0
      %1225 = vmatpush.xpose.msra.mxu0 0.0
      %1226 = vmatpush.xpose.msra.mxu0 0.0
      %1227 = vmatpush.xpose.msra.mxu0 0.0
      %1228 = vmatpush.xpose.msra.mxu0 0.0
      %1229 = vmatpush.xpose.msra.mxu0 0.0
      %1230 = vmatpush.xpose.msra.mxu0 0.0
      %1231 = vmatpush.xpose.msra.mxu0 0.0
      %1232 = vmatpush.xpose.msra.mxu0 %v423
      %1233 = vmatmul.f32.gmra.mxu0 %v246
      %v1234 = vpop.f32.mrf.mxu0
      %v1235 = vadd.f32 %v1215, %v1234
      %1236 = vdwg.mxu0
      %1237 = vmatpush.xpose.msra.mxu0 0.0
      %1238 = vmatpush.xpose.msra.mxu0 0.0
      %1239 = vmatpush.xpose.msra.mxu0 0.0
      %1240 = vmatpush.xpose.msra.mxu0 0.0
      %1241 = vmatpush.xpose.msra.mxu0 0.0
      %1242 = vmatpush.xpose.msra.mxu0 0.0
      %1243 = vmatpush.xpose.msra.mxu0 0.0
      %1244 = vmatpush.xpose.msra.mxu0 0.0
      %1245 = vmatpush.xpose.msra.mxu0 0.0
      %1246 = vmatpush.xpose.msra.mxu0 0.0
      %1247 = vmatpush.xpose.msra.mxu0 0.0
      %1248 = vmatpush.xpose.msra.mxu0 0.0
      %1249 = vmatpush.xpose.msra.mxu0 0.0
      %1250 = vmatpush.xpose.msra.mxu0 0.0
      %1251 = vmatpush.xpose.msra.mxu0 0.0
      %1252 = vmatpush.xpose.msra.mxu0 %v424
      %1253 = vmatmul.f32.gmra.mxu0 %v247
      %v1254 = vpop.f32.mrf.mxu0
      %v1255 = vadd.f32 %v1235, %v1254
      %1256 = vdwg.mxu0
      %1257 = vmatpush.xpose.msra.mxu0 0.0
      %1258 = vmatpush.xpose.msra.mxu0 0.0
      %1259 = vmatpush.xpose.msra.mxu0 0.0
      %1260 = vmatpush.xpose.msra.mxu0 0.0
      %1261 = vmatpush.xpose.msra.mxu0 0.0
      %1262 = vmatpush.xpose.msra.mxu0 0.0
      %1263 = vmatpush.xpose.msra.mxu0 0.0
      %1264 = vmatpush.xpose.msra.mxu0 0.0
      %1265 = vmatpush.xpose.msra.mxu0 0.0
      %1266 = vmatpush.xpose.msra.mxu0 0.0
      %1267 = vmatpush.xpose.msra.mxu0 0.0
      %1268 = vmatpush.xpose.msra.mxu0 0.0
      %1269 = vmatpush.xpose.msra.mxu0 0.0
      %1270 = vmatpush.xpose.msra.mxu0 0.0
      %1271 = vmatpush.xpose.msra.mxu0 0.0
      %1272 = vmatpush.xpose.msra.mxu0 %v425
      %1273 = vmatmul.f32.gmra.mxu0 %v248
      %v1274 = vpop.f32.mrf.mxu0
      %v1275 = vadd.f32 %v1255, %v1274
      %1276 = vdwg.mxu0
      %1277 = vmatpush.xpose.msra.mxu0 0.0
      %1278 = vmatpush.xpose.msra.mxu0 0.0
      %1279 = vmatpush.xpose.msra.mxu0 0.0
      %1280 = vmatpush.xpose.msra.mxu0 0.0
      %1281 = vmatpush.xpose.msra.mxu0 0.0
      %1282 = vmatpush.xpose.msra.mxu0 0.0
      %1283 = vmatpush.xpose.msra.mxu0 0.0
      %1284 = vmatpush.xpose.msra.mxu0 0.0
      %1285 = vmatpush.xpose.msra.mxu0 0.0
      %1286 = vmatpush.xpose.msra.mxu0 0.0
      %1287 = vmatpush.xpose.msra.mxu0 0.0
      %1288 = vmatpush.xpose.msra.mxu0 0.0
      %1289 = vmatpush.xpose.msra.mxu0 0.0
      %1290 = vmatpush.xpose.msra.mxu0 0.0
      %1291 = vmatpush.xpose.msra.mxu0 0.0
      %1292 = vmatpush.xpose.msra.mxu0 %v426
      %1293 = vmatmul.f32.gmra.mxu0 %v249
      %v1294 = vpop.f32.mrf.mxu0
      %v1295 = vadd.f32 %v1275, %v1294
      %1296 = vdwg.mxu0
      %1297 = vmatpush.xpose.msra.mxu0 0.0
      %1298 = vmatpush.xpose.msra.mxu0 0.0
      %1299 = vmatpush.xpose.msra.mxu0 0.0
      %1300 = vmatpush.xpose.msra.mxu0 0.0
      %1301 = vmatpush.xpose.msra.mxu0 0.0
      %1302 = vmatpush.xpose.msra.mxu0 0.0
      %1303 = vmatpush.xpose.msra.mxu0 0.0
      %1304 = vmatpush.xpose.msra.mxu0 0.0
      %1305 = vmatpush.xpose.msra.mxu0 0.0
      %1306 = vmatpush.xpose.msra.mxu0 0.0
      %1307 = vmatpush.xpose.msra.mxu0 0.0
      %1308 = vmatpush.xpose.msra.mxu0 0.0
      %1309 = vmatpush.xpose.msra.mxu0 0.0
      %1310 = vmatpush.xpose.msra.mxu0 0.0
      %1311 = vmatpush.xpose.msra.mxu0 0.0
      %1312 = vmatpush.xpose.msra.mxu0 %v427
      %1313 = vmatmul.f32.gmra.mxu0 %v250
      %v1314 = vpop.f32.mrf.mxu0
      %v1315 = vadd.f32 %v1295, %v1314
      %1316 = vdwg.mxu0
      %1317 = vmatpush.xpose.msra.mxu0 0.0
      %1318 = vmatpush.xpose.msra.mxu0 0.0
      %1319 = vmatpush.xpose.msra.mxu0 0.0
      %1320 = vmatpush.xpose.msra.mxu0 0.0
      %1321 = vmatpush.xpose.msra.mxu0 0.0
      %1322 = vmatpush.xpose.msra.mxu0 0.0
      %1323 = vmatpush.xpose.msra.mxu0 0.0
      %1324 = vmatpush.xpose.msra.mxu0 0.0
      %1325 = vmatpush.xpose.msra.mxu0 0.0
      %1326 = vmatpush.xpose.msra.mxu0 0.0
      %1327 = vmatpush.xpose.msra.mxu0 0.0
      %1328 = vmatpush.xpose.msra.mxu0 0.0
      %1329 = vmatpush.xpose.msra.mxu0 0.0
      %1330 = vmatpush.xpose.msra.mxu0 0.0
      %1331 = vmatpush.xpose.msra.mxu0 0.0
      %1332 = vmatpush.xpose.msra.mxu0 %v428
      %1333 = vmatmul.f32.gmra.mxu0 %v251
      %v1334 = vpop.f32.mrf.mxu0
      %v1335 = vadd.f32 %v1315, %v1334
      %1336 = vdwg.mxu0
      %1337 = vmatpush.xpose.msra.mxu0 0.0
      %1338 = vmatpush.xpose.msra.mxu0 0.0
      %1339 = vmatpush.xpose.msra.mxu0 0.0
      %1340 = vmatpush.xpose.msra.mxu0 0.0
      %1341 = vmatpush.xpose.msra.mxu0 0.0
      %1342 = vmatpush.xpose.msra.mxu0 0.0
      %1343 = vmatpush.xpose.msra.mxu0 0.0
      %1344 = vmatpush.xpose.msra.mxu0 0.0
      %1345 = vmatpush.xpose.msra.mxu0 0.0
      %1346 = vmatpush.xpose.msra.mxu0 0.0
      %1347 = vmatpush.xpose.msra.mxu0 0.0
      %1348 = vmatpush.xpose.msra.mxu0 0.0
      %1349 = vmatpush.xpose.msra.mxu0 0.0
      %1350 = vmatpush.xpose.msra.mxu0 0.0
      %1351 = vmatpush.xpose.msra.mxu0 0.0
      %1352 = vmatpush.xpose.msra.mxu0 %v429
      %1353 = vmatmul.f32.gmra.mxu0 %v252
      %v1354 = vpop.f32.mrf.mxu0
      %v1355 = vadd.f32 %v1335, %v1354
      %1356 = vdwg.mxu0
      %1357 = vmatpush.xpose.msra.mxu0 0.0
      %1358 = vmatpush.xpose.msra.mxu0 0.0
      %1359 = vmatpush.xpose.msra.mxu0 0.0
      %1360 = vmatpush.xpose.msra.mxu0 0.0
      %1361 = vmatpush.xpose.msra.mxu0 0.0
      %1362 = vmatpush.xpose.msra.mxu0 0.0
      %1363 = vmatpush.xpose.msra.mxu0 0.0
      %1364 = vmatpush.xpose.msra.mxu0 0.0
      %1365 = vmatpush.xpose.msra.mxu0 0.0
      %1366 = vmatpush.xpose.msra.mxu0 0.0
      %1367 = vmatpush.xpose.msra.mxu0 0.0
      %1368 = vmatpush.xpose.msra.mxu0 0.0
      %1369 = vmatpush.xpose.msra.mxu0 0.0
      %1370 = vmatpush.xpose.msra.mxu0 0.0
      %1371 = vmatpush.xpose.msra.mxu0 0.0
      %1372 = vmatpush.xpose.msra.mxu0 %v430
      %1373 = vmatmul.f32.gmra.mxu0 %v253
      %v1374 = vpop.f32.mrf.mxu0
      %v1375 = vadd.f32 %v1355, %v1374
      %1376 = vdwg.mxu0
      %1377 = vmatpush.xpose.msra.mxu0 0.0
      %1378 = vmatpush.xpose.msra.mxu0 0.0
      %1379 = vmatpush.xpose.msra.mxu0 0.0
      %1380 = vmatpush.xpose.msra.mxu0 0.0
      %1381 = vmatpush.xpose.msra.mxu0 0.0
      %1382 = vmatpush.xpose.msra.mxu0 0.0
      %1383 = vmatpush.xpose.msra.mxu0 0.0
      %1384 = vmatpush.xpose.msra.mxu0 0.0
      %1385 = vmatpush.xpose.msra.mxu0 0.0
      %1386 = vmatpush.xpose.msra.mxu0 0.0
      %1387 = vmatpush.xpose.msra.mxu0 0.0
      %1388 = vmatpush.xpose.msra.mxu0 0.0
      %1389 = vmatpush.xpose.msra.mxu0 0.0
      %1390 = vmatpush.xpose.msra.mxu0 0.0
      %1391 = vmatpush.xpose.msra.mxu0 0.0
      %1392 = vmatpush.xpose.msra.mxu0 %v431
      %1393 = vmatmul.f32.gmra.mxu0 %v254
      %v1394 = vpop.f32.mrf.mxu0
      %v1395 = vadd.f32 %v1375, %v1394
      %1396 = vdwg.mxu0
      %1397 = vmatpush.xpose.msra.mxu0 0.0
      %1398 = vmatpush.xpose.msra.mxu0 0.0
      %1399 = vmatpush.xpose.msra.mxu0 0.0
      %1400 = vmatpush.xpose.msra.mxu0 0.0
      %1401 = vmatpush.xpose.msra.mxu0 0.0
      %1402 = vmatpush.xpose.msra.mxu0 0.0
      %1403 = vmatpush.xpose.msra.mxu0 0.0
      %1404 = vmatpush.xpose.msra.mxu0 0.0
      %1405 = vmatpush.xpose.msra.mxu0 0.0
      %1406 = vmatpush.xpose.msra.mxu0 0.0
      %1407 = vmatpush.xpose.msra.mxu0 0.0
      %1408 = vmatpush.xpose.msra.mxu0 0.0
      %1409 = vmatpush.xpose.msra.mxu0 0.0
      %1410 = vmatpush.xpose.msra.mxu0 0.0
      %1411 = vmatpush.xpose.msra.mxu0 0.0
      %1412 = vmatpush.xpose.msra.mxu0 %v432
      %1413 = vmatmul.f32.gmra.mxu0 %v255
      %v1414 = vpop.f32.mrf.mxu0
      %v1415 = vadd.f32 %v1395, %v1414
      %1416 = vdwg.mxu0
      %1417 = vmatpush.xpose.msra.mxu0 0.0
      %1418 = vmatpush.xpose.msra.mxu0 0.0
      %1419 = vmatpush.xpose.msra.mxu0 0.0
      %1420 = vmatpush.xpose.msra.mxu0 0.0
      %1421 = vmatpush.xpose.msra.mxu0 0.0
      %1422 = vmatpush.xpose.msra.mxu0 0.0
      %1423 = vmatpush.xpose.msra.mxu0 0.0
      %1424 = vmatpush.xpose.msra.mxu0 0.0
      %1425 = vmatpush.xpose.msra.mxu0 0.0
      %1426 = vmatpush.xpose.msra.mxu0 0.0
      %1427 = vmatpush.xpose.msra.mxu0 0.0
      %1428 = vmatpush.xpose.msra.mxu0 0.0
      %1429 = vmatpush.xpose.msra.mxu0 0.0
      %1430 = vmatpush.xpose.msra.mxu0 0.0
      %1431 = vmatpush.xpose.msra.mxu0 0.0
      %1432 = vmatpush.xpose.msra.mxu0 %v433
      %1433 = vmatmul.f32.gmra.mxu0 %v256
      %v1434 = vpop.f32.mrf.mxu0
      %v1435 = vadd.f32 %v1415, %v1434
      %1436 = vdwg.mxu0
      %1437 = vmatpush.xpose.msra.mxu0 0.0
      %1438 = vmatpush.xpose.msra.mxu0 0.0
      %1439 = vmatpush.xpose.msra.mxu0 0.0
      %1440 = vmatpush.xpose.msra.mxu0 0.0
      %1441 = vmatpush.xpose.msra.mxu0 0.0
      %1442 = vmatpush.xpose.msra.mxu0 0.0
      %1443 = vmatpush.xpose.msra.mxu0 0.0
      %1444 = vmatpush.xpose.msra.mxu0 0.0
      %1445 = vmatpush.xpose.msra.mxu0 0.0
      %1446 = vmatpush.xpose.msra.mxu0 0.0
      %1447 = vmatpush.xpose.msra.mxu0 0.0
      %1448 = vmatpush.xpose.msra.mxu0 0.0
      %1449 = vmatpush.xpose.msra.mxu0 0.0
      %1450 = vmatpush.xpose.msra.mxu0 0.0
      %1451 = vmatpush.xpose.msra.mxu0 0.0
      %1452 = vmatpush.xpose.msra.mxu0 %v434
      %1453 = vmatmul.f32.gmra.mxu0 %v257
      %v1454 = vpop.f32.mrf.mxu0
      %v1455 = vadd.f32 %v1435, %v1454
      %1456 = vdwg.mxu0
      %1457 = vmatpush.xpose.msra.mxu0 0.0
      %1458 = vmatpush.xpose.msra.mxu0 0.0
      %1459 = vmatpush.xpose.msra.mxu0 0.0
      %1460 = vmatpush.xpose.msra.mxu0 0.0
      %1461 = vmatpush.xpose.msra.mxu0 0.0
      %1462 = vmatpush.xpose.msra.mxu0 0.0
      %1463 = vmatpush.xpose.msra.mxu0 0.0
      %1464 = vmatpush.xpose.msra.mxu0 0.0
      %1465 = vmatpush.xpose.msra.mxu0 0.0
      %1466 = vmatpush.xpose.msra.mxu0 0.0
      %1467 = vmatpush.xpose.msra.mxu0 0.0
      %1468 = vmatpush.xpose.msra.mxu0 0.0
      %1469 = vmatpush.xpose.msra.mxu0 0.0
      %1470 = vmatpush.xpose.msra.mxu0 0.0
      %1471 = vmatpush.xpose.msra.mxu0 0.0
      %1472 = vmatpush.xpose.msra.mxu0 %v435
      %1473 = vmatmul.f32.gmra.mxu0 %v258
      %v1474 = vpop.f32.mrf.mxu0
      %v1475 = vadd.f32 %v1455, %v1474
      %1476 = vdwg.mxu0
      %1477 = vmatpush.xpose.msra.mxu0 0.0
      %1478 = vmatpush.xpose.msra.mxu0 0.0
      %1479 = vmatpush.xpose.msra.mxu0 0.0
      %1480 = vmatpush.xpose.msra.mxu0 0.0
      %1481 = vmatpush.xpose.msra.mxu0 0.0
      %1482 = vmatpush.xpose.msra.mxu0 0.0
      %1483 = vmatpush.xpose.msra.mxu0 0.0
      %1484 = vmatpush.xpose.msra.mxu0 0.0
      %1485 = vmatpush.xpose.msra.mxu0 0.0
      %1486 = vmatpush.xpose.msra.mxu0 0.0
      %1487 = vmatpush.xpose.msra.mxu0 0.0
      %1488 = vmatpush.xpose.msra.mxu0 0.0
      %1489 = vmatpush.xpose.msra.mxu0 0.0
      %1490 = vmatpush.xpose.msra.mxu0 0.0
      %1491 = vmatpush.xpose.msra.mxu0 0.0
      %1492 = vmatpush.xpose.msra.mxu0 %v436
      %1493 = vmatmul.f32.gmra.mxu0 %v259
      %v1494 = vpop.f32.mrf.mxu0
      %v1495 = vadd.f32 %v1475, %v1494
      %1496 = vdwg.mxu0
      %1497 = vmatpush.xpose.msra.mxu0 0.0
      %1498 = vmatpush.xpose.msra.mxu0 0.0
      %1499 = vmatpush.xpose.msra.mxu0 0.0
      %1500 = vmatpush.xpose.msra.mxu0 0.0
      %1501 = vmatpush.xpose.msra.mxu0 0.0
      %1502 = vmatpush.xpose.msra.mxu0 0.0
      %1503 = vmatpush.xpose.msra.mxu0 0.0
      %1504 = vmatpush.xpose.msra.mxu0 0.0
      %1505 = vmatpush.xpose.msra.mxu0 0.0
      %1506 = vmatpush.xpose.msra.mxu0 0.0
      %1507 = vmatpush.xpose.msra.mxu0 0.0
      %1508 = vmatpush.xpose.msra.mxu0 0.0
      %1509 = vmatpush.xpose.msra.mxu0 0.0
      %1510 = vmatpush.xpose.msra.mxu0 0.0
      %1511 = vmatpush.xpose.msra.mxu0 0.0
      %1512 = vmatpush.xpose.msra.mxu0 %v437
      %1513 = vmatmul.f32.gmra.mxu0 %v260
      %v1514 = vpop.f32.mrf.mxu0
      %v1515 = vadd.f32 %v1495, %v1514
      %1516 = vdwg.mxu0
      %1517 = vmatpush.xpose.msra.mxu0 0.0
      %1518 = vmatpush.xpose.msra.mxu0 0.0
      %1519 = vmatpush.xpose.msra.mxu0 0.0
      %1520 = vmatpush.xpose.msra.mxu0 0.0
      %1521 = vmatpush.xpose.msra.mxu0 0.0
      %1522 = vmatpush.xpose.msra.mxu0 0.0
      %1523 = vmatpush.xpose.msra.mxu0 0.0
      %1524 = vmatpush.xpose.msra.mxu0 0.0
      %1525 = vmatpush.xpose.msra.mxu0 0.0
      %1526 = vmatpush.xpose.msra.mxu0 0.0
      %1527 = vmatpush.xpose.msra.mxu0 0.0
      %1528 = vmatpush.xpose.msra.mxu0 0.0
      %1529 = vmatpush.xpose.msra.mxu0 0.0
      %1530 = vmatpush.xpose.msra.mxu0 0.0
      %1531 = vmatpush.xpose.msra.mxu0 0.0
      %1532 = vmatpush.xpose.msra.mxu0 %v438
      %1533 = vmatmul.f32.gmra.mxu0 %v261
      %v1534 = vpop.f32.mrf.mxu0
      %v1535 = vadd.f32 %v1515, %v1534
      %1536 = vdwg.mxu0
      %1537 = vmatpush.xpose.msra.mxu0 0.0
      %1538 = vmatpush.xpose.msra.mxu0 0.0
      %1539 = vmatpush.xpose.msra.mxu0 0.0
      %1540 = vmatpush.xpose.msra.mxu0 0.0
      %1541 = vmatpush.xpose.msra.mxu0 0.0
      %1542 = vmatpush.xpose.msra.mxu0 0.0
      %1543 = vmatpush.xpose.msra.mxu0 0.0
      %1544 = vmatpush.xpose.msra.mxu0 0.0
      %1545 = vmatpush.xpose.msra.mxu0 0.0
      %1546 = vmatpush.xpose.msra.mxu0 0.0
      %1547 = vmatpush.xpose.msra.mxu0 0.0
      %1548 = vmatpush.xpose.msra.mxu0 0.0
      %1549 = vmatpush.xpose.msra.mxu0 0.0
      %1550 = vmatpush.xpose.msra.mxu0 0.0
      %1551 = vmatpush.xpose.msra.mxu0 0.0
      %1552 = vmatpush.xpose.msra.mxu0 %v439
      %1553 = vmatmul.f32.gmra.mxu0 %v262
      %v1554 = vpop.f32.mrf.mxu0
      %v1555 = vadd.f32 %v1535, %v1554
      %1556 = vdwg.mxu0
      %1557 = vmatpush.xpose.msra.mxu0 0.0
      %1558 = vmatpush.xpose.msra.mxu0 0.0
      %1559 = vmatpush.xpose.msra.mxu0 0.0
      %1560 = vmatpush.xpose.msra.mxu0 0.0
      %1561 = vmatpush.xpose.msra.mxu0 0.0
      %1562 = vmatpush.xpose.msra.mxu0 0.0
      %1563 = vmatpush.xpose.msra.mxu0 0.0
      %1564 = vmatpush.xpose.msra.mxu0 0.0
      %1565 = vmatpush.xpose.msra.mxu0 0.0
      %1566 = vmatpush.xpose.msra.mxu0 0.0
      %1567 = vmatpush.xpose.msra.mxu0 0.0
      %1568 = vmatpush.xpose.msra.mxu0 0.0
      %1569 = vmatpush.xpose.msra.mxu0 0.0
      %1570 = vmatpush.xpose.msra.mxu0 0.0
      %1571 = vmatpush.xpose.msra.mxu0 0.0
      %1572 = vmatpush.xpose.msra.mxu0 %v440
      %1573 = vmatmul.f32.gmra.mxu0 %v263
      %v1574 = vpop.f32.mrf.mxu0
      %v1575 = vadd.f32 %v1555, %v1574
      %1576 = vdwg.mxu0
      %1577 = vmatpush.xpose.msra.mxu0 0.0
      %1578 = vmatpush.xpose.msra.mxu0 0.0
      %1579 = vmatpush.xpose.msra.mxu0 0.0
      %1580 = vmatpush.xpose.msra.mxu0 0.0
      %1581 = vmatpush.xpose.msra.mxu0 0.0
      %1582 = vmatpush.xpose.msra.mxu0 0.0
      %1583 = vmatpush.xpose.msra.mxu0 0.0
      %1584 = vmatpush.xpose.msra.mxu0 0.0
      %1585 = vmatpush.xpose.msra.mxu0 0.0
      %1586 = vmatpush.xpose.msra.mxu0 0.0
      %1587 = vmatpush.xpose.msra.mxu0 0.0
      %1588 = vmatpush.xpose.msra.mxu0 0.0
      %1589 = vmatpush.xpose.msra.mxu0 0.0
      %1590 = vmatpush.xpose.msra.mxu0 0.0
      %1591 = vmatpush.xpose.msra.mxu0 0.0
      %1592 = vmatpush.xpose.msra.mxu0 %v441
      %1593 = vmatmul.f32.gmra.mxu0 %v264
      %v1594 = vpop.f32.mrf.mxu0
      %v1595 = vadd.f32 %v1575, %v1594
      %1596 = vdwg.mxu0
      %1597 = vmatpush.xpose.msra.mxu0 0.0
      %1598 = vmatpush.xpose.msra.mxu0 0.0
      %1599 = vmatpush.xpose.msra.mxu0 0.0
      %1600 = vmatpush.xpose.msra.mxu0 0.0
      %1601 = vmatpush.xpose.msra.mxu0 0.0
      %1602 = vmatpush.xpose.msra.mxu0 0.0
      %1603 = vmatpush.xpose.msra.mxu0 0.0
      %1604 = vmatpush.xpose.msra.mxu0 0.0
      %1605 = vmatpush.xpose.msra.mxu0 0.0
      %1606 = vmatpush.xpose.msra.mxu0 0.0
      %1607 = vmatpush.xpose.msra.mxu0 0.0
      %1608 = vmatpush.xpose.msra.mxu0 0.0
      %1609 = vmatpush.xpose.msra.mxu0 0.0
      %1610 = vmatpush.xpose.msra.mxu0 0.0
      %1611 = vmatpush.xpose.msra.mxu0 0.0
      %1612 = vmatpush.xpose.msra.mxu0 %v442
      %1613 = vmatmul.f32.gmra.mxu0 %v265
      %v1614 = vpop.f32.mrf.mxu0
      %v1615 = vadd.f32 %v1595, %v1614
      %1616 = vdwg.mxu0
      %1617 = vmatpush.xpose.msra.mxu0 0.0
      %1618 = vmatpush.xpose.msra.mxu0 0.0
      %1619 = vmatpush.xpose.msra.mxu0 0.0
      %1620 = vmatpush.xpose.msra.mxu0 0.0
      %1621 = vmatpush.xpose.msra.mxu0 0.0
      %1622 = vmatpush.xpose.msra.mxu0 0.0
      %1623 = vmatpush.xpose.msra.mxu0 0.0
      %1624 = vmatpush.xpose.msra.mxu0 0.0
      %1625 = vmatpush.xpose.msra.mxu0 0.0
      %1626 = vmatpush.xpose.msra.mxu0 0.0
      %1627 = vmatpush.xpose.msra.mxu0 0.0
      %1628 = vmatpush.xpose.msra.mxu0 0.0
      %1629 = vmatpush.xpose.msra.mxu0 0.0
      %1630 = vmatpush.xpose.msra.mxu0 0.0
      %1631 = vmatpush.xpose.msra.mxu0 0.0
      %1632 = vmatpush.xpose.msra.mxu0 %v443
      %1633 = vmatmul.f32.gmra.mxu0 %v266
      %v1634 = vpop.f32.mrf.mxu0
      %v1635 = vadd.f32 %v1615, %v1634
      %1636 = vdwg.mxu0
      %1637 = vmatpush.xpose.msra.mxu0 0.0
      %1638 = vmatpush.xpose.msra.mxu0 0.0
      %1639 = vmatpush.xpose.msra.mxu0 0.0
      %1640 = vmatpush.xpose.msra.mxu0 0.0
      %1641 = vmatpush.xpose.msra.mxu0 0.0
      %1642 = vmatpush.xpose.msra.mxu0 0.0
      %1643 = vmatpush.xpose.msra.mxu0 0.0
      %1644 = vmatpush.xpose.msra.mxu0 0.0
      %1645 = vmatpush.xpose.msra.mxu0 0.0
      %1646 = vmatpush.xpose.msra.mxu0 0.0
      %1647 = vmatpush.xpose.msra.mxu0 0.0
      %1648 = vmatpush.xpose.msra.mxu0 0.0
      %1649 = vmatpush.xpose.msra.mxu0 0.0
      %1650 = vmatpush.xpose.msra.mxu0 0.0
      %1651 = vmatpush.xpose.msra.mxu0 0.0
      %1652 = vmatpush.xpose.msra.mxu0 %v444
      %1653 = vmatmul.f32.gmra.mxu0 %v267
      %v1654 = vpop.f32.mrf.mxu0
      %v1655 = vadd.f32 %v1635, %v1654
      %1656 = vdwg.mxu0
      %1657 = vmatpush.xpose.msra.mxu0 0.0
      %1658 = vmatpush.xpose.msra.mxu0 0.0
      %1659 = vmatpush.xpose.msra.mxu0 0.0
      %1660 = vmatpush.xpose.msra.mxu0 0.0
      %1661 = vmatpush.xpose.msra.mxu0 0.0
      %1662 = vmatpush.xpose.msra.mxu0 0.0
      %1663 = vmatpush.xpose.msra.mxu0 0.0
      %1664 = vmatpush.xpose.msra.mxu0 0.0
      %1665 = vmatpush.xpose.msra.mxu0 0.0
      %1666 = vmatpush.xpose.msra.mxu0 0.0
      %1667 = vmatpush.xpose.msra.mxu0 0.0
      %1668 = vmatpush.xpose.msra.mxu0 0.0
      %1669 = vmatpush.xpose.msra.mxu0 0.0
      %1670 = vmatpush.xpose.msra.mxu0 0.0
      %1671 = vmatpush.xpose.msra.mxu0 0.0
      %1672 = vmatpush.xpose.msra.mxu0 %v445
      %1673 = vmatmul.f32.gmra.mxu0 %v268
      %v1674 = vpop.f32.mrf.mxu0
      %v1675 = vadd.f32 %v1655, %v1674
      %1676 = vdwg.mxu0
      %1677 = vmatpush.xpose.msra.mxu0 0.0
      %1678 = vmatpush.xpose.msra.mxu0 0.0
      %1679 = vmatpush.xpose.msra.mxu0 0.0
      %1680 = vmatpush.xpose.msra.mxu0 0.0
      %1681 = vmatpush.xpose.msra.mxu0 0.0
      %1682 = vmatpush.xpose.msra.mxu0 0.0
      %1683 = vmatpush.xpose.msra.mxu0 0.0
      %1684 = vmatpush.xpose.msra.mxu0 0.0
      %1685 = vmatpush.xpose.msra.mxu0 0.0
      %1686 = vmatpush.xpose.msra.mxu0 0.0
      %1687 = vmatpush.xpose.msra.mxu0 0.0
      %1688 = vmatpush.xpose.msra.mxu0 0.0
      %1689 = vmatpush.xpose.msra.mxu0 0.0
      %1690 = vmatpush.xpose.msra.mxu0 0.0
      %1691 = vmatpush.xpose.msra.mxu0 0.0
      %1692 = vmatpush.xpose.msra.mxu0 %v446
      %1693 = vmatmul.f32.gmra.mxu0 %v269
      %v1694 = vpop.f32.mrf.mxu0
      %v1695 = vadd.f32 %v1675, %v1694
      %1696 = vdwg.mxu0
      %1697 = vmatpush.xpose.msra.mxu0 0.0
      %1698 = vmatpush.xpose.msra.mxu0 0.0
      %1699 = vmatpush.xpose.msra.mxu0 0.0
      %1700 = vmatpush.xpose.msra.mxu0 0.0
      %1701 = vmatpush.xpose.msra.mxu0 0.0
      %1702 = vmatpush.xpose.msra.mxu0 0.0
      %1703 = vmatpush.xpose.msra.mxu0 0.0
      %1704 = vmatpush.xpose.msra.mxu0 0.0
      %1705 = vmatpush.xpose.msra.mxu0 0.0
      %1706 = vmatpush.xpose.msra.mxu0 0.0
      %1707 = vmatpush.xpose.msra.mxu0 0.0
      %1708 = vmatpush.xpose.msra.mxu0 0.0
      %1709 = vmatpush.xpose.msra.mxu0 0.0
      %1710 = vmatpush.xpose.msra.mxu0 0.0
      %1711 = vmatpush.xpose.msra.mxu0 0.0
      %1712 = vmatpush.xpose.msra.mxu0 %v447
      %1713 = vmatmul.f32.gmra.mxu0 %v270
      %v1714 = vpop.f32.mrf.mxu0
      %v1715 = vadd.f32 %v1695, %v1714
      %1716 = vdwg.mxu0
      %1717 = vmatpush.xpose.msra.mxu0 0.0
      %1718 = vmatpush.xpose.msra.mxu0 0.0
      %1719 = vmatpush.xpose.msra.mxu0 0.0
      %1720 = vmatpush.xpose.msra.mxu0 0.0
      %1721 = vmatpush.xpose.msra.mxu0 0.0
      %1722 = vmatpush.xpose.msra.mxu0 0.0
      %1723 = vmatpush.xpose.msra.mxu0 0.0
      %1724 = vmatpush.xpose.msra.mxu0 0.0
      %1725 = vmatpush.xpose.msra.mxu0 0.0
      %1726 = vmatpush.xpose.msra.mxu0 0.0
      %1727 = vmatpush.xpose.msra.mxu0 0.0
      %1728 = vmatpush.xpose.msra.mxu0 0.0
      %1729 = vmatpush.xpose.msra.mxu0 0.0
      %1730 = vmatpush.xpose.msra.mxu0 0.0
      %1731 = vmatpush.xpose.msra.mxu0 0.0
      %1732 = vmatpush.xpose.msra.mxu0 %v448
      %1733 = vmatmul.f32.gmra.mxu0 %v271
      %v1734 = vpop.f32.mrf.mxu0
      %v1735 = vadd.f32 %v1715, %v1734
      %1736 = vdwg.mxu0
      %v1741 = vperm.slane %v453, 0
      %v1742 = vperm.slane %v453, 1
      %v1743 = vperm.slane %v453, 2
      %v1744 = vperm.slane %v453, 3
      %v1745 = vperm.slane %v453, 4
      %v1746 = vperm.slane %v453, 5
      %v1747 = vperm.slane %v453, 6
      %v1748 = vperm.slane %v453, 7
      %v1749 = vperm.slane %v454, 0
      %v1750 = vperm.slane %v454, 1
      %v1751 = vperm.slane %v454, 2
      %v1752 = vperm.slane %v454, 3
      %v1753 = vperm.slane %v454, 4
      %v1754 = vperm.slane %v454, 5
      %v1755 = vperm.slane %v454, 6
      %v1756 = vperm.slane %v454, 7
      %v1757 = vperm.slane %v455, 0
      %v1758 = vperm.slane %v455, 1
      %v1759 = vperm.slane %v455, 2
      %v1760 = vperm.slane %v455, 3
      %v1761 = vperm.slane %v455, 4
      %v1762 = vperm.slane %v455, 5
      %v1763 = vperm.slane %v455, 6
      %v1764 = vperm.slane %v455, 7
      %v1765 = vperm.slane %v456, 0
      %v1766 = vperm.slane %v456, 1
      %v1767 = vperm.slane %v456, 2
      %v1768 = vperm.slane %v456, 3
      %v1769 = vperm.slane %v456, 4
      %v1770 = vperm.slane %v456, 5
      %v1771 = vperm.slane %v456, 6
      %v1772 = vperm.slane %v456, 7
      %1805 = vmatpush.xpose.msra.mxu0 0.0
      %1806 = vmatpush.xpose.msra.mxu0 0.0
      %1807 = vmatpush.xpose.msra.mxu0 0.0
      %1808 = vmatpush.xpose.msra.mxu0 0.0
      %1809 = vmatpush.xpose.msra.mxu0 0.0
      %1810 = vmatpush.xpose.msra.mxu0 0.0
      %1811 = vmatpush.xpose.msra.mxu0 0.0
      %1812 = vmatpush.xpose.msra.mxu0 0.0
      %1813 = vmatpush.xpose.msra.mxu0 0.0
      %1814 = vmatpush.xpose.msra.mxu0 0.0
      %1815 = vmatpush.xpose.msra.mxu0 0.0
      %1816 = vmatpush.xpose.msra.mxu0 0.0
      %1817 = vmatpush.xpose.msra.mxu0 0.0
      %1818 = vmatpush.xpose.msra.mxu0 0.0
      %1819 = vmatpush.xpose.msra.mxu0 0.0
      %1820 = vmatpush.xpose.msra.mxu0 %v417
      %1821 = vmatmul.f32.gmra.mxu0 %v1741
      %v1822 = vpop.f32.mrf.mxu0
      %v1823 = vadd.f32 1e-06, %v1822
      %1824 = vdwg.mxu0
      %1825 = vmatpush.xpose.msra.mxu0 0.0
      %1826 = vmatpush.xpose.msra.mxu0 0.0
      %1827 = vmatpush.xpose.msra.mxu0 0.0
      %1828 = vmatpush.xpose.msra.mxu0 0.0
      %1829 = vmatpush.xpose.msra.mxu0 0.0
      %1830 = vmatpush.xpose.msra.mxu0 0.0
      %1831 = vmatpush.xpose.msra.mxu0 0.0
      %1832 = vmatpush.xpose.msra.mxu0 0.0
      %1833 = vmatpush.xpose.msra.mxu0 0.0
      %1834 = vmatpush.xpose.msra.mxu0 0.0
      %1835 = vmatpush.xpose.msra.mxu0 0.0
      %1836 = vmatpush.xpose.msra.mxu0 0.0
      %1837 = vmatpush.xpose.msra.mxu0 0.0
      %1838 = vmatpush.xpose.msra.mxu0 0.0
      %1839 = vmatpush.xpose.msra.mxu0 0.0
      %1840 = vmatpush.xpose.msra.mxu0 %v418
      %1841 = vmatmul.f32.gmra.mxu0 %v1742
      %v1842 = vpop.f32.mrf.mxu0
      %v1843 = vadd.f32 %v1823, %v1842
      %1844 = vdwg.mxu0
      %1845 = vmatpush.xpose.msra.mxu0 0.0
      %1846 = vmatpush.xpose.msra.mxu0 0.0
      %1847 = vmatpush.xpose.msra.mxu0 0.0
      %1848 = vmatpush.xpose.msra.mxu0 0.0
      %1849 = vmatpush.xpose.msra.mxu0 0.0
      %1850 = vmatpush.xpose.msra.mxu0 0.0
      %1851 = vmatpush.xpose.msra.mxu0 0.0
      %1852 = vmatpush.xpose.msra.mxu0 0.0
      %1853 = vmatpush.xpose.msra.mxu0 0.0
      %1854 = vmatpush.xpose.msra.mxu0 0.0
      %1855 = vmatpush.xpose.msra.mxu0 0.0
      %1856 = vmatpush.xpose.msra.mxu0 0.0
      %1857 = vmatpush.xpose.msra.mxu0 0.0
      %1858 = vmatpush.xpose.msra.mxu0 0.0
      %1859 = vmatpush.xpose.msra.mxu0 0.0
      %1860 = vmatpush.xpose.msra.mxu0 %v419
      %1861 = vmatmul.f32.gmra.mxu0 %v1743
      %v1862 = vpop.f32.mrf.mxu0
      %v1863 = vadd.f32 %v1843, %v1862
      %1864 = vdwg.mxu0
      %1865 = vmatpush.xpose.msra.mxu0 0.0
      %1866 = vmatpush.xpose.msra.mxu0 0.0
      %1867 = vmatpush.xpose.msra.mxu0 0.0
      %1868 = vmatpush.xpose.msra.mxu0 0.0
      %1869 = vmatpush.xpose.msra.mxu0 0.0
      %1870 = vmatpush.xpose.msra.mxu0 0.0
      %1871 = vmatpush.xpose.msra.mxu0 0.0
      %1872 = vmatpush.xpose.msra.mxu0 0.0
      %1873 = vmatpush.xpose.msra.mxu0 0.0
      %1874 = vmatpush.xpose.msra.mxu0 0.0
      %1875 = vmatpush.xpose.msra.mxu0 0.0
      %1876 = vmatpush.xpose.msra.mxu0 0.0
      %1877 = vmatpush.xpose.msra.mxu0 0.0
      %1878 = vmatpush.xpose.msra.mxu0 0.0
      %1879 = vmatpush.xpose.msra.mxu0 0.0
      %1880 = vmatpush.xpose.msra.mxu0 %v420
      %1881 = vmatmul.f32.gmra.mxu0 %v1744
      %v1882 = vpop.f32.mrf.mxu0
      %v1883 = vadd.f32 %v1863, %v1882
      %1884 = vdwg.mxu0
      %1885 = vmatpush.xpose.msra.mxu0 0.0
      %1886 = vmatpush.xpose.msra.mxu0 0.0
      %1887 = vmatpush.xpose.msra.mxu0 0.0
      %1888 = vmatpush.xpose.msra.mxu0 0.0
      %1889 = vmatpush.xpose.msra.mxu0 0.0
      %1890 = vmatpush.xpose.msra.mxu0 0.0
      %1891 = vmatpush.xpose.msra.mxu0 0.0
      %1892 = vmatpush.xpose.msra.mxu0 0.0
      %1893 = vmatpush.xpose.msra.mxu0 0.0
      %1894 = vmatpush.xpose.msra.mxu0 0.0
      %1895 = vmatpush.xpose.msra.mxu0 0.0
      %1896 = vmatpush.xpose.msra.mxu0 0.0
      %1897 = vmatpush.xpose.msra.mxu0 0.0
      %1898 = vmatpush.xpose.msra.mxu0 0.0
      %1899 = vmatpush.xpose.msra.mxu0 0.0
      %1900 = vmatpush.xpose.msra.mxu0 %v421
      %1901 = vmatmul.f32.gmra.mxu0 %v1745
      %v1902 = vpop.f32.mrf.mxu0
      %v1903 = vadd.f32 %v1883, %v1902
      %1904 = vdwg.mxu0
      %1905 = vmatpush.xpose.msra.mxu0 0.0
      %1906 = vmatpush.xpose.msra.mxu0 0.0
      %1907 = vmatpush.xpose.msra.mxu0 0.0
      %1908 = vmatpush.xpose.msra.mxu0 0.0
      %1909 = vmatpush.xpose.msra.mxu0 0.0
      %1910 = vmatpush.xpose.msra.mxu0 0.0
      %1911 = vmatpush.xpose.msra.mxu0 0.0
      %1912 = vmatpush.xpose.msra.mxu0 0.0
      %1913 = vmatpush.xpose.msra.mxu0 0.0
      %1914 = vmatpush.xpose.msra.mxu0 0.0
      %1915 = vmatpush.xpose.msra.mxu0 0.0
      %1916 = vmatpush.xpose.msra.mxu0 0.0
      %1917 = vmatpush.xpose.msra.mxu0 0.0
      %1918 = vmatpush.xpose.msra.mxu0 0.0
      %1919 = vmatpush.xpose.msra.mxu0 0.0
      %1920 = vmatpush.xpose.msra.mxu0 %v422
      %1921 = vmatmul.f32.gmra.mxu0 %v1746
      %v1922 = vpop.f32.mrf.mxu0
      %v1923 = vadd.f32 %v1903, %v1922
      %1924 = vdwg.mxu0
      %1925 = vmatpush.xpose.msra.mxu0 0.0
      %1926 = vmatpush.xpose.msra.mxu0 0.0
      %1927 = vmatpush.xpose.msra.mxu0 0.0
      %1928 = vmatpush.xpose.msra.mxu0 0.0
      %1929 = vmatpush.xpose.msra.mxu0 0.0
      %1930 = vmatpush.xpose.msra.mxu0 0.0
      %1931 = vmatpush.xpose.msra.mxu0 0.0
      %1932 = vmatpush.xpose.msra.mxu0 0.0
      %1933 = vmatpush.xpose.msra.mxu0 0.0
      %1934 = vmatpush.xpose.msra.mxu0 0.0
      %1935 = vmatpush.xpose.msra.mxu0 0.0
      %1936 = vmatpush.xpose.msra.mxu0 0.0
      %1937 = vmatpush.xpose.msra.mxu0 0.0
      %1938 = vmatpush.xpose.msra.mxu0 0.0
      %1939 = vmatpush.xpose.msra.mxu0 0.0
      %1940 = vmatpush.xpose.msra.mxu0 %v423
      %1941 = vmatmul.f32.gmra.mxu0 %v1747
      %v1942 = vpop.f32.mrf.mxu0
      %v1943 = vadd.f32 %v1923, %v1942
      %1944 = vdwg.mxu0
      %1945 = vmatpush.xpose.msra.mxu0 0.0
      %1946 = vmatpush.xpose.msra.mxu0 0.0
      %1947 = vmatpush.xpose.msra.mxu0 0.0
      %1948 = vmatpush.xpose.msra.mxu0 0.0
      %1949 = vmatpush.xpose.msra.mxu0 0.0
      %1950 = vmatpush.xpose.msra.mxu0 0.0
      %1951 = vmatpush.xpose.msra.mxu0 0.0
      %1952 = vmatpush.xpose.msra.mxu0 0.0
      %1953 = vmatpush.xpose.msra.mxu0 0.0
      %1954 = vmatpush.xpose.msra.mxu0 0.0
      %1955 = vmatpush.xpose.msra.mxu0 0.0
      %1956 = vmatpush.xpose.msra.mxu0 0.0
      %1957 = vmatpush.xpose.msra.mxu0 0.0
      %1958 = vmatpush.xpose.msra.mxu0 0.0
      %1959 = vmatpush.xpose.msra.mxu0 0.0
      %1960 = vmatpush.xpose.msra.mxu0 %v424
      %1961 = vmatmul.f32.gmra.mxu0 %v1748
      %v1962 = vpop.f32.mrf.mxu0
      %v1963 = vadd.f32 %v1943, %v1962
      %1964 = vdwg.mxu0
      %1965 = vmatpush.xpose.msra.mxu0 0.0
      %1966 = vmatpush.xpose.msra.mxu0 0.0
      %1967 = vmatpush.xpose.msra.mxu0 0.0
      %1968 = vmatpush.xpose.msra.mxu0 0.0
      %1969 = vmatpush.xpose.msra.mxu0 0.0
      %1970 = vmatpush.xpose.msra.mxu0 0.0
      %1971 = vmatpush.xpose.msra.mxu0 0.0
      %1972 = vmatpush.xpose.msra.mxu0 0.0
      %1973 = vmatpush.xpose.msra.mxu0 0.0
      %1974 = vmatpush.xpose.msra.mxu0 0.0
      %1975 = vmatpush.xpose.msra.mxu0 0.0
      %1976 = vmatpush.xpose.msra.mxu0 0.0
      %1977 = vmatpush.xpose.msra.mxu0 0.0
      %1978 = vmatpush.xpose.msra.mxu0 0.0
      %1979 = vmatpush.xpose.msra.mxu0 0.0
      %1980 = vmatpush.xpose.msra.mxu0 %v425
      %1981 = vmatmul.f32.gmra.mxu0 %v1749
      %v1982 = vpop.f32.mrf.mxu0
      %v1983 = vadd.f32 %v1963, %v1982
      %1984 = vdwg.mxu0
      %1985 = vmatpush.xpose.msra.mxu0 0.0
      %1986 = vmatpush.xpose.msra.mxu0 0.0
      %1987 = vmatpush.xpose.msra.mxu0 0.0
      %1988 = vmatpush.xpose.msra.mxu0 0.0
      %1989 = vmatpush.xpose.msra.mxu0 0.0
      %1990 = vmatpush.xpose.msra.mxu0 0.0
      %1991 = vmatpush.xpose.msra.mxu0 0.0
      %1992 = vmatpush.xpose.msra.mxu0 0.0
      %1993 = vmatpush.xpose.msra.mxu0 0.0
      %1994 = vmatpush.xpose.msra.mxu0 0.0
      %1995 = vmatpush.xpose.msra.mxu0 0.0
      %1996 = vmatpush.xpose.msra.mxu0 0.0
      %1997 = vmatpush.xpose.msra.mxu0 0.0
      %1998 = vmatpush.xpose.msra.mxu0 0.0
      %1999 = vmatpush.xpose.msra.mxu0 0.0
      %2000 = vmatpush.xpose.msra.mxu0 %v426
      %2001 = vmatmul.f32.gmra.mxu0 %v1750
      %v2002 = vpop.f32.mrf.mxu0
      %v2003 = vadd.f32 %v1983, %v2002
      %2004 = vdwg.mxu0
      %2005 = vmatpush.xpose.msra.mxu0 0.0
      %2006 = vmatpush.xpose.msra.mxu0 0.0
      %2007 = vmatpush.xpose.msra.mxu0 0.0
      %2008 = vmatpush.xpose.msra.mxu0 0.0
      %2009 = vmatpush.xpose.msra.mxu0 0.0
      %2010 = vmatpush.xpose.msra.mxu0 0.0
      %2011 = vmatpush.xpose.msra.mxu0 0.0
      %2012 = vmatpush.xpose.msra.mxu0 0.0
      %2013 = vmatpush.xpose.msra.mxu0 0.0
      %2014 = vmatpush.xpose.msra.mxu0 0.0
      %2015 = vmatpush.xpose.msra.mxu0 0.0
      %2016 = vmatpush.xpose.msra.mxu0 0.0
      %2017 = vmatpush.xpose.msra.mxu0 0.0
      %2018 = vmatpush.xpose.msra.mxu0 0.0
      %2019 = vmatpush.xpose.msra.mxu0 0.0
      %2020 = vmatpush.xpose.msra.mxu0 %v427
      %2021 = vmatmul.f32.gmra.mxu0 %v1751
      %v2022 = vpop.f32.mrf.mxu0
      %v2023 = vadd.f32 %v2003, %v2022
      %2024 = vdwg.mxu0
      %2025 = vmatpush.xpose.msra.mxu0 0.0
      %2026 = vmatpush.xpose.msra.mxu0 0.0
      %2027 = vmatpush.xpose.msra.mxu0 0.0
      %2028 = vmatpush.xpose.msra.mxu0 0.0
      %2029 = vmatpush.xpose.msra.mxu0 0.0
      %2030 = vmatpush.xpose.msra.mxu0 0.0
      %2031 = vmatpush.xpose.msra.mxu0 0.0
      %2032 = vmatpush.xpose.msra.mxu0 0.0
      %2033 = vmatpush.xpose.msra.mxu0 0.0
      %2034 = vmatpush.xpose.msra.mxu0 0.0
      %2035 = vmatpush.xpose.msra.mxu0 0.0
      %2036 = vmatpush.xpose.msra.mxu0 0.0
      %2037 = vmatpush.xpose.msra.mxu0 0.0
      %2038 = vmatpush.xpose.msra.mxu0 0.0
      %2039 = vmatpush.xpose.msra.mxu0 0.0
      %2040 = vmatpush.xpose.msra.mxu0 %v428
      %2041 = vmatmul.f32.gmra.mxu0 %v1752
      %v2042 = vpop.f32.mrf.mxu0
      %v2043 = vadd.f32 %v2023, %v2042
      %2044 = vdwg.mxu0
      %2045 = vmatpush.xpose.msra.mxu0 0.0
      %2046 = vmatpush.xpose.msra.mxu0 0.0
      %2047 = vmatpush.xpose.msra.mxu0 0.0
      %2048 = vmatpush.xpose.msra.mxu0 0.0
      %2049 = vmatpush.xpose.msra.mxu0 0.0
      %2050 = vmatpush.xpose.msra.mxu0 0.0
      %2051 = vmatpush.xpose.msra.mxu0 0.0
      %2052 = vmatpush.xpose.msra.mxu0 0.0
      %2053 = vmatpush.xpose.msra.mxu0 0.0
      %2054 = vmatpush.xpose.msra.mxu0 0.0
      %2055 = vmatpush.xpose.msra.mxu0 0.0
      %2056 = vmatpush.xpose.msra.mxu0 0.0
      %2057 = vmatpush.xpose.msra.mxu0 0.0
      %2058 = vmatpush.xpose.msra.mxu0 0.0
      %2059 = vmatpush.xpose.msra.mxu0 0.0
      %2060 = vmatpush.xpose.msra.mxu0 %v429
      %2061 = vmatmul.f32.gmra.mxu0 %v1753
      %v2062 = vpop.f32.mrf.mxu0
      %v2063 = vadd.f32 %v2043, %v2062
      %2064 = vdwg.mxu0
      %2065 = vmatpush.xpose.msra.mxu0 0.0
      %2066 = vmatpush.xpose.msra.mxu0 0.0
      %2067 = vmatpush.xpose.msra.mxu0 0.0
      %2068 = vmatpush.xpose.msra.mxu0 0.0
      %2069 = vmatpush.xpose.msra.mxu0 0.0
      %2070 = vmatpush.xpose.msra.mxu0 0.0
      %2071 = vmatpush.xpose.msra.mxu0 0.0
      %2072 = vmatpush.xpose.msra.mxu0 0.0
      %2073 = vmatpush.xpose.msra.mxu0 0.0
      %2074 = vmatpush.xpose.msra.mxu0 0.0
      %2075 = vmatpush.xpose.msra.mxu0 0.0
      %2076 = vmatpush.xpose.msra.mxu0 0.0
      %2077 = vmatpush.xpose.msra.mxu0 0.0
      %2078 = vmatpush.xpose.msra.mxu0 0.0
      %2079 = vmatpush.xpose.msra.mxu0 0.0
      %2080 = vmatpush.xpose.msra.mxu0 %v430
      %2081 = vmatmul.f32.gmra.mxu0 %v1754
      %v2082 = vpop.f32.mrf.mxu0
      %v2083 = vadd.f32 %v2063, %v2082
      %2084 = vdwg.mxu0
      %2085 = vmatpush.xpose.msra.mxu0 0.0
      %2086 = vmatpush.xpose.msra.mxu0 0.0
      %2087 = vmatpush.xpose.msra.mxu0 0.0
      %2088 = vmatpush.xpose.msra.mxu0 0.0
      %2089 = vmatpush.xpose.msra.mxu0 0.0
      %2090 = vmatpush.xpose.msra.mxu0 0.0
      %2091 = vmatpush.xpose.msra.mxu0 0.0
      %2092 = vmatpush.xpose.msra.mxu0 0.0
      %2093 = vmatpush.xpose.msra.mxu0 0.0
      %2094 = vmatpush.xpose.msra.mxu0 0.0
      %2095 = vmatpush.xpose.msra.mxu0 0.0
      %2096 = vmatpush.xpose.msra.mxu0 0.0
      %2097 = vmatpush.xpose.msra.mxu0 0.0
      %2098 = vmatpush.xpose.msra.mxu0 0.0
      %2099 = vmatpush.xpose.msra.mxu0 0.0
      %2100 = vmatpush.xpose.msra.mxu0 %v431
      %2101 = vmatmul.f32.gmra.mxu0 %v1755
      %v2102 = vpop.f32.mrf.mxu0
      %v2103 = vadd.f32 %v2083, %v2102
      %2104 = vdwg.mxu0
      %2105 = vmatpush.xpose.msra.mxu0 0.0
      %2106 = vmatpush.xpose.msra.mxu0 0.0
      %2107 = vmatpush.xpose.msra.mxu0 0.0
      %2108 = vmatpush.xpose.msra.mxu0 0.0
      %2109 = vmatpush.xpose.msra.mxu0 0.0
      %2110 = vmatpush.xpose.msra.mxu0 0.0
      %2111 = vmatpush.xpose.msra.mxu0 0.0
      %2112 = vmatpush.xpose.msra.mxu0 0.0
      %2113 = vmatpush.xpose.msra.mxu0 0.0
      %2114 = vmatpush.xpose.msra.mxu0 0.0
      %2115 = vmatpush.xpose.msra.mxu0 0.0
      %2116 = vmatpush.xpose.msra.mxu0 0.0
      %2117 = vmatpush.xpose.msra.mxu0 0.0
      %2118 = vmatpush.xpose.msra.mxu0 0.0
      %2119 = vmatpush.xpose.msra.mxu0 0.0
      %2120 = vmatpush.xpose.msra.mxu0 %v432
      %2121 = vmatmul.f32.gmra.mxu0 %v1756
      %v2122 = vpop.f32.mrf.mxu0
      %v2123 = vadd.f32 %v2103, %v2122
      %2124 = vdwg.mxu0
      %2125 = vmatpush.xpose.msra.mxu0 0.0
      %2126 = vmatpush.xpose.msra.mxu0 0.0
      %2127 = vmatpush.xpose.msra.mxu0 0.0
      %2128 = vmatpush.xpose.msra.mxu0 0.0
      %2129 = vmatpush.xpose.msra.mxu0 0.0
      %2130 = vmatpush.xpose.msra.mxu0 0.0
      %2131 = vmatpush.xpose.msra.mxu0 0.0
      %2132 = vmatpush.xpose.msra.mxu0 0.0
      %2133 = vmatpush.xpose.msra.mxu0 0.0
      %2134 = vmatpush.xpose.msra.mxu0 0.0
      %2135 = vmatpush.xpose.msra.mxu0 0.0
      %2136 = vmatpush.xpose.msra.mxu0 0.0
      %2137 = vmatpush.xpose.msra.mxu0 0.0
      %2138 = vmatpush.xpose.msra.mxu0 0.0
      %2139 = vmatpush.xpose.msra.mxu0 0.0
      %2140 = vmatpush.xpose.msra.mxu0 %v433
      %2141 = vmatmul.f32.gmra.mxu0 %v1757
      %v2142 = vpop.f32.mrf.mxu0
      %v2143 = vadd.f32 %v2123, %v2142
      %2144 = vdwg.mxu0
      %2145 = vmatpush.xpose.msra.mxu0 0.0
      %2146 = vmatpush.xpose.msra.mxu0 0.0
      %2147 = vmatpush.xpose.msra.mxu0 0.0
      %2148 = vmatpush.xpose.msra.mxu0 0.0
      %2149 = vmatpush.xpose.msra.mxu0 0.0
      %2150 = vmatpush.xpose.msra.mxu0 0.0
      %2151 = vmatpush.xpose.msra.mxu0 0.0
      %2152 = vmatpush.xpose.msra.mxu0 0.0
      %2153 = vmatpush.xpose.msra.mxu0 0.0
      %2154 = vmatpush.xpose.msra.mxu0 0.0
      %2155 = vmatpush.xpose.msra.mxu0 0.0
      %2156 = vmatpush.xpose.msra.mxu0 0.0
      %2157 = vmatpush.xpose.msra.mxu0 0.0
      %2158 = vmatpush.xpose.msra.mxu0 0.0
      %2159 = vmatpush.xpose.msra.mxu0 0.0
      %2160 = vmatpush.xpose.msra.mxu0 %v434
      %2161 = vmatmul.f32.gmra.mxu0 %v1758
      %v2162 = vpop.f32.mrf.mxu0
      %v2163 = vadd.f32 %v2143, %v2162
      %2164 = vdwg.mxu0
      %2165 = vmatpush.xpose.msra.mxu0 0.0
      %2166 = vmatpush.xpose.msra.mxu0 0.0
      %2167 = vmatpush.xpose.msra.mxu0 0.0
      %2168 = vmatpush.xpose.msra.mxu0 0.0
      %2169 = vmatpush.xpose.msra.mxu0 0.0
      %2170 = vmatpush.xpose.msra.mxu0 0.0
      %2171 = vmatpush.xpose.msra.mxu0 0.0
      %2172 = vmatpush.xpose.msra.mxu0 0.0
      %2173 = vmatpush.xpose.msra.mxu0 0.0
      %2174 = vmatpush.xpose.msra.mxu0 0.0
      %2175 = vmatpush.xpose.msra.mxu0 0.0
      %2176 = vmatpush.xpose.msra.mxu0 0.0
      %2177 = vmatpush.xpose.msra.mxu0 0.0
      %2178 = vmatpush.xpose.msra.mxu0 0.0
      %2179 = vmatpush.xpose.msra.mxu0 0.0
      %2180 = vmatpush.xpose.msra.mxu0 %v435
      %2181 = vmatmul.f32.gmra.mxu0 %v1759
      %v2182 = vpop.f32.mrf.mxu0
      %v2183 = vadd.f32 %v2163, %v2182
      %2184 = vdwg.mxu0
      %2185 = vmatpush.xpose.msra.mxu0 0.0
      %2186 = vmatpush.xpose.msra.mxu0 0.0
      %2187 = vmatpush.xpose.msra.mxu0 0.0
      %2188 = vmatpush.xpose.msra.mxu0 0.0
      %2189 = vmatpush.xpose.msra.mxu0 0.0
      %2190 = vmatpush.xpose.msra.mxu0 0.0
      %2191 = vmatpush.xpose.msra.mxu0 0.0
      %2192 = vmatpush.xpose.msra.mxu0 0.0
      %2193 = vmatpush.xpose.msra.mxu0 0.0
      %2194 = vmatpush.xpose.msra.mxu0 0.0
      %2195 = vmatpush.xpose.msra.mxu0 0.0
      %2196 = vmatpush.xpose.msra.mxu0 0.0
      %2197 = vmatpush.xpose.msra.mxu0 0.0
      %2198 = vmatpush.xpose.msra.mxu0 0.0
      %2199 = vmatpush.xpose.msra.mxu0 0.0
      %2200 = vmatpush.xpose.msra.mxu0 %v436
      %2201 = vmatmul.f32.gmra.mxu0 %v1760
      %v2202 = vpop.f32.mrf.mxu0
      %v2203 = vadd.f32 %v2183, %v2202
      %2204 = vdwg.mxu0
      %2205 = vmatpush.xpose.msra.mxu0 0.0
      %2206 = vmatpush.xpose.msra.mxu0 0.0
      %2207 = vmatpush.xpose.msra.mxu0 0.0
      %2208 = vmatpush.xpose.msra.mxu0 0.0
      %2209 = vmatpush.xpose.msra.mxu0 0.0
      %2210 = vmatpush.xpose.msra.mxu0 0.0
      %2211 = vmatpush.xpose.msra.mxu0 0.0
      %2212 = vmatpush.xpose.msra.mxu0 0.0
      %2213 = vmatpush.xpose.msra.mxu0 0.0
      %2214 = vmatpush.xpose.msra.mxu0 0.0
      %2215 = vmatpush.xpose.msra.mxu0 0.0
      %2216 = vmatpush.xpose.msra.mxu0 0.0
      %2217 = vmatpush.xpose.msra.mxu0 0.0
      %2218 = vmatpush.xpose.msra.mxu0 0.0
      %2219 = vmatpush.xpose.msra.mxu0 0.0
      %2220 = vmatpush.xpose.msra.mxu0 %v437
      %2221 = vmatmul.f32.gmra.mxu0 %v1761
      %v2222 = vpop.f32.mrf.mxu0
      %v2223 = vadd.f32 %v2203, %v2222
      %2224 = vdwg.mxu0
      %2225 = vmatpush.xpose.msra.mxu0 0.0
      %2226 = vmatpush.xpose.msra.mxu0 0.0
      %2227 = vmatpush.xpose.msra.mxu0 0.0
      %2228 = vmatpush.xpose.msra.mxu0 0.0
      %2229 = vmatpush.xpose.msra.mxu0 0.0
      %2230 = vmatpush.xpose.msra.mxu0 0.0
      %2231 = vmatpush.xpose.msra.mxu0 0.0
      %2232 = vmatpush.xpose.msra.mxu0 0.0
      %2233 = vmatpush.xpose.msra.mxu0 0.0
      %2234 = vmatpush.xpose.msra.mxu0 0.0
      %2235 = vmatpush.xpose.msra.mxu0 0.0
      %2236 = vmatpush.xpose.msra.mxu0 0.0
      %2237 = vmatpush.xpose.msra.mxu0 0.0
      %2238 = vmatpush.xpose.msra.mxu0 0.0
      %2239 = vmatpush.xpose.msra.mxu0 0.0
      %2240 = vmatpush.xpose.msra.mxu0 %v438
      %2241 = vmatmul.f32.gmra.mxu0 %v1762
      %v2242 = vpop.f32.mrf.mxu0
      %v2243 = vadd.f32 %v2223, %v2242
      %2244 = vdwg.mxu0
      %2245 = vmatpush.xpose.msra.mxu0 0.0
      %2246 = vmatpush.xpose.msra.mxu0 0.0
      %2247 = vmatpush.xpose.msra.mxu0 0.0
      %2248 = vmatpush.xpose.msra.mxu0 0.0
      %2249 = vmatpush.xpose.msra.mxu0 0.0
      %2250 = vmatpush.xpose.msra.mxu0 0.0
      %2251 = vmatpush.xpose.msra.mxu0 0.0
      %2252 = vmatpush.xpose.msra.mxu0 0.0
      %2253 = vmatpush.xpose.msra.mxu0 0.0
      %2254 = vmatpush.xpose.msra.mxu0 0.0
      %2255 = vmatpush.xpose.msra.mxu0 0.0
      %2256 = vmatpush.xpose.msra.mxu0 0.0
      %2257 = vmatpush.xpose.msra.mxu0 0.0
      %2258 = vmatpush.xpose.msra.mxu0 0.0
      %2259 = vmatpush.xpose.msra.mxu0 0.0
      %2260 = vmatpush.xpose.msra.mxu0 %v439
      %2261 = vmatmul.f32.gmra.mxu0 %v1763
      %v2262 = vpop.f32.mrf.mxu0
      %v2263 = vadd.f32 %v2243, %v2262
      %2264 = vdwg.mxu0
      %2265 = vmatpush.xpose.msra.mxu0 0.0
      %2266 = vmatpush.xpose.msra.mxu0 0.0
      %2267 = vmatpush.xpose.msra.mxu0 0.0
      %2268 = vmatpush.xpose.msra.mxu0 0.0
      %2269 = vmatpush.xpose.msra.mxu0 0.0
      %2270 = vmatpush.xpose.msra.mxu0 0.0
      %2271 = vmatpush.xpose.msra.mxu0 0.0
      %2272 = vmatpush.xpose.msra.mxu0 0.0
      %2273 = vmatpush.xpose.msra.mxu0 0.0
      %2274 = vmatpush.xpose.msra.mxu0 0.0
      %2275 = vmatpush.xpose.msra.mxu0 0.0
      %2276 = vmatpush.xpose.msra.mxu0 0.0
      %2277 = vmatpush.xpose.msra.mxu0 0.0
      %2278 = vmatpush.xpose.msra.mxu0 0.0
      %2279 = vmatpush.xpose.msra.mxu0 0.0
      %2280 = vmatpush.xpose.msra.mxu0 %v440
      %2281 = vmatmul.f32.gmra.mxu0 %v1764
      %v2282 = vpop.f32.mrf.mxu0
      %v2283 = vadd.f32 %v2263, %v2282
      %2284 = vdwg.mxu0
      %2285 = vmatpush.xpose.msra.mxu0 0.0
      %2286 = vmatpush.xpose.msra.mxu0 0.0
      %2287 = vmatpush.xpose.msra.mxu0 0.0
      %2288 = vmatpush.xpose.msra.mxu0 0.0
      %2289 = vmatpush.xpose.msra.mxu0 0.0
      %2290 = vmatpush.xpose.msra.mxu0 0.0
      %2291 = vmatpush.xpose.msra.mxu0 0.0
      %2292 = vmatpush.xpose.msra.mxu0 0.0
      %2293 = vmatpush.xpose.msra.mxu0 0.0
      %2294 = vmatpush.xpose.msra.mxu0 0.0
      %2295 = vmatpush.xpose.msra.mxu0 0.0
      %2296 = vmatpush.xpose.msra.mxu0 0.0
      %2297 = vmatpush.xpose.msra.mxu0 0.0
      %2298 = vmatpush.xpose.msra.mxu0 0.0
      %2299 = vmatpush.xpose.msra.mxu0 0.0
      %2300 = vmatpush.xpose.msra.mxu0 %v441
      %2301 = vmatmul.f32.gmra.mxu0 %v1765
      %v2302 = vpop.f32.mrf.mxu0
      %v2303 = vadd.f32 %v2283, %v2302
      %2304 = vdwg.mxu0
      %2305 = vmatpush.xpose.msra.mxu0 0.0
      %2306 = vmatpush.xpose.msra.mxu0 0.0
      %2307 = vmatpush.xpose.msra.mxu0 0.0
      %2308 = vmatpush.xpose.msra.mxu0 0.0
      %2309 = vmatpush.xpose.msra.mxu0 0.0
      %2310 = vmatpush.xpose.msra.mxu0 0.0
      %2311 = vmatpush.xpose.msra.mxu0 0.0
      %2312 = vmatpush.xpose.msra.mxu0 0.0
      %2313 = vmatpush.xpose.msra.mxu0 0.0
      %2314 = vmatpush.xpose.msra.mxu0 0.0
      %2315 = vmatpush.xpose.msra.mxu0 0.0
      %2316 = vmatpush.xpose.msra.mxu0 0.0
      %2317 = vmatpush.xpose.msra.mxu0 0.0
      %2318 = vmatpush.xpose.msra.mxu0 0.0
      %2319 = vmatpush.xpose.msra.mxu0 0.0
      %2320 = vmatpush.xpose.msra.mxu0 %v442
      %2321 = vmatmul.f32.gmra.mxu0 %v1766
      %v2322 = vpop.f32.mrf.mxu0
      %v2323 = vadd.f32 %v2303, %v2322
      %2324 = vdwg.mxu0
      %2325 = vmatpush.xpose.msra.mxu0 0.0
      %2326 = vmatpush.xpose.msra.mxu0 0.0
      %2327 = vmatpush.xpose.msra.mxu0 0.0
      %2328 = vmatpush.xpose.msra.mxu0 0.0
      %2329 = vmatpush.xpose.msra.mxu0 0.0
      %2330 = vmatpush.xpose.msra.mxu0 0.0
      %2331 = vmatpush.xpose.msra.mxu0 0.0
      %2332 = vmatpush.xpose.msra.mxu0 0.0
      %2333 = vmatpush.xpose.msra.mxu0 0.0
      %2334 = vmatpush.xpose.msra.mxu0 0.0
      %2335 = vmatpush.xpose.msra.mxu0 0.0
      %2336 = vmatpush.xpose.msra.mxu0 0.0
      %2337 = vmatpush.xpose.msra.mxu0 0.0
      %2338 = vmatpush.xpose.msra.mxu0 0.0
      %2339 = vmatpush.xpose.msra.mxu0 0.0
      %2340 = vmatpush.xpose.msra.mxu0 %v443
      %2341 = vmatmul.f32.gmra.mxu0 %v1767
      %v2342 = vpop.f32.mrf.mxu0
      %v2343 = vadd.f32 %v2323, %v2342
      %2344 = vdwg.mxu0
      %2345 = vmatpush.xpose.msra.mxu0 0.0
      %2346 = vmatpush.xpose.msra.mxu0 0.0
      %2347 = vmatpush.xpose.msra.mxu0 0.0
      %2348 = vmatpush.xpose.msra.mxu0 0.0
      %2349 = vmatpush.xpose.msra.mxu0 0.0
      %2350 = vmatpush.xpose.msra.mxu0 0.0
      %2351 = vmatpush.xpose.msra.mxu0 0.0
      %2352 = vmatpush.xpose.msra.mxu0 0.0
      %2353 = vmatpush.xpose.msra.mxu0 0.0
      %2354 = vmatpush.xpose.msra.mxu0 0.0
      %2355 = vmatpush.xpose.msra.mxu0 0.0
      %2356 = vmatpush.xpose.msra.mxu0 0.0
      %2357 = vmatpush.xpose.msra.mxu0 0.0
      %2358 = vmatpush.xpose.msra.mxu0 0.0
      %2359 = vmatpush.xpose.msra.mxu0 0.0
      %2360 = vmatpush.xpose.msra.mxu0 %v444
      %2361 = vmatmul.f32.gmra.mxu0 %v1768
      %v2362 = vpop.f32.mrf.mxu0
      %v2363 = vadd.f32 %v2343, %v2362
      %2364 = vdwg.mxu0
      %2365 = vmatpush.xpose.msra.mxu0 0.0
      %2366 = vmatpush.xpose.msra.mxu0 0.0
      %2367 = vmatpush.xpose.msra.mxu0 0.0
      %2368 = vmatpush.xpose.msra.mxu0 0.0
      %2369 = vmatpush.xpose.msra.mxu0 0.0
      %2370 = vmatpush.xpose.msra.mxu0 0.0
      %2371 = vmatpush.xpose.msra.mxu0 0.0
      %2372 = vmatpush.xpose.msra.mxu0 0.0
      %2373 = vmatpush.xpose.msra.mxu0 0.0
      %2374 = vmatpush.xpose.msra.mxu0 0.0
      %2375 = vmatpush.xpose.msra.mxu0 0.0
      %2376 = vmatpush.xpose.msra.mxu0 0.0
      %2377 = vmatpush.xpose.msra.mxu0 0.0
      %2378 = vmatpush.xpose.msra.mxu0 0.0
      %2379 = vmatpush.xpose.msra.mxu0 0.0
      %2380 = vmatpush.xpose.msra.mxu0 %v445
      %2381 = vmatmul.f32.gmra.mxu0 %v1769
      %v2382 = vpop.f32.mrf.mxu0
      %v2383 = vadd.f32 %v2363, %v2382
      %2384 = vdwg.mxu0
      %2385 = vmatpush.xpose.msra.mxu0 0.0
      %2386 = vmatpush.xpose.msra.mxu0 0.0
      %2387 = vmatpush.xpose.msra.mxu0 0.0
      %2388 = vmatpush.xpose.msra.mxu0 0.0
      %2389 = vmatpush.xpose.msra.mxu0 0.0
      %2390 = vmatpush.xpose.msra.mxu0 0.0
      %2391 = vmatpush.xpose.msra.mxu0 0.0
      %2392 = vmatpush.xpose.msra.mxu0 0.0
      %2393 = vmatpush.xpose.msra.mxu0 0.0
      %2394 = vmatpush.xpose.msra.mxu0 0.0
      %2395 = vmatpush.xpose.msra.mxu0 0.0
      %2396 = vmatpush.xpose.msra.mxu0 0.0
      %2397 = vmatpush.xpose.msra.mxu0 0.0
      %2398 = vmatpush.xpose.msra.mxu0 0.0
      %2399 = vmatpush.xpose.msra.mxu0 0.0
      %2400 = vmatpush.xpose.msra.mxu0 %v446
      %2401 = vmatmul.f32.gmra.mxu0 %v1770
      %v2402 = vpop.f32.mrf.mxu0
      %v2403 = vadd.f32 %v2383, %v2402
      %2404 = vdwg.mxu0
      %2405 = vmatpush.xpose.msra.mxu0 0.0
      %2406 = vmatpush.xpose.msra.mxu0 0.0
      %2407 = vmatpush.xpose.msra.mxu0 0.0
      %2408 = vmatpush.xpose.msra.mxu0 0.0
      %2409 = vmatpush.xpose.msra.mxu0 0.0
      %2410 = vmatpush.xpose.msra.mxu0 0.0
      %2411 = vmatpush.xpose.msra.mxu0 0.0
      %2412 = vmatpush.xpose.msra.mxu0 0.0
      %2413 = vmatpush.xpose.msra.mxu0 0.0
      %2414 = vmatpush.xpose.msra.mxu0 0.0
      %2415 = vmatpush.xpose.msra.mxu0 0.0
      %2416 = vmatpush.xpose.msra.mxu0 0.0
      %2417 = vmatpush.xpose.msra.mxu0 0.0
      %2418 = vmatpush.xpose.msra.mxu0 0.0
      %2419 = vmatpush.xpose.msra.mxu0 0.0
      %2420 = vmatpush.xpose.msra.mxu0 %v447
      %2421 = vmatmul.f32.gmra.mxu0 %v1771
      %v2422 = vpop.f32.mrf.mxu0
      %v2423 = vadd.f32 %v2403, %v2422
      %2424 = vdwg.mxu0
      %2425 = vmatpush.xpose.msra.mxu0 0.0
      %2426 = vmatpush.xpose.msra.mxu0 0.0
      %2427 = vmatpush.xpose.msra.mxu0 0.0
      %2428 = vmatpush.xpose.msra.mxu0 0.0
      %2429 = vmatpush.xpose.msra.mxu0 0.0
      %2430 = vmatpush.xpose.msra.mxu0 0.0
      %2431 = vmatpush.xpose.msra.mxu0 0.0
      %2432 = vmatpush.xpose.msra.mxu0 0.0
      %2433 = vmatpush.xpose.msra.mxu0 0.0
      %2434 = vmatpush.xpose.msra.mxu0 0.0
      %2435 = vmatpush.xpose.msra.mxu0 0.0
      %2436 = vmatpush.xpose.msra.mxu0 0.0
      %2437 = vmatpush.xpose.msra.mxu0 0.0
      %2438 = vmatpush.xpose.msra.mxu0 0.0
      %2439 = vmatpush.xpose.msra.mxu0 0.0
      %2440 = vmatpush.xpose.msra.mxu0 %v448
      %2441 = vmatmul.f32.gmra.mxu0 %v1772
      %v2442 = vpop.f32.mrf.mxu0
      %v2443 = vadd.f32 %v2423, %v2442
      %2444 = vdwg.mxu0
      %v2445 = vrcp.pop %v2443
      %v2446 = vmul.f32 %v2443, %v2445
      %v2447 = vsub.f32 1.0, %v2446
      %v2448 = vmul.f32 %v2445, %v2447
      %v2449 = vadd.f32 %v2445, %v2448
      %vm2450 = vweird.f32 %v2443
      %vm2451 = vweird.f32 %v2445
      %vm2452 = vmor %vm2450, %vm2451
      %v2453 = vsel %vm2452, %v2445, %v2449
      %v2454 = vand.u32 2147483647, %v2443
      %vm2455 = vcmp.eq.f32.partialorder %v2454, 8.507059e+37
      %v2456 = vand.u32 %v2443, 2147483648
      %v2457 = vor.u32 1.1754944e-38, %v2456
      %v2458 = vsel %vm2455, %v2457, %v2453
      %v2459 = vperm.slane %v2458, 0
      %v2460 = vmul.f32 %v1095, %v2459
      %v2461 = vmul.f32 %v1735, %v2459
      %vm2462 = vcmask 64512
      %v2464 = vsel %vm2462, %v2460, 0
      %2466 = vmatpush.msra.mxu0 0.0
      %2467 = vmatpush.msra.mxu0 0.0
      %2468 = vmatpush.msra.mxu0 0.0
      %2469 = vmatpush.msra.mxu0 0.0
      %2470 = vmatpush.msra.mxu0 0.0
      %2471 = vmatpush.msra.mxu0 0.0
      %2472 = vmatpush.msra.mxu0 0.0
      %2473 = vmatpush.msra.mxu0 0.0
      %2474 = vmatpush.msra.mxu0 0.0
      %2475 = vmatpush.msra.mxu0 0.0
      %2476 = vmatpush.msra.mxu0 0.0
      %2477 = vmatpush.msra.mxu0 0.0
      %2478 = vmatpush.msra.mxu0 0.0
      %2479 = vmatpush.msra.mxu0 0.0
      %2480 = vmatpush.msra.mxu0 0.0
      %2481 = vmatpush.msra.mxu0 %v417
      %2482 = vmatmul.f32.gmra.mxu0 %v2464
      %v2483 = vpop.f32.mrf.mxu0
      %v2484 = vadd.f32 0.0, %v2483
      %2485 = vdwg.mxu0
      %2486 = vmatpush.msra.mxu0 0.0
      %2487 = vmatpush.msra.mxu0 0.0
      %2488 = vmatpush.msra.mxu0 0.0
      %2489 = vmatpush.msra.mxu0 0.0
      %2490 = vmatpush.msra.mxu0 0.0
      %2491 = vmatpush.msra.mxu0 0.0
      %2492 = vmatpush.msra.mxu0 0.0
      %2493 = vmatpush.msra.mxu0 0.0
      %2494 = vmatpush.msra.mxu0 0.0
      %2495 = vmatpush.msra.mxu0 0.0
      %2496 = vmatpush.msra.mxu0 0.0
      %2497 = vmatpush.msra.mxu0 0.0
      %2498 = vmatpush.msra.mxu0 0.0
      %2499 = vmatpush.msra.mxu0 0.0
      %2500 = vmatpush.msra.mxu0 0.0
      %2501 = vmatpush.msra.mxu0 %v418
      %2502 = vmatmul.f32.gmra.mxu0 %v2464
      %v2503 = vpop.f32.mrf.mxu0
      %v2504 = vadd.f32 0.0, %v2503
      %2505 = vdwg.mxu0
      %2506 = vmatpush.msra.mxu0 0.0
      %2507 = vmatpush.msra.mxu0 0.0
      %2508 = vmatpush.msra.mxu0 0.0
      %2509 = vmatpush.msra.mxu0 0.0
      %2510 = vmatpush.msra.mxu0 0.0
      %2511 = vmatpush.msra.mxu0 0.0
      %2512 = vmatpush.msra.mxu0 0.0
      %2513 = vmatpush.msra.mxu0 0.0
      %2514 = vmatpush.msra.mxu0 0.0
      %2515 = vmatpush.msra.mxu0 0.0
      %2516 = vmatpush.msra.mxu0 0.0
      %2517 = vmatpush.msra.mxu0 0.0
      %2518 = vmatpush.msra.mxu0 0.0
      %2519 = vmatpush.msra.mxu0 0.0
      %2520 = vmatpush.msra.mxu0 0.0
      %2521 = vmatpush.msra.mxu0 %v419
      %2522 = vmatmul.f32.gmra.mxu0 %v2464
      %v2523 = vpop.f32.mrf.mxu0
      %v2524 = vadd.f32 0.0, %v2523
      %2525 = vdwg.mxu0
      %2526 = vmatpush.msra.mxu0 0.0
      %2527 = vmatpush.msra.mxu0 0.0
      %2528 = vmatpush.msra.mxu0 0.0
      %2529 = vmatpush.msra.mxu0 0.0
      %2530 = vmatpush.msra.mxu0 0.0
      %2531 = vmatpush.msra.mxu0 0.0
      %2532 = vmatpush.msra.mxu0 0.0
      %2533 = vmatpush.msra.mxu0 0.0
      %2534 = vmatpush.msra.mxu0 0.0
      %2535 = vmatpush.msra.mxu0 0.0
      %2536 = vmatpush.msra.mxu0 0.0
      %2537 = vmatpush.msra.mxu0 0.0
      %2538 = vmatpush.msra.mxu0 0.0
      %2539 = vmatpush.msra.mxu0 0.0
      %2540 = vmatpush.msra.mxu0 0.0
      %2541 = vmatpush.msra.mxu0 %v420
      %2542 = vmatmul.f32.gmra.mxu0 %v2464
      %v2543 = vpop.f32.mrf.mxu0
      %v2544 = vadd.f32 0.0, %v2543
      %2545 = vdwg.mxu0
      %2546 = vmatpush.msra.mxu0 0.0
      %2547 = vmatpush.msra.mxu0 0.0
      %2548 = vmatpush.msra.mxu0 0.0
      %2549 = vmatpush.msra.mxu0 0.0
      %2550 = vmatpush.msra.mxu0 0.0
      %2551 = vmatpush.msra.mxu0 0.0
      %2552 = vmatpush.msra.mxu0 0.0
      %2553 = vmatpush.msra.mxu0 0.0
      %2554 = vmatpush.msra.mxu0 0.0
      %2555 = vmatpush.msra.mxu0 0.0
      %2556 = vmatpush.msra.mxu0 0.0
      %2557 = vmatpush.msra.mxu0 0.0
      %2558 = vmatpush.msra.mxu0 0.0
      %2559 = vmatpush.msra.mxu0 0.0
      %2560 = vmatpush.msra.mxu0 0.0
      %2561 = vmatpush.msra.mxu0 %v421
      %2562 = vmatmul.f32.gmra.mxu0 %v2464
      %v2563 = vpop.f32.mrf.mxu0
      %v2564 = vadd.f32 0.0, %v2563
      %2565 = vdwg.mxu0
      %2566 = vmatpush.msra.mxu0 0.0
      %2567 = vmatpush.msra.mxu0 0.0
      %2568 = vmatpush.msra.mxu0 0.0
      %2569 = vmatpush.msra.mxu0 0.0
      %2570 = vmatpush.msra.mxu0 0.0
      %2571 = vmatpush.msra.mxu0 0.0
      %2572 = vmatpush.msra.mxu0 0.0
      %2573 = vmatpush.msra.mxu0 0.0
      %2574 = vmatpush.msra.mxu0 0.0
      %2575 = vmatpush.msra.mxu0 0.0
      %2576 = vmatpush.msra.mxu0 0.0
      %2577 = vmatpush.msra.mxu0 0.0
      %2578 = vmatpush.msra.mxu0 0.0
      %2579 = vmatpush.msra.mxu0 0.0
      %2580 = vmatpush.msra.mxu0 0.0
      %2581 = vmatpush.msra.mxu0 %v422
      %2582 = vmatmul.f32.gmra.mxu0 %v2464
      %v2583 = vpop.f32.mrf.mxu0
      %v2584 = vadd.f32 0.0, %v2583
      %2585 = vdwg.mxu0
      %2586 = vmatpush.msra.mxu0 0.0
      %2587 = vmatpush.msra.mxu0 0.0
      %2588 = vmatpush.msra.mxu0 0.0
      %2589 = vmatpush.msra.mxu0 0.0
      %2590 = vmatpush.msra.mxu0 0.0
      %2591 = vmatpush.msra.mxu0 0.0
      %2592 = vmatpush.msra.mxu0 0.0
      %2593 = vmatpush.msra.mxu0 0.0
      %2594 = vmatpush.msra.mxu0 0.0
      %2595 = vmatpush.msra.mxu0 0.0
      %2596 = vmatpush.msra.mxu0 0.0
      %2597 = vmatpush.msra.mxu0 0.0
      %2598 = vmatpush.msra.mxu0 0.0
      %2599 = vmatpush.msra.mxu0 0.0
      %2600 = vmatpush.msra.mxu0 0.0
      %2601 = vmatpush.msra.mxu0 %v423
      %2602 = vmatmul.f32.gmra.mxu0 %v2464
      %v2603 = vpop.f32.mrf.mxu0
      %v2604 = vadd.f32 0.0, %v2603
      %2605 = vdwg.mxu0
      %2606 = vmatpush.msra.mxu0 0.0
      %2607 = vmatpush.msra.mxu0 0.0
      %2608 = vmatpush.msra.mxu0 0.0
      %2609 = vmatpush.msra.mxu0 0.0
      %2610 = vmatpush.msra.mxu0 0.0
      %2611 = vmatpush.msra.mxu0 0.0
      %2612 = vmatpush.msra.mxu0 0.0
      %2613 = vmatpush.msra.mxu0 0.0
      %2614 = vmatpush.msra.mxu0 0.0
      %2615 = vmatpush.msra.mxu0 0.0
      %2616 = vmatpush.msra.mxu0 0.0
      %2617 = vmatpush.msra.mxu0 0.0
      %2618 = vmatpush.msra.mxu0 0.0
      %2619 = vmatpush.msra.mxu0 0.0
      %2620 = vmatpush.msra.mxu0 0.0
      %2621 = vmatpush.msra.mxu0 %v424
      %2622 = vmatmul.f32.gmra.mxu0 %v2464
      %v2623 = vpop.f32.mrf.mxu0
      %v2624 = vadd.f32 0.0, %v2623
      %2625 = vdwg.mxu0
      %2626 = vmatpush.msra.mxu0 0.0
      %2627 = vmatpush.msra.mxu0 0.0
      %2628 = vmatpush.msra.mxu0 0.0
      %2629 = vmatpush.msra.mxu0 0.0
      %2630 = vmatpush.msra.mxu0 0.0
      %2631 = vmatpush.msra.mxu0 0.0
      %2632 = vmatpush.msra.mxu0 0.0
      %2633 = vmatpush.msra.mxu0 0.0
      %2634 = vmatpush.msra.mxu0 0.0
      %2635 = vmatpush.msra.mxu0 0.0
      %2636 = vmatpush.msra.mxu0 0.0
      %2637 = vmatpush.msra.mxu0 0.0
      %2638 = vmatpush.msra.mxu0 0.0
      %2639 = vmatpush.msra.mxu0 0.0
      %2640 = vmatpush.msra.mxu0 0.0
      %2641 = vmatpush.msra.mxu0 %v425
      %2642 = vmatmul.f32.gmra.mxu0 %v2464
      %v2643 = vpop.f32.mrf.mxu0
      %v2644 = vadd.f32 0.0, %v2643
      %2645 = vdwg.mxu0
      %2646 = vmatpush.msra.mxu0 0.0
      %2647 = vmatpush.msra.mxu0 0.0
      %2648 = vmatpush.msra.mxu0 0.0
      %2649 = vmatpush.msra.mxu0 0.0
      %2650 = vmatpush.msra.mxu0 0.0
      %2651 = vmatpush.msra.mxu0 0.0
      %2652 = vmatpush.msra.mxu0 0.0
      %2653 = vmatpush.msra.mxu0 0.0
      %2654 = vmatpush.msra.mxu0 0.0
      %2655 = vmatpush.msra.mxu0 0.0
      %2656 = vmatpush.msra.mxu0 0.0
      %2657 = vmatpush.msra.mxu0 0.0
      %2658 = vmatpush.msra.mxu0 0.0
      %2659 = vmatpush.msra.mxu0 0.0
      %2660 = vmatpush.msra.mxu0 0.0
      %2661 = vmatpush.msra.mxu0 %v426
      %2662 = vmatmul.f32.gmra.mxu0 %v2464
      %v2663 = vpop.f32.mrf.mxu0
      %v2664 = vadd.f32 0.0, %v2663
      %2665 = vdwg.mxu0
      %2666 = vmatpush.msra.mxu0 0.0
      %2667 = vmatpush.msra.mxu0 0.0
      %2668 = vmatpush.msra.mxu0 0.0
      %2669 = vmatpush.msra.mxu0 0.0
      %2670 = vmatpush.msra.mxu0 0.0
      %2671 = vmatpush.msra.mxu0 0.0
      %2672 = vmatpush.msra.mxu0 0.0
      %2673 = vmatpush.msra.mxu0 0.0
      %2674 = vmatpush.msra.mxu0 0.0
      %2675 = vmatpush.msra.mxu0 0.0
      %2676 = vmatpush.msra.mxu0 0.0
      %2677 = vmatpush.msra.mxu0 0.0
      %2678 = vmatpush.msra.mxu0 0.0
      %2679 = vmatpush.msra.mxu0 0.0
      %2680 = vmatpush.msra.mxu0 0.0
      %2681 = vmatpush.msra.mxu0 %v427
      %2682 = vmatmul.f32.gmra.mxu0 %v2464
      %v2683 = vpop.f32.mrf.mxu0
      %v2684 = vadd.f32 0.0, %v2683
      %2685 = vdwg.mxu0
      %2686 = vmatpush.msra.mxu0 0.0
      %2687 = vmatpush.msra.mxu0 0.0
      %2688 = vmatpush.msra.mxu0 0.0
      %2689 = vmatpush.msra.mxu0 0.0
      %2690 = vmatpush.msra.mxu0 0.0
      %2691 = vmatpush.msra.mxu0 0.0
      %2692 = vmatpush.msra.mxu0 0.0
      %2693 = vmatpush.msra.mxu0 0.0
      %2694 = vmatpush.msra.mxu0 0.0
      %2695 = vmatpush.msra.mxu0 0.0
      %2696 = vmatpush.msra.mxu0 0.0
      %2697 = vmatpush.msra.mxu0 0.0
      %2698 = vmatpush.msra.mxu0 0.0
      %2699 = vmatpush.msra.mxu0 0.0
      %2700 = vmatpush.msra.mxu0 0.0
      %2701 = vmatpush.msra.mxu0 %v428
      %2702 = vmatmul.f32.gmra.mxu0 %v2464
      %v2703 = vpop.f32.mrf.mxu0
      %v2704 = vadd.f32 0.0, %v2703
      %2705 = vdwg.mxu0
      %2706 = vmatpush.msra.mxu0 0.0
      %2707 = vmatpush.msra.mxu0 0.0
      %2708 = vmatpush.msra.mxu0 0.0
      %2709 = vmatpush.msra.mxu0 0.0
      %2710 = vmatpush.msra.mxu0 0.0
      %2711 = vmatpush.msra.mxu0 0.0
      %2712 = vmatpush.msra.mxu0 0.0
      %2713 = vmatpush.msra.mxu0 0.0
      %2714 = vmatpush.msra.mxu0 0.0
      %2715 = vmatpush.msra.mxu0 0.0
      %2716 = vmatpush.msra.mxu0 0.0
      %2717 = vmatpush.msra.mxu0 0.0
      %2718 = vmatpush.msra.mxu0 0.0
      %2719 = vmatpush.msra.mxu0 0.0
      %2720 = vmatpush.msra.mxu0 0.0
      %2721 = vmatpush.msra.mxu0 %v429
      %2722 = vmatmul.f32.gmra.mxu0 %v2464
      %v2723 = vpop.f32.mrf.mxu0
      %v2724 = vadd.f32 0.0, %v2723
      %2725 = vdwg.mxu0
      %2726 = vmatpush.msra.mxu0 0.0
      %2727 = vmatpush.msra.mxu0 0.0
      %2728 = vmatpush.msra.mxu0 0.0
      %2729 = vmatpush.msra.mxu0 0.0
      %2730 = vmatpush.msra.mxu0 0.0
      %2731 = vmatpush.msra.mxu0 0.0
      %2732 = vmatpush.msra.mxu0 0.0
      %2733 = vmatpush.msra.mxu0 0.0
      %2734 = vmatpush.msra.mxu0 0.0
      %2735 = vmatpush.msra.mxu0 0.0
      %2736 = vmatpush.msra.mxu0 0.0
      %2737 = vmatpush.msra.mxu0 0.0
      %2738 = vmatpush.msra.mxu0 0.0
      %2739 = vmatpush.msra.mxu0 0.0
      %2740 = vmatpush.msra.mxu0 0.0
      %2741 = vmatpush.msra.mxu0 %v430
      %2742 = vmatmul.f32.gmra.mxu0 %v2464
      %v2743 = vpop.f32.mrf.mxu0
      %v2744 = vadd.f32 0.0, %v2743
      %2745 = vdwg.mxu0
      %2746 = vmatpush.msra.mxu0 0.0
      %2747 = vmatpush.msra.mxu0 0.0
      %2748 = vmatpush.msra.mxu0 0.0
      %2749 = vmatpush.msra.mxu0 0.0
      %2750 = vmatpush.msra.mxu0 0.0
      %2751 = vmatpush.msra.mxu0 0.0
      %2752 = vmatpush.msra.mxu0 0.0
      %2753 = vmatpush.msra.mxu0 0.0
      %2754 = vmatpush.msra.mxu0 0.0
      %2755 = vmatpush.msra.mxu0 0.0
      %2756 = vmatpush.msra.mxu0 0.0
      %2757 = vmatpush.msra.mxu0 0.0
      %2758 = vmatpush.msra.mxu0 0.0
      %2759 = vmatpush.msra.mxu0 0.0
      %2760 = vmatpush.msra.mxu0 0.0
      %2761 = vmatpush.msra.mxu0 %v431
      %2762 = vmatmul.f32.gmra.mxu0 %v2464
      %v2763 = vpop.f32.mrf.mxu0
      %v2764 = vadd.f32 0.0, %v2763
      %2765 = vdwg.mxu0
      %2766 = vmatpush.msra.mxu0 0.0
      %2767 = vmatpush.msra.mxu0 0.0
      %2768 = vmatpush.msra.mxu0 0.0
      %2769 = vmatpush.msra.mxu0 0.0
      %2770 = vmatpush.msra.mxu0 0.0
      %2771 = vmatpush.msra.mxu0 0.0
      %2772 = vmatpush.msra.mxu0 0.0
      %2773 = vmatpush.msra.mxu0 0.0
      %2774 = vmatpush.msra.mxu0 0.0
      %2775 = vmatpush.msra.mxu0 0.0
      %2776 = vmatpush.msra.mxu0 0.0
      %2777 = vmatpush.msra.mxu0 0.0
      %2778 = vmatpush.msra.mxu0 0.0
      %2779 = vmatpush.msra.mxu0 0.0
      %2780 = vmatpush.msra.mxu0 0.0
      %2781 = vmatpush.msra.mxu0 %v432
      %2782 = vmatmul.f32.gmra.mxu0 %v2464
      %v2783 = vpop.f32.mrf.mxu0
      %v2784 = vadd.f32 0.0, %v2783
      %2785 = vdwg.mxu0
      %2786 = vmatpush.msra.mxu0 0.0
      %2787 = vmatpush.msra.mxu0 0.0
      %2788 = vmatpush.msra.mxu0 0.0
      %2789 = vmatpush.msra.mxu0 0.0
      %2790 = vmatpush.msra.mxu0 0.0
      %2791 = vmatpush.msra.mxu0 0.0
      %2792 = vmatpush.msra.mxu0 0.0
      %2793 = vmatpush.msra.mxu0 0.0
      %2794 = vmatpush.msra.mxu0 0.0
      %2795 = vmatpush.msra.mxu0 0.0
      %2796 = vmatpush.msra.mxu0 0.0
      %2797 = vmatpush.msra.mxu0 0.0
      %2798 = vmatpush.msra.mxu0 0.0
      %2799 = vmatpush.msra.mxu0 0.0
      %2800 = vmatpush.msra.mxu0 0.0
      %2801 = vmatpush.msra.mxu0 %v433
      %2802 = vmatmul.f32.gmra.mxu0 %v2464
      %v2803 = vpop.f32.mrf.mxu0
      %v2804 = vadd.f32 0.0, %v2803
      %2805 = vdwg.mxu0
      %2806 = vmatpush.msra.mxu0 0.0
      %2807 = vmatpush.msra.mxu0 0.0
      %2808 = vmatpush.msra.mxu0 0.0
      %2809 = vmatpush.msra.mxu0 0.0
      %2810 = vmatpush.msra.mxu0 0.0
      %2811 = vmatpush.msra.mxu0 0.0
      %2812 = vmatpush.msra.mxu0 0.0
      %2813 = vmatpush.msra.mxu0 0.0
      %2814 = vmatpush.msra.mxu0 0.0
      %2815 = vmatpush.msra.mxu0 0.0
      %2816 = vmatpush.msra.mxu0 0.0
      %2817 = vmatpush.msra.mxu0 0.0
      %2818 = vmatpush.msra.mxu0 0.0
      %2819 = vmatpush.msra.mxu0 0.0
      %2820 = vmatpush.msra.mxu0 0.0
      %2821 = vmatpush.msra.mxu0 %v434
      %2822 = vmatmul.f32.gmra.mxu0 %v2464
      %v2823 = vpop.f32.mrf.mxu0
      %v2824 = vadd.f32 0.0, %v2823
      %2825 = vdwg.mxu0
      %2826 = vmatpush.msra.mxu0 0.0
      %2827 = vmatpush.msra.mxu0 0.0
      %2828 = vmatpush.msra.mxu0 0.0
      %2829 = vmatpush.msra.mxu0 0.0
      %2830 = vmatpush.msra.mxu0 0.0
      %2831 = vmatpush.msra.mxu0 0.0
      %2832 = vmatpush.msra.mxu0 0.0
      %2833 = vmatpush.msra.mxu0 0.0
      %2834 = vmatpush.msra.mxu0 0.0
      %2835 = vmatpush.msra.mxu0 0.0
      %2836 = vmatpush.msra.mxu0 0.0
      %2837 = vmatpush.msra.mxu0 0.0
      %2838 = vmatpush.msra.mxu0 0.0
      %2839 = vmatpush.msra.mxu0 0.0
      %2840 = vmatpush.msra.mxu0 0.0
      %2841 = vmatpush.msra.mxu0 %v435
      %2842 = vmatmul.f32.gmra.mxu0 %v2464
      %v2843 = vpop.f32.mrf.mxu0
      %v2844 = vadd.f32 0.0, %v2843
      %2845 = vdwg.mxu0
      %2846 = vmatpush.msra.mxu0 0.0
      %2847 = vmatpush.msra.mxu0 0.0
      %2848 = vmatpush.msra.mxu0 0.0
      %2849 = vmatpush.msra.mxu0 0.0
      %2850 = vmatpush.msra.mxu0 0.0
      %2851 = vmatpush.msra.mxu0 0.0
      %2852 = vmatpush.msra.mxu0 0.0
      %2853 = vmatpush.msra.mxu0 0.0
      %2854 = vmatpush.msra.mxu0 0.0
      %2855 = vmatpush.msra.mxu0 0.0
      %2856 = vmatpush.msra.mxu0 0.0
      %2857 = vmatpush.msra.mxu0 0.0
      %2858 = vmatpush.msra.mxu0 0.0
      %2859 = vmatpush.msra.mxu0 0.0
      %2860 = vmatpush.msra.mxu0 0.0
      %2861 = vmatpush.msra.mxu0 %v436
      %2862 = vmatmul.f32.gmra.mxu0 %v2464
      %v2863 = vpop.f32.mrf.mxu0
      %v2864 = vadd.f32 0.0, %v2863
      %2865 = vdwg.mxu0
      %2866 = vmatpush.msra.mxu0 0.0
      %2867 = vmatpush.msra.mxu0 0.0
      %2868 = vmatpush.msra.mxu0 0.0
      %2869 = vmatpush.msra.mxu0 0.0
      %2870 = vmatpush.msra.mxu0 0.0
      %2871 = vmatpush.msra.mxu0 0.0
      %2872 = vmatpush.msra.mxu0 0.0
      %2873 = vmatpush.msra.mxu0 0.0
      %2874 = vmatpush.msra.mxu0 0.0
      %2875 = vmatpush.msra.mxu0 0.0
      %2876 = vmatpush.msra.mxu0 0.0
      %2877 = vmatpush.msra.mxu0 0.0
      %2878 = vmatpush.msra.mxu0 0.0
      %2879 = vmatpush.msra.mxu0 0.0
      %2880 = vmatpush.msra.mxu0 0.0
      %2881 = vmatpush.msra.mxu0 %v437
      %2882 = vmatmul.f32.gmra.mxu0 %v2464
      %v2883 = vpop.f32.mrf.mxu0
      %v2884 = vadd.f32 0.0, %v2883
      %2885 = vdwg.mxu0
      %2886 = vmatpush.msra.mxu0 0.0
      %2887 = vmatpush.msra.mxu0 0.0
      %2888 = vmatpush.msra.mxu0 0.0
      %2889 = vmatpush.msra.mxu0 0.0
      %2890 = vmatpush.msra.mxu0 0.0
      %2891 = vmatpush.msra.mxu0 0.0
      %2892 = vmatpush.msra.mxu0 0.0
      %2893 = vmatpush.msra.mxu0 0.0
      %2894 = vmatpush.msra.mxu0 0.0
      %2895 = vmatpush.msra.mxu0 0.0
      %2896 = vmatpush.msra.mxu0 0.0
      %2897 = vmatpush.msra.mxu0 0.0
      %2898 = vmatpush.msra.mxu0 0.0
      %2899 = vmatpush.msra.mxu0 0.0
      %2900 = vmatpush.msra.mxu0 0.0
      %2901 = vmatpush.msra.mxu0 %v438
      %2902 = vmatmul.f32.gmra.mxu0 %v2464
      %v2903 = vpop.f32.mrf.mxu0
      %v2904 = vadd.f32 0.0, %v2903
      %2905 = vdwg.mxu0
      %2906 = vmatpush.msra.mxu0 0.0
      %2907 = vmatpush.msra.mxu0 0.0
      %2908 = vmatpush.msra.mxu0 0.0
      %2909 = vmatpush.msra.mxu0 0.0
      %2910 = vmatpush.msra.mxu0 0.0
      %2911 = vmatpush.msra.mxu0 0.0
      %2912 = vmatpush.msra.mxu0 0.0
      %2913 = vmatpush.msra.mxu0 0.0
      %2914 = vmatpush.msra.mxu0 0.0
      %2915 = vmatpush.msra.mxu0 0.0
      %2916 = vmatpush.msra.mxu0 0.0
      %2917 = vmatpush.msra.mxu0 0.0
      %2918 = vmatpush.msra.mxu0 0.0
      %2919 = vmatpush.msra.mxu0 0.0
      %2920 = vmatpush.msra.mxu0 0.0
      %2921 = vmatpush.msra.mxu0 %v439
      %2922 = vmatmul.f32.gmra.mxu0 %v2464
      %v2923 = vpop.f32.mrf.mxu0
      %v2924 = vadd.f32 0.0, %v2923
      %2925 = vdwg.mxu0
      %2926 = vmatpush.msra.mxu0 0.0
      %2927 = vmatpush.msra.mxu0 0.0
      %2928 = vmatpush.msra.mxu0 0.0
      %2929 = vmatpush.msra.mxu0 0.0
      %2930 = vmatpush.msra.mxu0 0.0
      %2931 = vmatpush.msra.mxu0 0.0
      %2932 = vmatpush.msra.mxu0 0.0
      %2933 = vmatpush.msra.mxu0 0.0
      %2934 = vmatpush.msra.mxu0 0.0
      %2935 = vmatpush.msra.mxu0 0.0
      %2936 = vmatpush.msra.mxu0 0.0
      %2937 = vmatpush.msra.mxu0 0.0
      %2938 = vmatpush.msra.mxu0 0.0
      %2939 = vmatpush.msra.mxu0 0.0
      %2940 = vmatpush.msra.mxu0 0.0
      %2941 = vmatpush.msra.mxu0 %v440
      %2942 = vmatmul.f32.gmra.mxu0 %v2464
      %v2943 = vpop.f32.mrf.mxu0
      %v2944 = vadd.f32 0.0, %v2943
      %2945 = vdwg.mxu0
      %2946 = vmatpush.msra.mxu0 0.0
      %2947 = vmatpush.msra.mxu0 0.0
      %2948 = vmatpush.msra.mxu0 0.0
      %2949 = vmatpush.msra.mxu0 0.0
      %2950 = vmatpush.msra.mxu0 0.0
      %2951 = vmatpush.msra.mxu0 0.0
      %2952 = vmatpush.msra.mxu0 0.0
      %2953 = vmatpush.msra.mxu0 0.0
      %2954 = vmatpush.msra.mxu0 0.0
      %2955 = vmatpush.msra.mxu0 0.0
      %2956 = vmatpush.msra.mxu0 0.0
      %2957 = vmatpush.msra.mxu0 0.0
      %2958 = vmatpush.msra.mxu0 0.0
      %2959 = vmatpush.msra.mxu0 0.0
      %2960 = vmatpush.msra.mxu0 0.0
      %2961 = vmatpush.msra.mxu0 %v441
      %2962 = vmatmul.f32.gmra.mxu0 %v2464
      %v2963 = vpop.f32.mrf.mxu0
      %v2964 = vadd.f32 0.0, %v2963
      %2965 = vdwg.mxu0
      %2966 = vmatpush.msra.mxu0 0.0
      %2967 = vmatpush.msra.mxu0 0.0
      %2968 = vmatpush.msra.mxu0 0.0
      %2969 = vmatpush.msra.mxu0 0.0
      %2970 = vmatpush.msra.mxu0 0.0
      %2971 = vmatpush.msra.mxu0 0.0
      %2972 = vmatpush.msra.mxu0 0.0
      %2973 = vmatpush.msra.mxu0 0.0
      %2974 = vmatpush.msra.mxu0 0.0
      %2975 = vmatpush.msra.mxu0 0.0
      %2976 = vmatpush.msra.mxu0 0.0
      %2977 = vmatpush.msra.mxu0 0.0
      %2978 = vmatpush.msra.mxu0 0.0
      %2979 = vmatpush.msra.mxu0 0.0
      %2980 = vmatpush.msra.mxu0 0.0
      %2981 = vmatpush.msra.mxu0 %v442
      %2982 = vmatmul.f32.gmra.mxu0 %v2464
      %v2983 = vpop.f32.mrf.mxu0
      %v2984 = vadd.f32 0.0, %v2983
      %2985 = vdwg.mxu0
      %2986 = vmatpush.msra.mxu0 0.0
      %2987 = vmatpush.msra.mxu0 0.0
      %2988 = vmatpush.msra.mxu0 0.0
      %2989 = vmatpush.msra.mxu0 0.0
      %2990 = vmatpush.msra.mxu0 0.0
      %2991 = vmatpush.msra.mxu0 0.0
      %2992 = vmatpush.msra.mxu0 0.0
      %2993 = vmatpush.msra.mxu0 0.0
      %2994 = vmatpush.msra.mxu0 0.0
      %2995 = vmatpush.msra.mxu0 0.0
      %2996 = vmatpush.msra.mxu0 0.0
      %2997 = vmatpush.msra.mxu0 0.0
      %2998 = vmatpush.msra.mxu0 0.0
      %2999 = vmatpush.msra.mxu0 0.0
      %3000 = vmatpush.msra.mxu0 0.0
      %3001 = vmatpush.msra.mxu0 %v443
      %3002 = vmatmul.f32.gmra.mxu0 %v2464
      %v3003 = vpop.f32.mrf.mxu0
      %v3004 = vadd.f32 0.0, %v3003
      %3005 = vdwg.mxu0
      %3006 = vmatpush.msra.mxu0 0.0
      %3007 = vmatpush.msra.mxu0 0.0
      %3008 = vmatpush.msra.mxu0 0.0
      %3009 = vmatpush.msra.mxu0 0.0
      %3010 = vmatpush.msra.mxu0 0.0
      %3011 = vmatpush.msra.mxu0 0.0
      %3012 = vmatpush.msra.mxu0 0.0
      %3013 = vmatpush.msra.mxu0 0.0
      %3014 = vmatpush.msra.mxu0 0.0
      %3015 = vmatpush.msra.mxu0 0.0
      %3016 = vmatpush.msra.mxu0 0.0
      %3017 = vmatpush.msra.mxu0 0.0
      %3018 = vmatpush.msra.mxu0 0.0
      %3019 = vmatpush.msra.mxu0 0.0
      %3020 = vmatpush.msra.mxu0 0.0
      %3021 = vmatpush.msra.mxu0 %v444
      %3022 = vmatmul.f32.gmra.mxu0 %v2464
      %v3023 = vpop.f32.mrf.mxu0
      %v3024 = vadd.f32 0.0, %v3023
      %3025 = vdwg.mxu0
      %3026 = vmatpush.msra.mxu0 0.0
      %3027 = vmatpush.msra.mxu0 0.0
      %3028 = vmatpush.msra.mxu0 0.0
      %3029 = vmatpush.msra.mxu0 0.0
      %3030 = vmatpush.msra.mxu0 0.0
      %3031 = vmatpush.msra.mxu0 0.0
      %3032 = vmatpush.msra.mxu0 0.0
      %3033 = vmatpush.msra.mxu0 0.0
      %3034 = vmatpush.msra.mxu0 0.0
      %3035 = vmatpush.msra.mxu0 0.0
      %3036 = vmatpush.msra.mxu0 0.0
      %3037 = vmatpush.msra.mxu0 0.0
      %3038 = vmatpush.msra.mxu0 0.0
      %3039 = vmatpush.msra.mxu0 0.0
      %3040 = vmatpush.msra.mxu0 0.0
      %3041 = vmatpush.msra.mxu0 %v445
      %3042 = vmatmul.f32.gmra.mxu0 %v2464
      %v3043 = vpop.f32.mrf.mxu0
      %v3044 = vadd.f32 0.0, %v3043
      %3045 = vdwg.mxu0
      %3046 = vmatpush.msra.mxu0 0.0
      %3047 = vmatpush.msra.mxu0 0.0
      %3048 = vmatpush.msra.mxu0 0.0
      %3049 = vmatpush.msra.mxu0 0.0
      %3050 = vmatpush.msra.mxu0 0.0
      %3051 = vmatpush.msra.mxu0 0.0
      %3052 = vmatpush.msra.mxu0 0.0
      %3053 = vmatpush.msra.mxu0 0.0
      %3054 = vmatpush.msra.mxu0 0.0
      %3055 = vmatpush.msra.mxu0 0.0
      %3056 = vmatpush.msra.mxu0 0.0
      %3057 = vmatpush.msra.mxu0 0.0
      %3058 = vmatpush.msra.mxu0 0.0
      %3059 = vmatpush.msra.mxu0 0.0
      %3060 = vmatpush.msra.mxu0 0.0
      %3061 = vmatpush.msra.mxu0 %v446
      %3062 = vmatmul.f32.gmra.mxu0 %v2464
      %v3063 = vpop.f32.mrf.mxu0
      %v3064 = vadd.f32 0.0, %v3063
      %3065 = vdwg.mxu0
      %3066 = vmatpush.msra.mxu0 0.0
      %3067 = vmatpush.msra.mxu0 0.0
      %3068 = vmatpush.msra.mxu0 0.0
      %3069 = vmatpush.msra.mxu0 0.0
      %3070 = vmatpush.msra.mxu0 0.0
      %3071 = vmatpush.msra.mxu0 0.0
      %3072 = vmatpush.msra.mxu0 0.0
      %3073 = vmatpush.msra.mxu0 0.0
      %3074 = vmatpush.msra.mxu0 0.0
      %3075 = vmatpush.msra.mxu0 0.0
      %3076 = vmatpush.msra.mxu0 0.0
      %3077 = vmatpush.msra.mxu0 0.0
      %3078 = vmatpush.msra.mxu0 0.0
      %3079 = vmatpush.msra.mxu0 0.0
      %3080 = vmatpush.msra.mxu0 0.0
      %3081 = vmatpush.msra.mxu0 %v447
      %3082 = vmatmul.f32.gmra.mxu0 %v2464
      %v3083 = vpop.f32.mrf.mxu0
      %v3084 = vadd.f32 0.0, %v3083
      %3085 = vdwg.mxu0
      %3086 = vmatpush.msra.mxu0 0.0
      %3087 = vmatpush.msra.mxu0 0.0
      %3088 = vmatpush.msra.mxu0 0.0
      %3089 = vmatpush.msra.mxu0 0.0
      %3090 = vmatpush.msra.mxu0 0.0
      %3091 = vmatpush.msra.mxu0 0.0
      %3092 = vmatpush.msra.mxu0 0.0
      %3093 = vmatpush.msra.mxu0 0.0
      %3094 = vmatpush.msra.mxu0 0.0
      %3095 = vmatpush.msra.mxu0 0.0
      %3096 = vmatpush.msra.mxu0 0.0
      %3097 = vmatpush.msra.mxu0 0.0
      %3098 = vmatpush.msra.mxu0 0.0
      %3099 = vmatpush.msra.mxu0 0.0
      %3100 = vmatpush.msra.mxu0 0.0
      %3101 = vmatpush.msra.mxu0 %v448
      %3102 = vmatmul.f32.gmra.mxu0 %v2464
      %v3103 = vpop.f32.mrf.mxu0
      %v3104 = vadd.f32 0.0, %v3103
      %3105 = vdwg.mxu0
      %v3107 = vsel %vm2462, %v2461, 0
      %3109 = vmatpush.msra.mxu0 0.0
      %3110 = vmatpush.msra.mxu0 0.0
      %3111 = vmatpush.msra.mxu0 0.0
      %3112 = vmatpush.msra.mxu0 0.0
      %3113 = vmatpush.msra.mxu0 0.0
      %3114 = vmatpush.msra.mxu0 0.0
      %3115 = vmatpush.msra.mxu0 0.0
      %3116 = vmatpush.msra.mxu0 0.0
      %3117 = vmatpush.msra.mxu0 0.0
      %3118 = vmatpush.msra.mxu0 0.0
      %3119 = vmatpush.msra.mxu0 0.0
      %3120 = vmatpush.msra.mxu0 0.0
      %3121 = vmatpush.msra.mxu0 0.0
      %3122 = vmatpush.msra.mxu0 0.0
      %3123 = vmatpush.msra.mxu0 0.0
      %3124 = vmatpush.msra.mxu0 %v417
      %3125 = vmatmul.f32.gmra.mxu0 %v3107
      %v3126 = vpop.f32.mrf.mxu0
      %v3127 = vadd.f32 0.0, %v3126
      %3128 = vdwg.mxu0
      %3129 = vmatpush.msra.mxu0 0.0
      %3130 = vmatpush.msra.mxu0 0.0
      %3131 = vmatpush.msra.mxu0 0.0
      %3132 = vmatpush.msra.mxu0 0.0
      %3133 = vmatpush.msra.mxu0 0.0
      %3134 = vmatpush.msra.mxu0 0.0
      %3135 = vmatpush.msra.mxu0 0.0
      %3136 = vmatpush.msra.mxu0 0.0
      %3137 = vmatpush.msra.mxu0 0.0
      %3138 = vmatpush.msra.mxu0 0.0
      %3139 = vmatpush.msra.mxu0 0.0
      %3140 = vmatpush.msra.mxu0 0.0
      %3141 = vmatpush.msra.mxu0 0.0
      %3142 = vmatpush.msra.mxu0 0.0
      %3143 = vmatpush.msra.mxu0 0.0
      %3144 = vmatpush.msra.mxu0 %v418
      %3145 = vmatmul.f32.gmra.mxu0 %v3107
      %v3146 = vpop.f32.mrf.mxu0
      %v3147 = vadd.f32 0.0, %v3146
      %3148 = vdwg.mxu0
      %3149 = vmatpush.msra.mxu0 0.0
      %3150 = vmatpush.msra.mxu0 0.0
      %3151 = vmatpush.msra.mxu0 0.0
      %3152 = vmatpush.msra.mxu0 0.0
      %3153 = vmatpush.msra.mxu0 0.0
      %3154 = vmatpush.msra.mxu0 0.0
      %3155 = vmatpush.msra.mxu0 0.0
      %3156 = vmatpush.msra.mxu0 0.0
      %3157 = vmatpush.msra.mxu0 0.0
      %3158 = vmatpush.msra.mxu0 0.0
      %3159 = vmatpush.msra.mxu0 0.0
      %3160 = vmatpush.msra.mxu0 0.0
      %3161 = vmatpush.msra.mxu0 0.0
      %3162 = vmatpush.msra.mxu0 0.0
      %3163 = vmatpush.msra.mxu0 0.0
      %3164 = vmatpush.msra.mxu0 %v419
      %3165 = vmatmul.f32.gmra.mxu0 %v3107
      %v3166 = vpop.f32.mrf.mxu0
      %v3167 = vadd.f32 0.0, %v3166
      %3168 = vdwg.mxu0
      %3169 = vmatpush.msra.mxu0 0.0
      %3170 = vmatpush.msra.mxu0 0.0
      %3171 = vmatpush.msra.mxu0 0.0
      %3172 = vmatpush.msra.mxu0 0.0
      %3173 = vmatpush.msra.mxu0 0.0
      %3174 = vmatpush.msra.mxu0 0.0
      %3175 = vmatpush.msra.mxu0 0.0
      %3176 = vmatpush.msra.mxu0 0.0
      %3177 = vmatpush.msra.mxu0 0.0
      %3178 = vmatpush.msra.mxu0 0.0
      %3179 = vmatpush.msra.mxu0 0.0
      %3180 = vmatpush.msra.mxu0 0.0
      %3181 = vmatpush.msra.mxu0 0.0
      %3182 = vmatpush.msra.mxu0 0.0
      %3183 = vmatpush.msra.mxu0 0.0
      %3184 = vmatpush.msra.mxu0 %v420
      %3185 = vmatmul.f32.gmra.mxu0 %v3107
      %v3186 = vpop.f32.mrf.mxu0
      %v3187 = vadd.f32 0.0, %v3186
      %3188 = vdwg.mxu0
      %3189 = vmatpush.msra.mxu0 0.0
      %3190 = vmatpush.msra.mxu0 0.0
      %3191 = vmatpush.msra.mxu0 0.0
      %3192 = vmatpush.msra.mxu0 0.0
      %3193 = vmatpush.msra.mxu0 0.0
      %3194 = vmatpush.msra.mxu0 0.0
      %3195 = vmatpush.msra.mxu0 0.0
      %3196 = vmatpush.msra.mxu0 0.0
      %3197 = vmatpush.msra.mxu0 0.0
      %3198 = vmatpush.msra.mxu0 0.0
      %3199 = vmatpush.msra.mxu0 0.0
      %3200 = vmatpush.msra.mxu0 0.0
      %3201 = vmatpush.msra.mxu0 0.0
      %3202 = vmatpush.msra.mxu0 0.0
      %3203 = vmatpush.msra.mxu0 0.0
      %3204 = vmatpush.msra.mxu0 %v421
      %3205 = vmatmul.f32.gmra.mxu0 %v3107
      %v3206 = vpop.f32.mrf.mxu0
      %v3207 = vadd.f32 0.0, %v3206
      %3208 = vdwg.mxu0
      %3209 = vmatpush.msra.mxu0 0.0
      %3210 = vmatpush.msra.mxu0 0.0
      %3211 = vmatpush.msra.mxu0 0.0
      %3212 = vmatpush.msra.mxu0 0.0
      %3213 = vmatpush.msra.mxu0 0.0
      %3214 = vmatpush.msra.mxu0 0.0
      %3215 = vmatpush.msra.mxu0 0.0
      %3216 = vmatpush.msra.mxu0 0.0
      %3217 = vmatpush.msra.mxu0 0.0
      %3218 = vmatpush.msra.mxu0 0.0
      %3219 = vmatpush.msra.mxu0 0.0
      %3220 = vmatpush.msra.mxu0 0.0
      %3221 = vmatpush.msra.mxu0 0.0
      %3222 = vmatpush.msra.mxu0 0.0
      %3223 = vmatpush.msra.mxu0 0.0
      %3224 = vmatpush.msra.mxu0 %v422
      %3225 = vmatmul.f32.gmra.mxu0 %v3107
      %v3226 = vpop.f32.mrf.mxu0
      %v3227 = vadd.f32 0.0, %v3226
      %3228 = vdwg.mxu0
      %3229 = vmatpush.msra.mxu0 0.0
      %3230 = vmatpush.msra.mxu0 0.0
      %3231 = vmatpush.msra.mxu0 0.0
      %3232 = vmatpush.msra.mxu0 0.0
      %3233 = vmatpush.msra.mxu0 0.0
      %3234 = vmatpush.msra.mxu0 0.0
      %3235 = vmatpush.msra.mxu0 0.0
      %3236 = vmatpush.msra.mxu0 0.0
      %3237 = vmatpush.msra.mxu0 0.0
      %3238 = vmatpush.msra.mxu0 0.0
      %3239 = vmatpush.msra.mxu0 0.0
      %3240 = vmatpush.msra.mxu0 0.0
      %3241 = vmatpush.msra.mxu0 0.0
      %3242 = vmatpush.msra.mxu0 0.0
      %3243 = vmatpush.msra.mxu0 0.0
      %3244 = vmatpush.msra.mxu0 %v423
      %3245 = vmatmul.f32.gmra.mxu0 %v3107
      %v3246 = vpop.f32.mrf.mxu0
      %v3247 = vadd.f32 0.0, %v3246
      %3248 = vdwg.mxu0
      %3249 = vmatpush.msra.mxu0 0.0
      %3250 = vmatpush.msra.mxu0 0.0
      %3251 = vmatpush.msra.mxu0 0.0
      %3252 = vmatpush.msra.mxu0 0.0
      %3253 = vmatpush.msra.mxu0 0.0
      %3254 = vmatpush.msra.mxu0 0.0
      %3255 = vmatpush.msra.mxu0 0.0
      %3256 = vmatpush.msra.mxu0 0.0
      %3257 = vmatpush.msra.mxu0 0.0
      %3258 = vmatpush.msra.mxu0 0.0
      %3259 = vmatpush.msra.mxu0 0.0
      %3260 = vmatpush.msra.mxu0 0.0
      %3261 = vmatpush.msra.mxu0 0.0
      %3262 = vmatpush.msra.mxu0 0.0
      %3263 = vmatpush.msra.mxu0 0.0
      %3264 = vmatpush.msra.mxu0 %v424
      %3265 = vmatmul.f32.gmra.mxu0 %v3107
      %v3266 = vpop.f32.mrf.mxu0
      %v3267 = vadd.f32 0.0, %v3266
      %3268 = vdwg.mxu0
      %3269 = vmatpush.msra.mxu0 0.0
      %3270 = vmatpush.msra.mxu0 0.0
      %3271 = vmatpush.msra.mxu0 0.0
      %3272 = vmatpush.msra.mxu0 0.0
      %3273 = vmatpush.msra.mxu0 0.0
      %3274 = vmatpush.msra.mxu0 0.0
      %3275 = vmatpush.msra.mxu0 0.0
      %3276 = vmatpush.msra.mxu0 0.0
      %3277 = vmatpush.msra.mxu0 0.0
      %3278 = vmatpush.msra.mxu0 0.0
      %3279 = vmatpush.msra.mxu0 0.0
      %3280 = vmatpush.msra.mxu0 0.0
      %3281 = vmatpush.msra.mxu0 0.0
      %3282 = vmatpush.msra.mxu0 0.0
      %3283 = vmatpush.msra.mxu0 0.0
      %3284 = vmatpush.msra.mxu0 %v425
      %3285 = vmatmul.f32.gmra.mxu0 %v3107
      %v3286 = vpop.f32.mrf.mxu0
      %v3287 = vadd.f32 0.0, %v3286
      %3288 = vdwg.mxu0
      %3289 = vmatpush.msra.mxu0 0.0
      %3290 = vmatpush.msra.mxu0 0.0
      %3291 = vmatpush.msra.mxu0 0.0
      %3292 = vmatpush.msra.mxu0 0.0
      %3293 = vmatpush.msra.mxu0 0.0
      %3294 = vmatpush.msra.mxu0 0.0
      %3295 = vmatpush.msra.mxu0 0.0
      %3296 = vmatpush.msra.mxu0 0.0
      %3297 = vmatpush.msra.mxu0 0.0
      %3298 = vmatpush.msra.mxu0 0.0
      %3299 = vmatpush.msra.mxu0 0.0
      %3300 = vmatpush.msra.mxu0 0.0
      %3301 = vmatpush.msra.mxu0 0.0
      %3302 = vmatpush.msra.mxu0 0.0
      %3303 = vmatpush.msra.mxu0 0.0
      %3304 = vmatpush.msra.mxu0 %v426
      %3305 = vmatmul.f32.gmra.mxu0 %v3107
      %v3306 = vpop.f32.mrf.mxu0
      %v3307 = vadd.f32 0.0, %v3306
      %3308 = vdwg.mxu0
      %3309 = vmatpush.msra.mxu0 0.0
      %3310 = vmatpush.msra.mxu0 0.0
      %3311 = vmatpush.msra.mxu0 0.0
      %3312 = vmatpush.msra.mxu0 0.0
      %3313 = vmatpush.msra.mxu0 0.0
      %3314 = vmatpush.msra.mxu0 0.0
      %3315 = vmatpush.msra.mxu0 0.0
      %3316 = vmatpush.msra.mxu0 0.0
      %3317 = vmatpush.msra.mxu0 0.0
      %3318 = vmatpush.msra.mxu0 0.0
      %3319 = vmatpush.msra.mxu0 0.0
      %3320 = vmatpush.msra.mxu0 0.0
      %3321 = vmatpush.msra.mxu0 0.0
      %3322 = vmatpush.msra.mxu0 0.0
      %3323 = vmatpush.msra.mxu0 0.0
      %3324 = vmatpush.msra.mxu0 %v427
      %3325 = vmatmul.f32.gmra.mxu0 %v3107
      %v3326 = vpop.f32.mrf.mxu0
      %v3327 = vadd.f32 0.0, %v3326
      %3328 = vdwg.mxu0
      %3329 = vmatpush.msra.mxu0 0.0
      %3330 = vmatpush.msra.mxu0 0.0
      %3331 = vmatpush.msra.mxu0 0.0
      %3332 = vmatpush.msra.mxu0 0.0
      %3333 = vmatpush.msra.mxu0 0.0
      %3334 = vmatpush.msra.mxu0 0.0
      %3335 = vmatpush.msra.mxu0 0.0
      %3336 = vmatpush.msra.mxu0 0.0
      %3337 = vmatpush.msra.mxu0 0.0
      %3338 = vmatpush.msra.mxu0 0.0
      %3339 = vmatpush.msra.mxu0 0.0
      %3340 = vmatpush.msra.mxu0 0.0
      %3341 = vmatpush.msra.mxu0 0.0
      %3342 = vmatpush.msra.mxu0 0.0
      %3343 = vmatpush.msra.mxu0 0.0
      %3344 = vmatpush.msra.mxu0 %v428
      %3345 = vmatmul.f32.gmra.mxu0 %v3107
      %v3346 = vpop.f32.mrf.mxu0
      %v3347 = vadd.f32 0.0, %v3346
      %3348 = vdwg.mxu0
      %3349 = vmatpush.msra.mxu0 0.0
      %3350 = vmatpush.msra.mxu0 0.0
      %3351 = vmatpush.msra.mxu0 0.0
      %3352 = vmatpush.msra.mxu0 0.0
      %3353 = vmatpush.msra.mxu0 0.0
      %3354 = vmatpush.msra.mxu0 0.0
      %3355 = vmatpush.msra.mxu0 0.0
      %3356 = vmatpush.msra.mxu0 0.0
      %3357 = vmatpush.msra.mxu0 0.0
      %3358 = vmatpush.msra.mxu0 0.0
      %3359 = vmatpush.msra.mxu0 0.0
      %3360 = vmatpush.msra.mxu0 0.0
      %3361 = vmatpush.msra.mxu0 0.0
      %3362 = vmatpush.msra.mxu0 0.0
      %3363 = vmatpush.msra.mxu0 0.0
      %3364 = vmatpush.msra.mxu0 %v429
      %3365 = vmatmul.f32.gmra.mxu0 %v3107
      %v3366 = vpop.f32.mrf.mxu0
      %v3367 = vadd.f32 0.0, %v3366
      %3368 = vdwg.mxu0
      %3369 = vmatpush.msra.mxu0 0.0
      %3370 = vmatpush.msra.mxu0 0.0
      %3371 = vmatpush.msra.mxu0 0.0
      %3372 = vmatpush.msra.mxu0 0.0
      %3373 = vmatpush.msra.mxu0 0.0
      %3374 = vmatpush.msra.mxu0 0.0
      %3375 = vmatpush.msra.mxu0 0.0
      %3376 = vmatpush.msra.mxu0 0.0
      %3377 = vmatpush.msra.mxu0 0.0
      %3378 = vmatpush.msra.mxu0 0.0
      %3379 = vmatpush.msra.mxu0 0.0
      %3380 = vmatpush.msra.mxu0 0.0
      %3381 = vmatpush.msra.mxu0 0.0
      %3382 = vmatpush.msra.mxu0 0.0
      %3383 = vmatpush.msra.mxu0 0.0
      %3384 = vmatpush.msra.mxu0 %v430
      %3385 = vmatmul.f32.gmra.mxu0 %v3107
      %v3386 = vpop.f32.mrf.mxu0
      %v3387 = vadd.f32 0.0, %v3386
      %3388 = vdwg.mxu0
      %3389 = vmatpush.msra.mxu0 0.0
      %3390 = vmatpush.msra.mxu0 0.0
      %3391 = vmatpush.msra.mxu0 0.0
      %3392 = vmatpush.msra.mxu0 0.0
      %3393 = vmatpush.msra.mxu0 0.0
      %3394 = vmatpush.msra.mxu0 0.0
      %3395 = vmatpush.msra.mxu0 0.0
      %3396 = vmatpush.msra.mxu0 0.0
      %3397 = vmatpush.msra.mxu0 0.0
      %3398 = vmatpush.msra.mxu0 0.0
      %3399 = vmatpush.msra.mxu0 0.0
      %3400 = vmatpush.msra.mxu0 0.0
      %3401 = vmatpush.msra.mxu0 0.0
      %3402 = vmatpush.msra.mxu0 0.0
      %3403 = vmatpush.msra.mxu0 0.0
      %3404 = vmatpush.msra.mxu0 %v431
      %3405 = vmatmul.f32.gmra.mxu0 %v3107
      %v3406 = vpop.f32.mrf.mxu0
      %v3407 = vadd.f32 0.0, %v3406
      %3408 = vdwg.mxu0
      %3409 = vmatpush.msra.mxu0 0.0
      %3410 = vmatpush.msra.mxu0 0.0
      %3411 = vmatpush.msra.mxu0 0.0
      %3412 = vmatpush.msra.mxu0 0.0
      %3413 = vmatpush.msra.mxu0 0.0
      %3414 = vmatpush.msra.mxu0 0.0
      %3415 = vmatpush.msra.mxu0 0.0
      %3416 = vmatpush.msra.mxu0 0.0
      %3417 = vmatpush.msra.mxu0 0.0
      %3418 = vmatpush.msra.mxu0 0.0
      %3419 = vmatpush.msra.mxu0 0.0
      %3420 = vmatpush.msra.mxu0 0.0
      %3421 = vmatpush.msra.mxu0 0.0
      %3422 = vmatpush.msra.mxu0 0.0
      %3423 = vmatpush.msra.mxu0 0.0
      %3424 = vmatpush.msra.mxu0 %v432
      %3425 = vmatmul.f32.gmra.mxu0 %v3107
      %v3426 = vpop.f32.mrf.mxu0
      %v3427 = vadd.f32 0.0, %v3426
      %3428 = vdwg.mxu0
      %3429 = vmatpush.msra.mxu0 0.0
      %3430 = vmatpush.msra.mxu0 0.0
      %3431 = vmatpush.msra.mxu0 0.0
      %3432 = vmatpush.msra.mxu0 0.0
      %3433 = vmatpush.msra.mxu0 0.0
      %3434 = vmatpush.msra.mxu0 0.0
      %3435 = vmatpush.msra.mxu0 0.0
      %3436 = vmatpush.msra.mxu0 0.0
      %3437 = vmatpush.msra.mxu0 0.0
      %3438 = vmatpush.msra.mxu0 0.0
      %3439 = vmatpush.msra.mxu0 0.0
      %3440 = vmatpush.msra.mxu0 0.0
      %3441 = vmatpush.msra.mxu0 0.0
      %3442 = vmatpush.msra.mxu0 0.0
      %3443 = vmatpush.msra.mxu0 0.0
      %3444 = vmatpush.msra.mxu0 %v433
      %3445 = vmatmul.f32.gmra.mxu0 %v3107
      %v3446 = vpop.f32.mrf.mxu0
      %v3447 = vadd.f32 0.0, %v3446
      %3448 = vdwg.mxu0
      %3449 = vmatpush.msra.mxu0 0.0
      %3450 = vmatpush.msra.mxu0 0.0
      %3451 = vmatpush.msra.mxu0 0.0
      %3452 = vmatpush.msra.mxu0 0.0
      %3453 = vmatpush.msra.mxu0 0.0
      %3454 = vmatpush.msra.mxu0 0.0
      %3455 = vmatpush.msra.mxu0 0.0
      %3456 = vmatpush.msra.mxu0 0.0
      %3457 = vmatpush.msra.mxu0 0.0
      %3458 = vmatpush.msra.mxu0 0.0
      %3459 = vmatpush.msra.mxu0 0.0
      %3460 = vmatpush.msra.mxu0 0.0
      %3461 = vmatpush.msra.mxu0 0.0
      %3462 = vmatpush.msra.mxu0 0.0
      %3463 = vmatpush.msra.mxu0 0.0
      %3464 = vmatpush.msra.mxu0 %v434
      %3465 = vmatmul.f32.gmra.mxu0 %v3107
      %v3466 = vpop.f32.mrf.mxu0
      %v3467 = vadd.f32 0.0, %v3466
      %3468 = vdwg.mxu0
      %3469 = vmatpush.msra.mxu0 0.0
      %3470 = vmatpush.msra.mxu0 0.0
      %3471 = vmatpush.msra.mxu0 0.0
      %3472 = vmatpush.msra.mxu0 0.0
      %3473 = vmatpush.msra.mxu0 0.0
      %3474 = vmatpush.msra.mxu0 0.0
      %3475 = vmatpush.msra.mxu0 0.0
      %3476 = vmatpush.msra.mxu0 0.0
      %3477 = vmatpush.msra.mxu0 0.0
      %3478 = vmatpush.msra.mxu0 0.0
      %3479 = vmatpush.msra.mxu0 0.0
      %3480 = vmatpush.msra.mxu0 0.0
      %3481 = vmatpush.msra.mxu0 0.0
      %3482 = vmatpush.msra.mxu0 0.0
      %3483 = vmatpush.msra.mxu0 0.0
      %3484 = vmatpush.msra.mxu0 %v435
      %3485 = vmatmul.f32.gmra.mxu0 %v3107
      %v3486 = vpop.f32.mrf.mxu0
      %v3487 = vadd.f32 0.0, %v3486
      %3488 = vdwg.mxu0
      %3489 = vmatpush.msra.mxu0 0.0
      %3490 = vmatpush.msra.mxu0 0.0
      %3491 = vmatpush.msra.mxu0 0.0
      %3492 = vmatpush.msra.mxu0 0.0
      %3493 = vmatpush.msra.mxu0 0.0
      %3494 = vmatpush.msra.mxu0 0.0
      %3495 = vmatpush.msra.mxu0 0.0
      %3496 = vmatpush.msra.mxu0 0.0
      %3497 = vmatpush.msra.mxu0 0.0
      %3498 = vmatpush.msra.mxu0 0.0
      %3499 = vmatpush.msra.mxu0 0.0
      %3500 = vmatpush.msra.mxu0 0.0
      %3501 = vmatpush.msra.mxu0 0.0
      %3502 = vmatpush.msra.mxu0 0.0
      %3503 = vmatpush.msra.mxu0 0.0
      %3504 = vmatpush.msra.mxu0 %v436
      %3505 = vmatmul.f32.gmra.mxu0 %v3107
      %v3506 = vpop.f32.mrf.mxu0
      %v3507 = vadd.f32 0.0, %v3506
      %3508 = vdwg.mxu0
      %3509 = vmatpush.msra.mxu0 0.0
      %3510 = vmatpush.msra.mxu0 0.0
      %3511 = vmatpush.msra.mxu0 0.0
      %3512 = vmatpush.msra.mxu0 0.0
      %3513 = vmatpush.msra.mxu0 0.0
      %3514 = vmatpush.msra.mxu0 0.0
      %3515 = vmatpush.msra.mxu0 0.0
      %3516 = vmatpush.msra.mxu0 0.0
      %3517 = vmatpush.msra.mxu0 0.0
      %3518 = vmatpush.msra.mxu0 0.0
      %3519 = vmatpush.msra.mxu0 0.0
      %3520 = vmatpush.msra.mxu0 0.0
      %3521 = vmatpush.msra.mxu0 0.0
      %3522 = vmatpush.msra.mxu0 0.0
      %3523 = vmatpush.msra.mxu0 0.0
      %3524 = vmatpush.msra.mxu0 %v437
      %3525 = vmatmul.f32.gmra.mxu0 %v3107
      %v3526 = vpop.f32.mrf.mxu0
      %v3527 = vadd.f32 0.0, %v3526
      %3528 = vdwg.mxu0
      %3529 = vmatpush.msra.mxu0 0.0
      %3530 = vmatpush.msra.mxu0 0.0
      %3531 = vmatpush.msra.mxu0 0.0
      %3532 = vmatpush.msra.mxu0 0.0
      %3533 = vmatpush.msra.mxu0 0.0
      %3534 = vmatpush.msra.mxu0 0.0
      %3535 = vmatpush.msra.mxu0 0.0
      %3536 = vmatpush.msra.mxu0 0.0
      %3537 = vmatpush.msra.mxu0 0.0
      %3538 = vmatpush.msra.mxu0 0.0
      %3539 = vmatpush.msra.mxu0 0.0
      %3540 = vmatpush.msra.mxu0 0.0
      %3541 = vmatpush.msra.mxu0 0.0
      %3542 = vmatpush.msra.mxu0 0.0
      %3543 = vmatpush.msra.mxu0 0.0
      %3544 = vmatpush.msra.mxu0 %v438
      %3545 = vmatmul.f32.gmra.mxu0 %v3107
      %v3546 = vpop.f32.mrf.mxu0
      %v3547 = vadd.f32 0.0, %v3546
      %3548 = vdwg.mxu0
      %3549 = vmatpush.msra.mxu0 0.0
      %3550 = vmatpush.msra.mxu0 0.0
      %3551 = vmatpush.msra.mxu0 0.0
      %3552 = vmatpush.msra.mxu0 0.0
      %3553 = vmatpush.msra.mxu0 0.0
      %3554 = vmatpush.msra.mxu0 0.0
      %3555 = vmatpush.msra.mxu0 0.0
      %3556 = vmatpush.msra.mxu0 0.0
      %3557 = vmatpush.msra.mxu0 0.0
      %3558 = vmatpush.msra.mxu0 0.0
      %3559 = vmatpush.msra.mxu0 0.0
      %3560 = vmatpush.msra.mxu0 0.0
      %3561 = vmatpush.msra.mxu0 0.0
      %3562 = vmatpush.msra.mxu0 0.0
      %3563 = vmatpush.msra.mxu0 0.0
      %3564 = vmatpush.msra.mxu0 %v439
      %3565 = vmatmul.f32.gmra.mxu0 %v3107
      %v3566 = vpop.f32.mrf.mxu0
      %v3567 = vadd.f32 0.0, %v3566
      %3568 = vdwg.mxu0
      %3569 = vmatpush.msra.mxu0 0.0
      %3570 = vmatpush.msra.mxu0 0.0
      %3571 = vmatpush.msra.mxu0 0.0
      %3572 = vmatpush.msra.mxu0 0.0
      %3573 = vmatpush.msra.mxu0 0.0
      %3574 = vmatpush.msra.mxu0 0.0
      %3575 = vmatpush.msra.mxu0 0.0
      %3576 = vmatpush.msra.mxu0 0.0
      %3577 = vmatpush.msra.mxu0 0.0
      %3578 = vmatpush.msra.mxu0 0.0
      %3579 = vmatpush.msra.mxu0 0.0
      %3580 = vmatpush.msra.mxu0 0.0
      %3581 = vmatpush.msra.mxu0 0.0
      %3582 = vmatpush.msra.mxu0 0.0
      %3583 = vmatpush.msra.mxu0 0.0
      %3584 = vmatpush.msra.mxu0 %v440
      %3585 = vmatmul.f32.gmra.mxu0 %v3107
      %v3586 = vpop.f32.mrf.mxu0
      %v3587 = vadd.f32 0.0, %v3586
      %3588 = vdwg.mxu0
      %3589 = vmatpush.msra.mxu0 0.0
      %3590 = vmatpush.msra.mxu0 0.0
      %3591 = vmatpush.msra.mxu0 0.0
      %3592 = vmatpush.msra.mxu0 0.0
      %3593 = vmatpush.msra.mxu0 0.0
      %3594 = vmatpush.msra.mxu0 0.0
      %3595 = vmatpush.msra.mxu0 0.0
      %3596 = vmatpush.msra.mxu0 0.0
      %3597 = vmatpush.msra.mxu0 0.0
      %3598 = vmatpush.msra.mxu0 0.0
      %3599 = vmatpush.msra.mxu0 0.0
      %3600 = vmatpush.msra.mxu0 0.0
      %3601 = vmatpush.msra.mxu0 0.0
      %3602 = vmatpush.msra.mxu0 0.0
      %3603 = vmatpush.msra.mxu0 0.0
      %3604 = vmatpush.msra.mxu0 %v441
      %3605 = vmatmul.f32.gmra.mxu0 %v3107
      %v3606 = vpop.f32.mrf.mxu0
      %v3607 = vadd.f32 0.0, %v3606
      %3608 = vdwg.mxu0
      %3609 = vmatpush.msra.mxu0 0.0
      %3610 = vmatpush.msra.mxu0 0.0
      %3611 = vmatpush.msra.mxu0 0.0
      %3612 = vmatpush.msra.mxu0 0.0
      %3613 = vmatpush.msra.mxu0 0.0
      %3614 = vmatpush.msra.mxu0 0.0
      %3615 = vmatpush.msra.mxu0 0.0
      %3616 = vmatpush.msra.mxu0 0.0
      %3617 = vmatpush.msra.mxu0 0.0
      %3618 = vmatpush.msra.mxu0 0.0
      %3619 = vmatpush.msra.mxu0 0.0
      %3620 = vmatpush.msra.mxu0 0.0
      %3621 = vmatpush.msra.mxu0 0.0
      %3622 = vmatpush.msra.mxu0 0.0
      %3623 = vmatpush.msra.mxu0 0.0
      %3624 = vmatpush.msra.mxu0 %v442
      %3625 = vmatmul.f32.gmra.mxu0 %v3107
      %v3626 = vpop.f32.mrf.mxu0
      %v3627 = vadd.f32 0.0, %v3626
      %3628 = vdwg.mxu0
      %3629 = vmatpush.msra.mxu0 0.0
      %3630 = vmatpush.msra.mxu0 0.0
      %3631 = vmatpush.msra.mxu0 0.0
      %3632 = vmatpush.msra.mxu0 0.0
      %3633 = vmatpush.msra.mxu0 0.0
      %3634 = vmatpush.msra.mxu0 0.0
      %3635 = vmatpush.msra.mxu0 0.0
      %3636 = vmatpush.msra.mxu0 0.0
      %3637 = vmatpush.msra.mxu0 0.0
      %3638 = vmatpush.msra.mxu0 0.0
      %3639 = vmatpush.msra.mxu0 0.0
      %3640 = vmatpush.msra.mxu0 0.0
      %3641 = vmatpush.msra.mxu0 0.0
      %3642 = vmatpush.msra.mxu0 0.0
      %3643 = vmatpush.msra.mxu0 0.0
      %3644 = vmatpush.msra.mxu0 %v443
      %3645 = vmatmul.f32.gmra.mxu0 %v3107
      %v3646 = vpop.f32.mrf.mxu0
      %v3647 = vadd.f32 0.0, %v3646
      %3648 = vdwg.mxu0
      %3649 = vmatpush.msra.mxu0 0.0
      %3650 = vmatpush.msra.mxu0 0.0
      %3651 = vmatpush.msra.mxu0 0.0
      %3652 = vmatpush.msra.mxu0 0.0
      %3653 = vmatpush.msra.mxu0 0.0
      %3654 = vmatpush.msra.mxu0 0.0
      %3655 = vmatpush.msra.mxu0 0.0
      %3656 = vmatpush.msra.mxu0 0.0
      %3657 = vmatpush.msra.mxu0 0.0
      %3658 = vmatpush.msra.mxu0 0.0
      %3659 = vmatpush.msra.mxu0 0.0
      %3660 = vmatpush.msra.mxu0 0.0
      %3661 = vmatpush.msra.mxu0 0.0
      %3662 = vmatpush.msra.mxu0 0.0
      %3663 = vmatpush.msra.mxu0 0.0
      %3664 = vmatpush.msra.mxu0 %v444
      %3665 = vmatmul.f32.gmra.mxu0 %v3107
      %v3666 = vpop.f32.mrf.mxu0
      %v3667 = vadd.f32 0.0, %v3666
      %3668 = vdwg.mxu0
      %3669 = vmatpush.msra.mxu0 0.0
      %3670 = vmatpush.msra.mxu0 0.0
      %3671 = vmatpush.msra.mxu0 0.0
      %3672 = vmatpush.msra.mxu0 0.0
      %3673 = vmatpush.msra.mxu0 0.0
      %3674 = vmatpush.msra.mxu0 0.0
      %3675 = vmatpush.msra.mxu0 0.0
      %3676 = vmatpush.msra.mxu0 0.0
      %3677 = vmatpush.msra.mxu0 0.0
      %3678 = vmatpush.msra.mxu0 0.0
      %3679 = vmatpush.msra.mxu0 0.0
      %3680 = vmatpush.msra.mxu0 0.0
      %3681 = vmatpush.msra.mxu0 0.0
      %3682 = vmatpush.msra.mxu0 0.0
      %3683 = vmatpush.msra.mxu0 0.0
      %3684 = vmatpush.msra.mxu0 %v445
      %3685 = vmatmul.f32.gmra.mxu0 %v3107
      %v3686 = vpop.f32.mrf.mxu0
      %v3687 = vadd.f32 0.0, %v3686
      %3688 = vdwg.mxu0
      %3689 = vmatpush.msra.mxu0 0.0
      %3690 = vmatpush.msra.mxu0 0.0
      %3691 = vmatpush.msra.mxu0 0.0
      %3692 = vmatpush.msra.mxu0 0.0
      %3693 = vmatpush.msra.mxu0 0.0
      %3694 = vmatpush.msra.mxu0 0.0
      %3695 = vmatpush.msra.mxu0 0.0
      %3696 = vmatpush.msra.mxu0 0.0
      %3697 = vmatpush.msra.mxu0 0.0
      %3698 = vmatpush.msra.mxu0 0.0
      %3699 = vmatpush.msra.mxu0 0.0
      %3700 = vmatpush.msra.mxu0 0.0
      %3701 = vmatpush.msra.mxu0 0.0
      %3702 = vmatpush.msra.mxu0 0.0
      %3703 = vmatpush.msra.mxu0 0.0
      %3704 = vmatpush.msra.mxu0 %v446
      %3705 = vmatmul.f32.gmra.mxu0 %v3107
      %v3706 = vpop.f32.mrf.mxu0
      %v3707 = vadd.f32 0.0, %v3706
      %3708 = vdwg.mxu0
      %3709 = vmatpush.msra.mxu0 0.0
      %3710 = vmatpush.msra.mxu0 0.0
      %3711 = vmatpush.msra.mxu0 0.0
      %3712 = vmatpush.msra.mxu0 0.0
      %3713 = vmatpush.msra.mxu0 0.0
      %3714 = vmatpush.msra.mxu0 0.0
      %3715 = vmatpush.msra.mxu0 0.0
      %3716 = vmatpush.msra.mxu0 0.0
      %3717 = vmatpush.msra.mxu0 0.0
      %3718 = vmatpush.msra.mxu0 0.0
      %3719 = vmatpush.msra.mxu0 0.0
      %3720 = vmatpush.msra.mxu0 0.0
      %3721 = vmatpush.msra.mxu0 0.0
      %3722 = vmatpush.msra.mxu0 0.0
      %3723 = vmatpush.msra.mxu0 0.0
      %3724 = vmatpush.msra.mxu0 %v447
      %3725 = vmatmul.f32.gmra.mxu0 %v3107
      %v3726 = vpop.f32.mrf.mxu0
      %v3727 = vadd.f32 0.0, %v3726
      %3728 = vdwg.mxu0
      %3729 = vmatpush.msra.mxu0 0.0
      %3730 = vmatpush.msra.mxu0 0.0
      %3731 = vmatpush.msra.mxu0 0.0
      %3732 = vmatpush.msra.mxu0 0.0
      %3733 = vmatpush.msra.mxu0 0.0
      %3734 = vmatpush.msra.mxu0 0.0
      %3735 = vmatpush.msra.mxu0 0.0
      %3736 = vmatpush.msra.mxu0 0.0
      %3737 = vmatpush.msra.mxu0 0.0
      %3738 = vmatpush.msra.mxu0 0.0
      %3739 = vmatpush.msra.mxu0 0.0
      %3740 = vmatpush.msra.mxu0 0.0
      %3741 = vmatpush.msra.mxu0 0.0
      %3742 = vmatpush.msra.mxu0 0.0
      %3743 = vmatpush.msra.mxu0 0.0
      %3744 = vmatpush.msra.mxu0 %v448
      %3745 = vmatmul.f32.gmra.mxu0 %v3107
      %v3746 = vpop.f32.mrf.mxu0
      %v3747 = vadd.f32 0.0, %v3746
      %3748 = vdwg.mxu0
      %v3749 = vsub.f32 1.0, %v453
      %v3750 = vsub.f32 1.0, %v454
      %v3751 = vsub.f32 1.0, %v455
      %v3752 = vsub.f32 1.0, %v456
      %v3753 = vmul.f32 %v1741, %v2484
      %v3754 = vmul.f32 %v1742, %v2504
      %v3755 = vmul.f32 %v1743, %v2524
      %v3756 = vmul.f32 %v1744, %v2544
      %v3757 = vmul.f32 %v1745, %v2564
      %v3758 = vmul.f32 %v1746, %v2584
      %v3759 = vmul.f32 %v1747, %v2604
      %v3760 = vmul.f32 %v1748, %v2624
      %v3761 = vmul.f32 %v1749, %v2644
      %v3762 = vmul.f32 %v1750, %v2664
      %v3763 = vmul.f32 %v1751, %v2684
      %v3764 = vmul.f32 %v1752, %v2704
      %v3765 = vmul.f32 %v1753, %v2724
      %v3766 = vmul.f32 %v1754, %v2744
      %v3767 = vmul.f32 %v1755, %v2764
      %v3768 = vmul.f32 %v1756, %v2784
      %v3769 = vmul.f32 %v1757, %v2804
      %v3770 = vmul.f32 %v1758, %v2824
      %v3771 = vmul.f32 %v1759, %v2844
      %v3772 = vmul.f32 %v1760, %v2864
      %v3773 = vmul.f32 %v1761, %v2884
      %v3774 = vmul.f32 %v1762, %v2904
      %v3775 = vmul.f32 %v1763, %v2924
      %v3776 = vmul.f32 %v1764, %v2944
      %v3777 = vmul.f32 %v1765, %v2964
      %v3778 = vmul.f32 %v1766, %v2984
      %v3779 = vmul.f32 %v1767, %v3004
      %v3780 = vmul.f32 %v1768, %v3024
      %v3781 = vmul.f32 %v1769, %v3044
      %v3782 = vmul.f32 %v1770, %v3064
      %v3783 = vmul.f32 %v1771, %v3084
      %v3784 = vmul.f32 %v1772, %v3104
      %v3789 = vperm.slane %v3749, 0
      %v3790 = vperm.slane %v3749, 1
      %v3791 = vperm.slane %v3749, 2
      %v3792 = vperm.slane %v3749, 3
      %v3793 = vperm.slane %v3749, 4
      %v3794 = vperm.slane %v3749, 5
      %v3795 = vperm.slane %v3749, 6
      %v3796 = vperm.slane %v3749, 7
      %v3797 = vperm.slane %v3750, 0
      %v3798 = vperm.slane %v3750, 1
      %v3799 = vperm.slane %v3750, 2
      %v3800 = vperm.slane %v3750, 3
      %v3801 = vperm.slane %v3750, 4
      %v3802 = vperm.slane %v3750, 5
      %v3803 = vperm.slane %v3750, 6
      %v3804 = vperm.slane %v3750, 7
      %v3805 = vperm.slane %v3751, 0
      %v3806 = vperm.slane %v3751, 1
      %v3807 = vperm.slane %v3751, 2
      %v3808 = vperm.slane %v3751, 3
      %v3809 = vperm.slane %v3751, 4
      %v3810 = vperm.slane %v3751, 5
      %v3811 = vperm.slane %v3751, 6
      %v3812 = vperm.slane %v3751, 7
      %v3813 = vperm.slane %v3752, 0
      %v3814 = vperm.slane %v3752, 1
      %v3815 = vperm.slane %v3752, 2
      %v3816 = vperm.slane %v3752, 3
      %v3817 = vperm.slane %v3752, 4
      %v3818 = vperm.slane %v3752, 5
      %v3819 = vperm.slane %v3752, 6
      %v3820 = vperm.slane %v3752, 7
      %v3853 = vmul.f32 %v3789, %v208
      %v3854 = vmul.f32 %v3790, %v209
      %v3855 = vmul.f32 %v3791, %v210
      %v3856 = vmul.f32 %v3792, %v211
      %v3857 = vmul.f32 %v3793, %v212
      %v3858 = vmul.f32 %v3794, %v213
      %v3859 = vmul.f32 %v3795, %v214
      %v3860 = vmul.f32 %v3796, %v215
      %v3861 = vmul.f32 %v3797, %v216
      %v3862 = vmul.f32 %v3798, %v217
      %v3863 = vmul.f32 %v3799, %v218
      %v3864 = vmul.f32 %v3800, %v219
      %v3865 = vmul.f32 %v3801, %v220
      %v3866 = vmul.f32 %v3802, %v221
      %v3867 = vmul.f32 %v3803, %v222
      %v3868 = vmul.f32 %v3804, %v223
      %v3869 = vmul.f32 %v3805, %v224
      %v3870 = vmul.f32 %v3806, %v225
      %v3871 = vmul.f32 %v3807, %v226
      %v3872 = vmul.f32 %v3808, %v227
      %v3873 = vmul.f32 %v3809, %v228
      %v3874 = vmul.f32 %v3810, %v229
      %v3875 = vmul.f32 %v3811, %v230
      %v3876 = vmul.f32 %v3812, %v231
      %v3877 = vmul.f32 %v3813, %v232
      %v3878 = vmul.f32 %v3814, %v233
      %v3879 = vmul.f32 %v3815, %v234
      %v3880 = vmul.f32 %v3816, %v235
      %v3881 = vmul.f32 %v3817, %v236
      %v3882 = vmul.f32 %v3818, %v237
      %v3883 = vmul.f32 %v3819, %v238
      %v3884 = vmul.f32 %v3820, %v239
      %v3885 = vadd.f32 %v3753, %v3853
      %v3886 = vadd.f32 %v3754, %v3854
      %v3887 = vadd.f32 %v3755, %v3855
      %v3888 = vadd.f32 %v3756, %v3856
      %v3889 = vadd.f32 %v3757, %v3857
      %v3890 = vadd.f32 %v3758, %v3858
      %v3891 = vadd.f32 %v3759, %v3859
      %v3892 = vadd.f32 %v3760, %v3860
      %v3893 = vadd.f32 %v3761, %v3861
      %v3894 = vadd.f32 %v3762, %v3862
      %v3895 = vadd.f32 %v3763, %v3863
      %v3896 = vadd.f32 %v3764, %v3864
      %v3897 = vadd.f32 %v3765, %v3865
      %v3898 = vadd.f32 %v3766, %v3866
      %v3899 = vadd.f32 %v3767, %v3867
      %v3900 = vadd.f32 %v3768, %v3868
      %v3901 = vadd.f32 %v3769, %v3869
      %v3902 = vadd.f32 %v3770, %v3870
      %v3903 = vadd.f32 %v3771, %v3871
      %v3904 = vadd.f32 %v3772, %v3872
      %v3905 = vadd.f32 %v3773, %v3873
      %v3906 = vadd.f32 %v3774, %v3874
      %v3907 = vadd.f32 %v3775, %v3875
      %v3908 = vadd.f32 %v3776, %v3876
      %v3909 = vadd.f32 %v3777, %v3877
      %v3910 = vadd.f32 %v3778, %v3878
      %v3911 = vadd.f32 %v3779, %v3879
      %v3912 = vadd.f32 %v3780, %v3880
      %v3913 = vadd.f32 %v3781, %v3881
      %v3914 = vadd.f32 %v3782, %v3882
      %v3915 = vadd.f32 %v3783, %v3883
      %v3916 = vadd.f32 %v3784, %v3884
      %v3917 = vmul.f32 %v1741, %v3127
      %v3918 = vmul.f32 %v1742, %v3147
      %v3919 = vmul.f32 %v1743, %v3167
      %v3920 = vmul.f32 %v1744, %v3187
      %v3921 = vmul.f32 %v1745, %v3207
      %v3922 = vmul.f32 %v1746, %v3227
      %v3923 = vmul.f32 %v1747, %v3247
      %v3924 = vmul.f32 %v1748, %v3267
      %v3925 = vmul.f32 %v1749, %v3287
      %v3926 = vmul.f32 %v1750, %v3307
      %v3927 = vmul.f32 %v1751, %v3327
      %v3928 = vmul.f32 %v1752, %v3347
      %v3929 = vmul.f32 %v1753, %v3367
      %v3930 = vmul.f32 %v1754, %v3387
      %v3931 = vmul.f32 %v1755, %v3407
      %v3932 = vmul.f32 %v1756, %v3427
      %v3933 = vmul.f32 %v1757, %v3447
      %v3934 = vmul.f32 %v1758, %v3467
      %v3935 = vmul.f32 %v1759, %v3487
      %v3936 = vmul.f32 %v1760, %v3507
      %v3937 = vmul.f32 %v1761, %v3527
      %v3938 = vmul.f32 %v1762, %v3547
      %v3939 = vmul.f32 %v1763, %v3567
      %v3940 = vmul.f32 %v1764, %v3587
      %v3941 = vmul.f32 %v1765, %v3607
      %v3942 = vmul.f32 %v1766, %v3627
      %v3943 = vmul.f32 %v1767, %v3647
      %v3944 = vmul.f32 %v1768, %v3667
      %v3945 = vmul.f32 %v1769, %v3687
      %v3946 = vmul.f32 %v1770, %v3707
      %v3947 = vmul.f32 %v1771, %v3727
      %v3948 = vmul.f32 %v1772, %v3747
      %v3949 = vmul.f32 %v3789, %v240
      %v3950 = vmul.f32 %v3790, %v241
      %v3951 = vmul.f32 %v3791, %v242
      %v3952 = vmul.f32 %v3792, %v243
      %v3953 = vmul.f32 %v3793, %v244
      %v3954 = vmul.f32 %v3794, %v245
      %v3955 = vmul.f32 %v3795, %v246
      %v3956 = vmul.f32 %v3796, %v247
      %v3957 = vmul.f32 %v3797, %v248
      %v3958 = vmul.f32 %v3798, %v249
      %v3959 = vmul.f32 %v3799, %v250
      %v3960 = vmul.f32 %v3800, %v251
      %v3961 = vmul.f32 %v3801, %v252
      %v3962 = vmul.f32 %v3802, %v253
      %v3963 = vmul.f32 %v3803, %v254
      %v3964 = vmul.f32 %v3804, %v255
      %v3965 = vmul.f32 %v3805, %v256
      %v3966 = vmul.f32 %v3806, %v257
      %v3967 = vmul.f32 %v3807, %v258
      %v3968 = vmul.f32 %v3808, %v259
      %v3969 = vmul.f32 %v3809, %v260
      %v3970 = vmul.f32 %v3810, %v261
      %v3971 = vmul.f32 %v3811, %v262
      %v3972 = vmul.f32 %v3812, %v263
      %v3973 = vmul.f32 %v3813, %v264
      %v3974 = vmul.f32 %v3814, %v265
      %v3975 = vmul.f32 %v3815, %v266
      %v3976 = vmul.f32 %v3816, %v267
      %v3977 = vmul.f32 %v3817, %v268
      %v3978 = vmul.f32 %v3818, %v269
      %v3979 = vmul.f32 %v3819, %v270
      %v3980 = vmul.f32 %v3820, %v271
      %v3981 = vadd.f32 %v3917, %v3949
      %v3982 = vadd.f32 %v3918, %v3950
      %v3983 = vadd.f32 %v3919, %v3951
      %v3984 = vadd.f32 %v3920, %v3952
      %v3985 = vadd.f32 %v3921, %v3953
      %v3986 = vadd.f32 %v3922, %v3954
      %v3987 = vadd.f32 %v3923, %v3955
      %v3988 = vadd.f32 %v3924, %v3956
      %v3989 = vadd.f32 %v3925, %v3957
      %v3990 = vadd.f32 %v3926, %v3958
      %v3991 = vadd.f32 %v3927, %v3959
      %v3992 = vadd.f32 %v3928, %v3960
      %v3993 = vadd.f32 %v3929, %v3961
      %v3994 = vadd.f32 %v3930, %v3962
      %v3995 = vadd.f32 %v3931, %v3963
      %v3996 = vadd.f32 %v3932, %v3964
      %v3997 = vadd.f32 %v3933, %v3965
      %v3998 = vadd.f32 %v3934, %v3966
      %v3999 = vadd.f32 %v3935, %v3967
      %v4000 = vadd.f32 %v3936, %v3968
      %v4001 = vadd.f32 %v3937, %v3969
      %v4002 = vadd.f32 %v3938, %v3970
      %v4003 = vadd.f32 %v3939, %v3971
      %v4004 = vadd.f32 %v3940, %v3972
      %v4005 = vadd.f32 %v3941, %v3973
      %v4006 = vadd.f32 %v3942, %v3974
      %v4007 = vadd.f32 %v3943, %v3975
      %v4008 = vadd.f32 %v3944, %v3976
      %v4009 = vadd.f32 %v3945, %v3977
      %v4010 = vadd.f32 %v3946, %v3978
      %v4011 = vadd.f32 %v3947, %v3979
      %v4012 = vadd.f32 %v3948, %v3980
      %v4013 = vmul.f32 %v208, %v3885
      %v4014 = vmul.f32 %v209, %v3886
      %v4015 = vmul.f32 %v210, %v3887
      %v4016 = vmul.f32 %v211, %v3888
      %v4017 = vmul.f32 %v212, %v3889
      %v4018 = vmul.f32 %v213, %v3890
      %v4019 = vmul.f32 %v214, %v3891
      %v4020 = vmul.f32 %v215, %v3892
      %v4021 = vmul.f32 %v216, %v3893
      %v4022 = vmul.f32 %v217, %v3894
      %v4023 = vmul.f32 %v218, %v3895
      %v4024 = vmul.f32 %v219, %v3896
      %v4025 = vmul.f32 %v220, %v3897
      %v4026 = vmul.f32 %v221, %v3898
      %v4027 = vmul.f32 %v222, %v3899
      %v4028 = vmul.f32 %v223, %v3900
      %v4029 = vmul.f32 %v224, %v3901
      %v4030 = vmul.f32 %v225, %v3902
      %v4031 = vmul.f32 %v226, %v3903
      %v4032 = vmul.f32 %v227, %v3904
      %v4033 = vmul.f32 %v228, %v3905
      %v4034 = vmul.f32 %v229, %v3906
      %v4035 = vmul.f32 %v230, %v3907
      %v4036 = vmul.f32 %v231, %v3908
      %v4037 = vmul.f32 %v232, %v3909
      %v4038 = vmul.f32 %v233, %v3910
      %v4039 = vmul.f32 %v234, %v3911
      %v4040 = vmul.f32 %v235, %v3912
      %v4041 = vmul.f32 %v236, %v3913
      %v4042 = vmul.f32 %v237, %v3914
      %v4043 = vmul.f32 %v238, %v3915
      %v4044 = vmul.f32 %v239, %v3916
      %v4045 = vrot.slane %v4013, 4
      %v4046 = vadd.f32 %v4013, %v4045
      %v4047 = vrot.slane %v4046, 2
      %v4048 = vadd.f32 %v4046, %v4047
      %v4049 = vrot.slane %v4048, 1
      %v4050 = vadd.f32 %v4048, %v4049
      %v4051 = vrot.slane %v4014, 4
      %v4052 = vadd.f32 %v4014, %v4051
      %v4053 = vrot.slane %v4052, 2
      %v4054 = vadd.f32 %v4052, %v4053
      %v4055 = vrot.slane %v4054, 1
      %v4056 = vadd.f32 %v4054, %v4055
      %v4057 = vrot.slane %v4015, 4
      %v4058 = vadd.f32 %v4015, %v4057
      %v4059 = vrot.slane %v4058, 2
      %v4060 = vadd.f32 %v4058, %v4059
      %v4061 = vrot.slane %v4060, 1
      %v4062 = vadd.f32 %v4060, %v4061
      %v4063 = vrot.slane %v4016, 4
      %v4064 = vadd.f32 %v4016, %v4063
      %v4065 = vrot.slane %v4064, 2
      %v4066 = vadd.f32 %v4064, %v4065
      %v4067 = vrot.slane %v4066, 1
      %v4068 = vadd.f32 %v4066, %v4067
      %v4069 = vrot.slane %v4017, 4
      %v4070 = vadd.f32 %v4017, %v4069
      %v4071 = vrot.slane %v4070, 2
      %v4072 = vadd.f32 %v4070, %v4071
      %v4073 = vrot.slane %v4072, 1
      %v4074 = vadd.f32 %v4072, %v4073
      %v4075 = vrot.slane %v4018, 4
      %v4076 = vadd.f32 %v4018, %v4075
      %v4077 = vrot.slane %v4076, 2
      %v4078 = vadd.f32 %v4076, %v4077
      %v4079 = vrot.slane %v4078, 1
      %v4080 = vadd.f32 %v4078, %v4079
      %v4081 = vrot.slane %v4019, 4
      %v4082 = vadd.f32 %v4019, %v4081
      %v4083 = vrot.slane %v4082, 2
      %v4084 = vadd.f32 %v4082, %v4083
      %v4085 = vrot.slane %v4084, 1
      %v4086 = vadd.f32 %v4084, %v4085
      %v4087 = vrot.slane %v4020, 4
      %v4088 = vadd.f32 %v4020, %v4087
      %v4089 = vrot.slane %v4088, 2
      %v4090 = vadd.f32 %v4088, %v4089
      %v4091 = vrot.slane %v4090, 1
      %v4092 = vadd.f32 %v4090, %v4091
      %v4093 = vrot.slane %v4021, 4
      %v4094 = vadd.f32 %v4021, %v4093
      %v4095 = vrot.slane %v4094, 2
      %v4096 = vadd.f32 %v4094, %v4095
      %v4097 = vrot.slane %v4096, 1
      %v4098 = vadd.f32 %v4096, %v4097
      %v4099 = vrot.slane %v4022, 4
      %v4100 = vadd.f32 %v4022, %v4099
      %v4101 = vrot.slane %v4100, 2
      %v4102 = vadd.f32 %v4100, %v4101
      %v4103 = vrot.slane %v4102, 1
      %v4104 = vadd.f32 %v4102, %v4103
      %v4105 = vrot.slane %v4023, 4
      %v4106 = vadd.f32 %v4023, %v4105
      %v4107 = vrot.slane %v4106, 2
      %v4108 = vadd.f32 %v4106, %v4107
      %v4109 = vrot.slane %v4108, 1
      %v4110 = vadd.f32 %v4108, %v4109
      %v4111 = vrot.slane %v4024, 4
      %v4112 = vadd.f32 %v4024, %v4111
      %v4113 = vrot.slane %v4112, 2
      %v4114 = vadd.f32 %v4112, %v4113
      %v4115 = vrot.slane %v4114, 1
      %v4116 = vadd.f32 %v4114, %v4115
      %v4117 = vrot.slane %v4025, 4
      %v4118 = vadd.f32 %v4025, %v4117
      %v4119 = vrot.slane %v4118, 2
      %v4120 = vadd.f32 %v4118, %v4119
      %v4121 = vrot.slane %v4120, 1
      %v4122 = vadd.f32 %v4120, %v4121
      %v4123 = vrot.slane %v4026, 4
      %v4124 = vadd.f32 %v4026, %v4123
      %v4125 = vrot.slane %v4124, 2
      %v4126 = vadd.f32 %v4124, %v4125
      %v4127 = vrot.slane %v4126, 1
      %v4128 = vadd.f32 %v4126, %v4127
      %v4129 = vrot.slane %v4027, 4
      %v4130 = vadd.f32 %v4027, %v4129
      %v4131 = vrot.slane %v4130, 2
      %v4132 = vadd.f32 %v4130, %v4131
      %v4133 = vrot.slane %v4132, 1
      %v4134 = vadd.f32 %v4132, %v4133
      %v4135 = vrot.slane %v4028, 4
      %v4136 = vadd.f32 %v4028, %v4135
      %v4137 = vrot.slane %v4136, 2
      %v4138 = vadd.f32 %v4136, %v4137
      %v4139 = vrot.slane %v4138, 1
      %v4140 = vadd.f32 %v4138, %v4139
      %v4141 = vrot.slane %v4029, 4
      %v4142 = vadd.f32 %v4029, %v4141
      %v4143 = vrot.slane %v4142, 2
      %v4144 = vadd.f32 %v4142, %v4143
      %v4145 = vrot.slane %v4144, 1
      %v4146 = vadd.f32 %v4144, %v4145
      %v4147 = vrot.slane %v4030, 4
      %v4148 = vadd.f32 %v4030, %v4147
      %v4149 = vrot.slane %v4148, 2
      %v4150 = vadd.f32 %v4148, %v4149
      %v4151 = vrot.slane %v4150, 1
      %v4152 = vadd.f32 %v4150, %v4151
      %v4153 = vrot.slane %v4031, 4
      %v4154 = vadd.f32 %v4031, %v4153
      %v4155 = vrot.slane %v4154, 2
      %v4156 = vadd.f32 %v4154, %v4155
      %v4157 = vrot.slane %v4156, 1
      %v4158 = vadd.f32 %v4156, %v4157
      %v4159 = vrot.slane %v4032, 4
      %v4160 = vadd.f32 %v4032, %v4159
      %v4161 = vrot.slane %v4160, 2
      %v4162 = vadd.f32 %v4160, %v4161
      %v4163 = vrot.slane %v4162, 1
      %v4164 = vadd.f32 %v4162, %v4163
      %v4165 = vrot.slane %v4033, 4
      %v4166 = vadd.f32 %v4033, %v4165
      %v4167 = vrot.slane %v4166, 2
      %v4168 = vadd.f32 %v4166, %v4167
      %v4169 = vrot.slane %v4168, 1
      %v4170 = vadd.f32 %v4168, %v4169
      %v4171 = vrot.slane %v4034, 4
      %v4172 = vadd.f32 %v4034, %v4171
      %v4173 = vrot.slane %v4172, 2
      %v4174 = vadd.f32 %v4172, %v4173
      %v4175 = vrot.slane %v4174, 1
      %v4176 = vadd.f32 %v4174, %v4175
      %v4177 = vrot.slane %v4035, 4
      %v4178 = vadd.f32 %v4035, %v4177
      %v4179 = vrot.slane %v4178, 2
      %v4180 = vadd.f32 %v4178, %v4179
      %v4181 = vrot.slane %v4180, 1
      %v4182 = vadd.f32 %v4180, %v4181
      %v4183 = vrot.slane %v4036, 4
      %v4184 = vadd.f32 %v4036, %v4183
      %v4185 = vrot.slane %v4184, 2
      %v4186 = vadd.f32 %v4184, %v4185
      %v4187 = vrot.slane %v4186, 1
      %v4188 = vadd.f32 %v4186, %v4187
      %v4189 = vrot.slane %v4037, 4
      %v4190 = vadd.f32 %v4037, %v4189
      %v4191 = vrot.slane %v4190, 2
      %v4192 = vadd.f32 %v4190, %v4191
      %v4193 = vrot.slane %v4192, 1
      %v4194 = vadd.f32 %v4192, %v4193
      %v4195 = vrot.slane %v4038, 4
      %v4196 = vadd.f32 %v4038, %v4195
      %v4197 = vrot.slane %v4196, 2
      %v4198 = vadd.f32 %v4196, %v4197
      %v4199 = vrot.slane %v4198, 1
      %v4200 = vadd.f32 %v4198, %v4199
      %v4201 = vrot.slane %v4039, 4
      %v4202 = vadd.f32 %v4039, %v4201
      %v4203 = vrot.slane %v4202, 2
      %v4204 = vadd.f32 %v4202, %v4203
      %v4205 = vrot.slane %v4204, 1
      %v4206 = vadd.f32 %v4204, %v4205
      %v4207 = vrot.slane %v4040, 4
      %v4208 = vadd.f32 %v4040, %v4207
      %v4209 = vrot.slane %v4208, 2
      %v4210 = vadd.f32 %v4208, %v4209
      %v4211 = vrot.slane %v4210, 1
      %v4212 = vadd.f32 %v4210, %v4211
      %v4213 = vrot.slane %v4041, 4
      %v4214 = vadd.f32 %v4041, %v4213
      %v4215 = vrot.slane %v4214, 2
      %v4216 = vadd.f32 %v4214, %v4215
      %v4217 = vrot.slane %v4216, 1
      %v4218 = vadd.f32 %v4216, %v4217
      %v4219 = vrot.slane %v4042, 4
      %v4220 = vadd.f32 %v4042, %v4219
      %v4221 = vrot.slane %v4220, 2
      %v4222 = vadd.f32 %v4220, %v4221
      %v4223 = vrot.slane %v4222, 1
      %v4224 = vadd.f32 %v4222, %v4223
      %v4225 = vrot.slane %v4043, 4
      %v4226 = vadd.f32 %v4043, %v4225
      %v4227 = vrot.slane %v4226, 2
      %v4228 = vadd.f32 %v4226, %v4227
      %v4229 = vrot.slane %v4228, 1
      %v4230 = vadd.f32 %v4228, %v4229
      %v4231 = vrot.slane %v4044, 4
      %v4232 = vadd.f32 %v4044, %v4231
      %v4233 = vrot.slane %v4232, 2
      %v4234 = vadd.f32 %v4232, %v4233
      %v4235 = vrot.slane %v4234, 1
      %v4236 = vadd.f32 %v4234, %v4235
      %v4237 = vmul.f32 %v208, %v208
      %v4238 = vmul.f32 %v209, %v209
      %v4239 = vmul.f32 %v210, %v210
      %v4240 = vmul.f32 %v211, %v211
      %v4241 = vmul.f32 %v212, %v212
      %v4242 = vmul.f32 %v213, %v213
      %v4243 = vmul.f32 %v214, %v214
      %v4244 = vmul.f32 %v215, %v215
      %v4245 = vmul.f32 %v216, %v216
      %v4246 = vmul.f32 %v217, %v217
      %v4247 = vmul.f32 %v218, %v218
      %v4248 = vmul.f32 %v219, %v219
      %v4249 = vmul.f32 %v220, %v220
      %v4250 = vmul.f32 %v221, %v221
      %v4251 = vmul.f32 %v222, %v222
      %v4252 = vmul.f32 %v223, %v223
      %v4253 = vmul.f32 %v224, %v224
      %v4254 = vmul.f32 %v225, %v225
      %v4255 = vmul.f32 %v226, %v226
      %v4256 = vmul.f32 %v227, %v227
      %v4257 = vmul.f32 %v228, %v228
      %v4258 = vmul.f32 %v229, %v229
      %v4259 = vmul.f32 %v230, %v230
      %v4260 = vmul.f32 %v231, %v231
      %v4261 = vmul.f32 %v232, %v232
      %v4262 = vmul.f32 %v233, %v233
      %v4263 = vmul.f32 %v234, %v234
      %v4264 = vmul.f32 %v235, %v235
      %v4265 = vmul.f32 %v236, %v236
      %v4266 = vmul.f32 %v237, %v237
      %v4267 = vmul.f32 %v238, %v238
      %v4268 = vmul.f32 %v239, %v239
      %v4269 = vrot.slane %v4237, 4
      %v4270 = vadd.f32 %v4237, %v4269
      %v4271 = vrot.slane %v4270, 2
      %v4272 = vadd.f32 %v4270, %v4271
      %v4273 = vrot.slane %v4272, 1
      %v4274 = vadd.f32 %v4272, %v4273
      %v4275 = vrot.slane %v4238, 4
      %v4276 = vadd.f32 %v4238, %v4275
      %v4277 = vrot.slane %v4276, 2
      %v4278 = vadd.f32 %v4276, %v4277
      %v4279 = vrot.slane %v4278, 1
      %v4280 = vadd.f32 %v4278, %v4279
      %v4281 = vrot.slane %v4239, 4
      %v4282 = vadd.f32 %v4239, %v4281
      %v4283 = vrot.slane %v4282, 2
      %v4284 = vadd.f32 %v4282, %v4283
      %v4285 = vrot.slane %v4284, 1
      %v4286 = vadd.f32 %v4284, %v4285
      %v4287 = vrot.slane %v4240, 4
      %v4288 = vadd.f32 %v4240, %v4287
      %v4289 = vrot.slane %v4288, 2
      %v4290 = vadd.f32 %v4288, %v4289
      %v4291 = vrot.slane %v4290, 1
      %v4292 = vadd.f32 %v4290, %v4291
      %v4293 = vrot.slane %v4241, 4
      %v4294 = vadd.f32 %v4241, %v4293
      %v4295 = vrot.slane %v4294, 2
      %v4296 = vadd.f32 %v4294, %v4295
      %v4297 = vrot.slane %v4296, 1
      %v4298 = vadd.f32 %v4296, %v4297
      %v4299 = vrot.slane %v4242, 4
      %v4300 = vadd.f32 %v4242, %v4299
      %v4301 = vrot.slane %v4300, 2
      %v4302 = vadd.f32 %v4300, %v4301
      %v4303 = vrot.slane %v4302, 1
      %v4304 = vadd.f32 %v4302, %v4303
      %v4305 = vrot.slane %v4243, 4
      %v4306 = vadd.f32 %v4243, %v4305
      %v4307 = vrot.slane %v4306, 2
      %v4308 = vadd.f32 %v4306, %v4307
      %v4309 = vrot.slane %v4308, 1
      %v4310 = vadd.f32 %v4308, %v4309
      %v4311 = vrot.slane %v4244, 4
      %v4312 = vadd.f32 %v4244, %v4311
      %v4313 = vrot.slane %v4312, 2
      %v4314 = vadd.f32 %v4312, %v4313
      %v4315 = vrot.slane %v4314, 1
      %v4316 = vadd.f32 %v4314, %v4315
      %v4317 = vrot.slane %v4245, 4
      %v4318 = vadd.f32 %v4245, %v4317
      %v4319 = vrot.slane %v4318, 2
      %v4320 = vadd.f32 %v4318, %v4319
      %v4321 = vrot.slane %v4320, 1
      %v4322 = vadd.f32 %v4320, %v4321
      %v4323 = vrot.slane %v4246, 4
      %v4324 = vadd.f32 %v4246, %v4323
      %v4325 = vrot.slane %v4324, 2
      %v4326 = vadd.f32 %v4324, %v4325
      %v4327 = vrot.slane %v4326, 1
      %v4328 = vadd.f32 %v4326, %v4327
      %v4329 = vrot.slane %v4247, 4
      %v4330 = vadd.f32 %v4247, %v4329
      %v4331 = vrot.slane %v4330, 2
      %v4332 = vadd.f32 %v4330, %v4331
      %v4333 = vrot.slane %v4332, 1
      %v4334 = vadd.f32 %v4332, %v4333
      %v4335 = vrot.slane %v4248, 4
      %v4336 = vadd.f32 %v4248, %v4335
      %v4337 = vrot.slane %v4336, 2
      %v4338 = vadd.f32 %v4336, %v4337
      %v4339 = vrot.slane %v4338, 1
      %v4340 = vadd.f32 %v4338, %v4339
      %v4341 = vrot.slane %v4249, 4
      %v4342 = vadd.f32 %v4249, %v4341
      %v4343 = vrot.slane %v4342, 2
      %v4344 = vadd.f32 %v4342, %v4343
      %v4345 = vrot.slane %v4344, 1
      %v4346 = vadd.f32 %v4344, %v4345
      %v4347 = vrot.slane %v4250, 4
      %v4348 = vadd.f32 %v4250, %v4347
      %v4349 = vrot.slane %v4348, 2
      %v4350 = vadd.f32 %v4348, %v4349
      %v4351 = vrot.slane %v4350, 1
      %v4352 = vadd.f32 %v4350, %v4351
      %v4353 = vrot.slane %v4251, 4
      %v4354 = vadd.f32 %v4251, %v4353
      %v4355 = vrot.slane %v4354, 2
      %v4356 = vadd.f32 %v4354, %v4355
      %v4357 = vrot.slane %v4356, 1
      %v4358 = vadd.f32 %v4356, %v4357
      %v4359 = vrot.slane %v4252, 4
      %v4360 = vadd.f32 %v4252, %v4359
      %v4361 = vrot.slane %v4360, 2
      %v4362 = vadd.f32 %v4360, %v4361
      %v4363 = vrot.slane %v4362, 1
      %v4364 = vadd.f32 %v4362, %v4363
      %v4365 = vrot.slane %v4253, 4
      %v4366 = vadd.f32 %v4253, %v4365
      %v4367 = vrot.slane %v4366, 2
      %v4368 = vadd.f32 %v4366, %v4367
      %v4369 = vrot.slane %v4368, 1
      %v4370 = vadd.f32 %v4368, %v4369
      %v4371 = vrot.slane %v4254, 4
      %v4372 = vadd.f32 %v4254, %v4371
      %v4373 = vrot.slane %v4372, 2
      %v4374 = vadd.f32 %v4372, %v4373
      %v4375 = vrot.slane %v4374, 1
      %v4376 = vadd.f32 %v4374, %v4375
      %v4377 = vrot.slane %v4255, 4
      %v4378 = vadd.f32 %v4255, %v4377
      %v4379 = vrot.slane %v4378, 2
      %v4380 = vadd.f32 %v4378, %v4379
      %v4381 = vrot.slane %v4380, 1
      %v4382 = vadd.f32 %v4380, %v4381
      %v4383 = vrot.slane %v4256, 4
      %v4384 = vadd.f32 %v4256, %v4383
      %v4385 = vrot.slane %v4384, 2
      %v4386 = vadd.f32 %v4384, %v4385
      %v4387 = vrot.slane %v4386, 1
      %v4388 = vadd.f32 %v4386, %v4387
      %v4389 = vrot.slane %v4257, 4
      %v4390 = vadd.f32 %v4257, %v4389
      %v4391 = vrot.slane %v4390, 2
      %v4392 = vadd.f32 %v4390, %v4391
      %v4393 = vrot.slane %v4392, 1
      %v4394 = vadd.f32 %v4392, %v4393
      %v4395 = vrot.slane %v4258, 4
      %v4396 = vadd.f32 %v4258, %v4395
      %v4397 = vrot.slane %v4396, 2
      %v4398 = vadd.f32 %v4396, %v4397
      %v4399 = vrot.slane %v4398, 1
      %v4400 = vadd.f32 %v4398, %v4399
      %v4401 = vrot.slane %v4259, 4
      %v4402 = vadd.f32 %v4259, %v4401
      %v4403 = vrot.slane %v4402, 2
      %v4404 = vadd.f32 %v4402, %v4403
      %v4405 = vrot.slane %v4404, 1
      %v4406 = vadd.f32 %v4404, %v4405
      %v4407 = vrot.slane %v4260, 4
      %v4408 = vadd.f32 %v4260, %v4407
      %v4409 = vrot.slane %v4408, 2
      %v4410 = vadd.f32 %v4408, %v4409
      %v4411 = vrot.slane %v4410, 1
      %v4412 = vadd.f32 %v4410, %v4411
      %v4413 = vrot.slane %v4261, 4
      %v4414 = vadd.f32 %v4261, %v4413
      %v4415 = vrot.slane %v4414, 2
      %v4416 = vadd.f32 %v4414, %v4415
      %v4417 = vrot.slane %v4416, 1
      %v4418 = vadd.f32 %v4416, %v4417
      %v4419 = vrot.slane %v4262, 4
      %v4420 = vadd.f32 %v4262, %v4419
      %v4421 = vrot.slane %v4420, 2
      %v4422 = vadd.f32 %v4420, %v4421
      %v4423 = vrot.slane %v4422, 1
      %v4424 = vadd.f32 %v4422, %v4423
      %v4425 = vrot.slane %v4263, 4
      %v4426 = vadd.f32 %v4263, %v4425
      %v4427 = vrot.slane %v4426, 2
      %v4428 = vadd.f32 %v4426, %v4427
      %v4429 = vrot.slane %v4428, 1
      %v4430 = vadd.f32 %v4428, %v4429
      %v4431 = vrot.slane %v4264, 4
      %v4432 = vadd.f32 %v4264, %v4431
      %v4433 = vrot.slane %v4432, 2
      %v4434 = vadd.f32 %v4432, %v4433
      %v4435 = vrot.slane %v4434, 1
      %v4436 = vadd.f32 %v4434, %v4435
      %v4437 = vrot.slane %v4265, 4
      %v4438 = vadd.f32 %v4265, %v4437
      %v4439 = vrot.slane %v4438, 2
      %v4440 = vadd.f32 %v4438, %v4439
      %v4441 = vrot.slane %v4440, 1
      %v4442 = vadd.f32 %v4440, %v4441
      %v4443 = vrot.slane %v4266, 4
      %v4444 = vadd.f32 %v4266, %v4443
      %v4445 = vrot.slane %v4444, 2
      %v4446 = vadd.f32 %v4444, %v4445
      %v4447 = vrot.slane %v4446, 1
      %v4448 = vadd.f32 %v4446, %v4447
      %v4449 = vrot.slane %v4267, 4
      %v4450 = vadd.f32 %v4267, %v4449
      %v4451 = vrot.slane %v4450, 2
      %v4452 = vadd.f32 %v4450, %v4451
      %v4453 = vrot.slane %v4452, 1
      %v4454 = vadd.f32 %v4452, %v4453
      %v4455 = vrot.slane %v4268, 4
      %v4456 = vadd.f32 %v4268, %v4455
      %v4457 = vrot.slane %v4456, 2
      %v4458 = vadd.f32 %v4456, %v4457
      %v4459 = vrot.slane %v4458, 1
      %v4460 = vadd.f32 %v4458, %v4459
      %v4461 = vmul.f32 %v3885, %v3885
      %v4462 = vmul.f32 %v3886, %v3886
      %v4463 = vmul.f32 %v3887, %v3887
      %v4464 = vmul.f32 %v3888, %v3888
      %v4465 = vmul.f32 %v3889, %v3889
      %v4466 = vmul.f32 %v3890, %v3890
      %v4467 = vmul.f32 %v3891, %v3891
      %v4468 = vmul.f32 %v3892, %v3892
      %v4469 = vmul.f32 %v3893, %v3893
      %v4470 = vmul.f32 %v3894, %v3894
      %v4471 = vmul.f32 %v3895, %v3895
      %v4472 = vmul.f32 %v3896, %v3896
      %v4473 = vmul.f32 %v3897, %v3897
      %v4474 = vmul.f32 %v3898, %v3898
      %v4475 = vmul.f32 %v3899, %v3899
      %v4476 = vmul.f32 %v3900, %v3900
      %v4477 = vmul.f32 %v3901, %v3901
      %v4478 = vmul.f32 %v3902, %v3902
      %v4479 = vmul.f32 %v3903, %v3903
      %v4480 = vmul.f32 %v3904, %v3904
      %v4481 = vmul.f32 %v3905, %v3905
      %v4482 = vmul.f32 %v3906, %v3906
      %v4483 = vmul.f32 %v3907, %v3907
      %v4484 = vmul.f32 %v3908, %v3908
      %v4485 = vmul.f32 %v3909, %v3909
      %v4486 = vmul.f32 %v3910, %v3910
      %v4487 = vmul.f32 %v3911, %v3911
      %v4488 = vmul.f32 %v3912, %v3912
      %v4489 = vmul.f32 %v3913, %v3913
      %v4490 = vmul.f32 %v3914, %v3914
      %v4491 = vmul.f32 %v3915, %v3915
      %v4492 = vmul.f32 %v3916, %v3916
      %v4493 = vrot.slane %v4461, 4
      %v4494 = vadd.f32 %v4461, %v4493
      %v4495 = vrot.slane %v4494, 2
      %v4496 = vadd.f32 %v4494, %v4495
      %v4497 = vrot.slane %v4496, 1
      %v4498 = vadd.f32 %v4496, %v4497
      %v4499 = vrot.slane %v4462, 4
      %v4500 = vadd.f32 %v4462, %v4499
      %v4501 = vrot.slane %v4500, 2
      %v4502 = vadd.f32 %v4500, %v4501
      %v4503 = vrot.slane %v4502, 1
      %v4504 = vadd.f32 %v4502, %v4503
      %v4505 = vrot.slane %v4463, 4
      %v4506 = vadd.f32 %v4463, %v4505
      %v4507 = vrot.slane %v4506, 2
      %v4508 = vadd.f32 %v4506, %v4507
      %v4509 = vrot.slane %v4508, 1
      %v4510 = vadd.f32 %v4508, %v4509
      %v4511 = vrot.slane %v4464, 4
      %v4512 = vadd.f32 %v4464, %v4511
      %v4513 = vrot.slane %v4512, 2
      %v4514 = vadd.f32 %v4512, %v4513
      %v4515 = vrot.slane %v4514, 1
      %v4516 = vadd.f32 %v4514, %v4515
      %v4517 = vrot.slane %v4465, 4
      %v4518 = vadd.f32 %v4465, %v4517
      %v4519 = vrot.slane %v4518, 2
      %v4520 = vadd.f32 %v4518, %v4519
      %v4521 = vrot.slane %v4520, 1
      %v4522 = vadd.f32 %v4520, %v4521
      %v4523 = vrot.slane %v4466, 4
      %v4524 = vadd.f32 %v4466, %v4523
      %v4525 = vrot.slane %v4524, 2
      %v4526 = vadd.f32 %v4524, %v4525
      %v4527 = vrot.slane %v4526, 1
      %v4528 = vadd.f32 %v4526, %v4527
      %v4529 = vrot.slane %v4467, 4
      %v4530 = vadd.f32 %v4467, %v4529
      %v4531 = vrot.slane %v4530, 2
      %v4532 = vadd.f32 %v4530, %v4531
      %v4533 = vrot.slane %v4532, 1
      %v4534 = vadd.f32 %v4532, %v4533
      %v4535 = vrot.slane %v4468, 4
      %v4536 = vadd.f32 %v4468, %v4535
      %v4537 = vrot.slane %v4536, 2
      %v4538 = vadd.f32 %v4536, %v4537
      %v4539 = vrot.slane %v4538, 1
      %v4540 = vadd.f32 %v4538, %v4539
      %v4541 = vrot.slane %v4469, 4
      %v4542 = vadd.f32 %v4469, %v4541
      %v4543 = vrot.slane %v4542, 2
      %v4544 = vadd.f32 %v4542, %v4543
      %v4545 = vrot.slane %v4544, 1
      %v4546 = vadd.f32 %v4544, %v4545
      %v4547 = vrot.slane %v4470, 4
      %v4548 = vadd.f32 %v4470, %v4547
      %v4549 = vrot.slane %v4548, 2
      %v4550 = vadd.f32 %v4548, %v4549
      %v4551 = vrot.slane %v4550, 1
      %v4552 = vadd.f32 %v4550, %v4551
      %v4553 = vrot.slane %v4471, 4
      %v4554 = vadd.f32 %v4471, %v4553
      %v4555 = vrot.slane %v4554, 2
      %v4556 = vadd.f32 %v4554, %v4555
      %v4557 = vrot.slane %v4556, 1
      %v4558 = vadd.f32 %v4556, %v4557
      %v4559 = vrot.slane %v4472, 4
      %v4560 = vadd.f32 %v4472, %v4559
      %v4561 = vrot.slane %v4560, 2
      %v4562 = vadd.f32 %v4560, %v4561
      %v4563 = vrot.slane %v4562, 1
      %v4564 = vadd.f32 %v4562, %v4563
      %v4565 = vrot.slane %v4473, 4
      %v4566 = vadd.f32 %v4473, %v4565
      %v4567 = vrot.slane %v4566, 2
      %v4568 = vadd.f32 %v4566, %v4567
      %v4569 = vrot.slane %v4568, 1
      %v4570 = vadd.f32 %v4568, %v4569
      %v4571 = vrot.slane %v4474, 4
      %v4572 = vadd.f32 %v4474, %v4571
      %v4573 = vrot.slane %v4572, 2
      %v4574 = vadd.f32 %v4572, %v4573
      %v4575 = vrot.slane %v4574, 1
      %v4576 = vadd.f32 %v4574, %v4575
      %v4577 = vrot.slane %v4475, 4
      %v4578 = vadd.f32 %v4475, %v4577
      %v4579 = vrot.slane %v4578, 2
      %v4580 = vadd.f32 %v4578, %v4579
      %v4581 = vrot.slane %v4580, 1
      %v4582 = vadd.f32 %v4580, %v4581
      %v4583 = vrot.slane %v4476, 4
      %v4584 = vadd.f32 %v4476, %v4583
      %v4585 = vrot.slane %v4584, 2
      %v4586 = vadd.f32 %v4584, %v4585
      %v4587 = vrot.slane %v4586, 1
      %v4588 = vadd.f32 %v4586, %v4587
      %v4589 = vrot.slane %v4477, 4
      %v4590 = vadd.f32 %v4477, %v4589
      %v4591 = vrot.slane %v4590, 2
      %v4592 = vadd.f32 %v4590, %v4591
      %v4593 = vrot.slane %v4592, 1
      %v4594 = vadd.f32 %v4592, %v4593
      %v4595 = vrot.slane %v4478, 4
      %v4596 = vadd.f32 %v4478, %v4595
      %v4597 = vrot.slane %v4596, 2
      %v4598 = vadd.f32 %v4596, %v4597
      %v4599 = vrot.slane %v4598, 1
      %v4600 = vadd.f32 %v4598, %v4599
      %v4601 = vrot.slane %v4479, 4
      %v4602 = vadd.f32 %v4479, %v4601
      %v4603 = vrot.slane %v4602, 2
      %v4604 = vadd.f32 %v4602, %v4603
      %v4605 = vrot.slane %v4604, 1
      %v4606 = vadd.f32 %v4604, %v4605
      %v4607 = vrot.slane %v4480, 4
      %v4608 = vadd.f32 %v4480, %v4607
      %v4609 = vrot.slane %v4608, 2
      %v4610 = vadd.f32 %v4608, %v4609
      %v4611 = vrot.slane %v4610, 1
      %v4612 = vadd.f32 %v4610, %v4611
      %v4613 = vrot.slane %v4481, 4
      %v4614 = vadd.f32 %v4481, %v4613
      %v4615 = vrot.slane %v4614, 2
      %v4616 = vadd.f32 %v4614, %v4615
      %v4617 = vrot.slane %v4616, 1
      %v4618 = vadd.f32 %v4616, %v4617
      %v4619 = vrot.slane %v4482, 4
      %v4620 = vadd.f32 %v4482, %v4619
      %v4621 = vrot.slane %v4620, 2
      %v4622 = vadd.f32 %v4620, %v4621
      %v4623 = vrot.slane %v4622, 1
      %v4624 = vadd.f32 %v4622, %v4623
      %v4625 = vrot.slane %v4483, 4
      %v4626 = vadd.f32 %v4483, %v4625
      %v4627 = vrot.slane %v4626, 2
      %v4628 = vadd.f32 %v4626, %v4627
      %v4629 = vrot.slane %v4628, 1
      %v4630 = vadd.f32 %v4628, %v4629
      %v4631 = vrot.slane %v4484, 4
      %v4632 = vadd.f32 %v4484, %v4631
      %v4633 = vrot.slane %v4632, 2
      %v4634 = vadd.f32 %v4632, %v4633
      %v4635 = vrot.slane %v4634, 1
      %v4636 = vadd.f32 %v4634, %v4635
      %v4637 = vrot.slane %v4485, 4
      %v4638 = vadd.f32 %v4485, %v4637
      %v4639 = vrot.slane %v4638, 2
      %v4640 = vadd.f32 %v4638, %v4639
      %v4641 = vrot.slane %v4640, 1
      %v4642 = vadd.f32 %v4640, %v4641
      %v4643 = vrot.slane %v4486, 4
      %v4644 = vadd.f32 %v4486, %v4643
      %v4645 = vrot.slane %v4644, 2
      %v4646 = vadd.f32 %v4644, %v4645
      %v4647 = vrot.slane %v4646, 1
      %v4648 = vadd.f32 %v4646, %v4647
      %v4649 = vrot.slane %v4487, 4
      %v4650 = vadd.f32 %v4487, %v4649
      %v4651 = vrot.slane %v4650, 2
      %v4652 = vadd.f32 %v4650, %v4651
      %v4653 = vrot.slane %v4652, 1
      %v4654 = vadd.f32 %v4652, %v4653
      %v4655 = vrot.slane %v4488, 4
      %v4656 = vadd.f32 %v4488, %v4655
      %v4657 = vrot.slane %v4656, 2
      %v4658 = vadd.f32 %v4656, %v4657
      %v4659 = vrot.slane %v4658, 1
      %v4660 = vadd.f32 %v4658, %v4659
      %v4661 = vrot.slane %v4489, 4
      %v4662 = vadd.f32 %v4489, %v4661
      %v4663 = vrot.slane %v4662, 2
      %v4664 = vadd.f32 %v4662, %v4663
      %v4665 = vrot.slane %v4664, 1
      %v4666 = vadd.f32 %v4664, %v4665
      %v4667 = vrot.slane %v4490, 4
      %v4668 = vadd.f32 %v4490, %v4667
      %v4669 = vrot.slane %v4668, 2
      %v4670 = vadd.f32 %v4668, %v4669
      %v4671 = vrot.slane %v4670, 1
      %v4672 = vadd.f32 %v4670, %v4671
      %v4673 = vrot.slane %v4491, 4
      %v4674 = vadd.f32 %v4491, %v4673
      %v4675 = vrot.slane %v4674, 2
      %v4676 = vadd.f32 %v4674, %v4675
      %v4677 = vrot.slane %v4676, 1
      %v4678 = vadd.f32 %v4676, %v4677
      %v4679 = vrot.slane %v4492, 4
      %v4680 = vadd.f32 %v4492, %v4679
      %v4681 = vrot.slane %v4680, 2
      %v4682 = vadd.f32 %v4680, %v4681
      %v4683 = vrot.slane %v4682, 1
      %v4684 = vadd.f32 %v4682, %v4683
      %v4685 = vmul.f32 %v4274, %v4498
      %v4686 = vmul.f32 %v4280, %v4504
      %v4687 = vmul.f32 %v4286, %v4510
      %v4688 = vmul.f32 %v4292, %v4516
      %v4689 = vmul.f32 %v4298, %v4522
      %v4690 = vmul.f32 %v4304, %v4528
      %v4691 = vmul.f32 %v4310, %v4534
      %v4692 = vmul.f32 %v4316, %v4540
      %v4693 = vmul.f32 %v4322, %v4546
      %v4694 = vmul.f32 %v4328, %v4552
      %v4695 = vmul.f32 %v4334, %v4558
      %v4696 = vmul.f32 %v4340, %v4564
      %v4697 = vmul.f32 %v4346, %v4570
      %v4698 = vmul.f32 %v4352, %v4576
      %v4699 = vmul.f32 %v4358, %v4582
      %v4700 = vmul.f32 %v4364, %v4588
      %v4701 = vmul.f32 %v4370, %v4594
      %v4702 = vmul.f32 %v4376, %v4600
      %v4703 = vmul.f32 %v4382, %v4606
      %v4704 = vmul.f32 %v4388, %v4612
      %v4705 = vmul.f32 %v4394, %v4618
      %v4706 = vmul.f32 %v4400, %v4624
      %v4707 = vmul.f32 %v4406, %v4630
      %v4708 = vmul.f32 %v4412, %v4636
      %v4709 = vmul.f32 %v4418, %v4642
      %v4710 = vmul.f32 %v4424, %v4648
      %v4711 = vmul.f32 %v4430, %v4654
      %v4712 = vmul.f32 %v4436, %v4660
      %v4713 = vmul.f32 %v4442, %v4666
      %v4714 = vmul.f32 %v4448, %v4672
      %v4715 = vmul.f32 %v4454, %v4678
      %v4716 = vmul.f32 %v4460, %v4684
      %v4717 = vmax.f32 %v4685, 1e-16
      %v4718 = vmax.f32 %v4686, 1e-16
      %v4719 = vmax.f32 %v4687, 1e-16
      %v4720 = vmax.f32 %v4688, 1e-16
      %v4721 = vmax.f32 %v4689, 1e-16
      %v4722 = vmax.f32 %v4690, 1e-16
      %v4723 = vmax.f32 %v4691, 1e-16
      %v4724 = vmax.f32 %v4692, 1e-16
      %v4725 = vmax.f32 %v4693, 1e-16
      %v4726 = vmax.f32 %v4694, 1e-16
      %v4727 = vmax.f32 %v4695, 1e-16
      %v4728 = vmax.f32 %v4696, 1e-16
      %v4729 = vmax.f32 %v4697, 1e-16
      %v4730 = vmax.f32 %v4698, 1e-16
      %v4731 = vmax.f32 %v4699, 1e-16
      %v4732 = vmax.f32 %v4700, 1e-16
      %v4733 = vmax.f32 %v4701, 1e-16
      %v4734 = vmax.f32 %v4702, 1e-16
      %v4735 = vmax.f32 %v4703, 1e-16
      %v4736 = vmax.f32 %v4704, 1e-16
      %v4737 = vmax.f32 %v4705, 1e-16
      %v4738 = vmax.f32 %v4706, 1e-16
      %v4739 = vmax.f32 %v4707, 1e-16
      %v4740 = vmax.f32 %v4708, 1e-16
      %v4741 = vmax.f32 %v4709, 1e-16
      %v4742 = vmax.f32 %v4710, 1e-16
      %v4743 = vmax.f32 %v4711, 1e-16
      %v4744 = vmax.f32 %v4712, 1e-16
      %v4745 = vmax.f32 %v4713, 1e-16
      %v4746 = vmax.f32 %v4714, 1e-16
      %v4747 = vmax.f32 %v4715, 1e-16
      %v4748 = vmax.f32 %v4716, 1e-16
      %v4749 = vrsqrt.pop %v4717
      %v4750 = vmul.f32 %v4749, %v4717
      %v4751 = vmul.f32 %v4750, %v4749
      %v4752 = vmul.f32 0.5, %v4751
      %v4753 = vsub.f32 1.5, %v4752
      %v4754 = vmul.f32 %v4749, %v4753
      %vm4755 = vweird.f32 %v4717
      %vm4756 = vweird.f32 %v4749
      %vm4757 = vmor %vm4755, %vm4756
      %v4758 = vsel %vm4757, %v4749, %v4754
      %v4759 = vrsqrt.pop %v4718
      %v4760 = vmul.f32 %v4759, %v4718
      %v4761 = vmul.f32 %v4760, %v4759
      %v4762 = vmul.f32 0.5, %v4761
      %v4763 = vsub.f32 1.5, %v4762
      %v4764 = vmul.f32 %v4759, %v4763
      %vm4765 = vweird.f32 %v4718
      %vm4766 = vweird.f32 %v4759
      %vm4767 = vmor %vm4765, %vm4766
      %v4768 = vsel %vm4767, %v4759, %v4764
      %v4769 = vrsqrt.pop %v4719
      %v4770 = vmul.f32 %v4769, %v4719
      %v4771 = vmul.f32 %v4770, %v4769
      %v4772 = vmul.f32 0.5, %v4771
      %v4773 = vsub.f32 1.5, %v4772
      %v4774 = vmul.f32 %v4769, %v4773
      %vm4775 = vweird.f32 %v4719
      %vm4776 = vweird.f32 %v4769
      %vm4777 = vmor %vm4775, %vm4776
      %v4778 = vsel %vm4777, %v4769, %v4774
      %v4779 = vrsqrt.pop %v4720
      %v4780 = vmul.f32 %v4779, %v4720
      %v4781 = vmul.f32 %v4780, %v4779
      %v4782 = vmul.f32 0.5, %v4781
      %v4783 = vsub.f32 1.5, %v4782
      %v4784 = vmul.f32 %v4779, %v4783
      %vm4785 = vweird.f32 %v4720
      %vm4786 = vweird.f32 %v4779
      %vm4787 = vmor %vm4785, %vm4786
      %v4788 = vsel %vm4787, %v4779, %v4784
      %v4789 = vrsqrt.pop %v4721
      %v4790 = vmul.f32 %v4789, %v4721
      %v4791 = vmul.f32 %v4790, %v4789
      %v4792 = vmul.f32 0.5, %v4791
      %v4793 = vsub.f32 1.5, %v4792
      %v4794 = vmul.f32 %v4789, %v4793
      %vm4795 = vweird.f32 %v4721
      %vm4796 = vweird.f32 %v4789
      %vm4797 = vmor %vm4795, %vm4796
      %v4798 = vsel %vm4797, %v4789, %v4794
      %v4799 = vrsqrt.pop %v4722
      %v4800 = vmul.f32 %v4799, %v4722
      %v4801 = vmul.f32 %v4800, %v4799
      %v4802 = vmul.f32 0.5, %v4801
      %v4803 = vsub.f32 1.5, %v4802
      %v4804 = vmul.f32 %v4799, %v4803
      %vm4805 = vweird.f32 %v4722
      %vm4806 = vweird.f32 %v4799
      %vm4807 = vmor %vm4805, %vm4806
      %v4808 = vsel %vm4807, %v4799, %v4804
      %v4809 = vrsqrt.pop %v4723
      %v4810 = vmul.f32 %v4809, %v4723
      %v4811 = vmul.f32 %v4810, %v4809
      %v4812 = vmul.f32 0.5, %v4811
      %v4813 = vsub.f32 1.5, %v4812
      %v4814 = vmul.f32 %v4809, %v4813
      %vm4815 = vweird.f32 %v4723
      %vm4816 = vweird.f32 %v4809
      %vm4817 = vmor %vm4815, %vm4816
      %v4818 = vsel %vm4817, %v4809, %v4814
      %v4819 = vrsqrt.pop %v4724
      %v4820 = vmul.f32 %v4819, %v4724
      %v4821 = vmul.f32 %v4820, %v4819
      %v4822 = vmul.f32 0.5, %v4821
      %v4823 = vsub.f32 1.5, %v4822
      %v4824 = vmul.f32 %v4819, %v4823
      %vm4825 = vweird.f32 %v4724
      %vm4826 = vweird.f32 %v4819
      %vm4827 = vmor %vm4825, %vm4826
      %v4828 = vsel %vm4827, %v4819, %v4824
      %v4829 = vrsqrt.pop %v4725
      %v4830 = vmul.f32 %v4829, %v4725
      %v4831 = vmul.f32 %v4830, %v4829
      %v4832 = vmul.f32 0.5, %v4831
      %v4833 = vsub.f32 1.5, %v4832
      %v4834 = vmul.f32 %v4829, %v4833
      %vm4835 = vweird.f32 %v4725
      %vm4836 = vweird.f32 %v4829
      %vm4837 = vmor %vm4835, %vm4836
      %v4838 = vsel %vm4837, %v4829, %v4834
      %v4839 = vrsqrt.pop %v4726
      %v4840 = vmul.f32 %v4839, %v4726
      %v4841 = vmul.f32 %v4840, %v4839
      %v4842 = vmul.f32 0.5, %v4841
      %v4843 = vsub.f32 1.5, %v4842
      %v4844 = vmul.f32 %v4839, %v4843
      %vm4845 = vweird.f32 %v4726
      %vm4846 = vweird.f32 %v4839
      %vm4847 = vmor %vm4845, %vm4846
      %v4848 = vsel %vm4847, %v4839, %v4844
      %v4849 = vrsqrt.pop %v4727
      %v4850 = vmul.f32 %v4849, %v4727
      %v4851 = vmul.f32 %v4850, %v4849
      %v4852 = vmul.f32 0.5, %v4851
      %v4853 = vsub.f32 1.5, %v4852
      %v4854 = vmul.f32 %v4849, %v4853
      %vm4855 = vweird.f32 %v4727
      %vm4856 = vweird.f32 %v4849
      %vm4857 = vmor %vm4855, %vm4856
      %v4858 = vsel %vm4857, %v4849, %v4854
      %v4859 = vrsqrt.pop %v4728
      %v4860 = vmul.f32 %v4859, %v4728
      %v4861 = vmul.f32 %v4860, %v4859
      %v4862 = vmul.f32 0.5, %v4861
      %v4863 = vsub.f32 1.5, %v4862
      %v4864 = vmul.f32 %v4859, %v4863
      %vm4865 = vweird.f32 %v4728
      %vm4866 = vweird.f32 %v4859
      %vm4867 = vmor %vm4865, %vm4866
      %v4868 = vsel %vm4867, %v4859, %v4864
      %v4869 = vrsqrt.pop %v4729
      %v4870 = vmul.f32 %v4869, %v4729
      %v4871 = vmul.f32 %v4870, %v4869
      %v4872 = vmul.f32 0.5, %v4871
      %v4873 = vsub.f32 1.5, %v4872
      %v4874 = vmul.f32 %v4869, %v4873
      %vm4875 = vweird.f32 %v4729
      %vm4876 = vweird.f32 %v4869
      %vm4877 = vmor %vm4875, %vm4876
      %v4878 = vsel %vm4877, %v4869, %v4874
      %v4879 = vrsqrt.pop %v4730
      %v4880 = vmul.f32 %v4879, %v4730
      %v4881 = vmul.f32 %v4880, %v4879
      %v4882 = vmul.f32 0.5, %v4881
      %v4883 = vsub.f32 1.5, %v4882
      %v4884 = vmul.f32 %v4879, %v4883
      %vm4885 = vweird.f32 %v4730
      %vm4886 = vweird.f32 %v4879
      %vm4887 = vmor %vm4885, %vm4886
      %v4888 = vsel %vm4887, %v4879, %v4884
      %v4889 = vrsqrt.pop %v4731
      %v4890 = vmul.f32 %v4889, %v4731
      %v4891 = vmul.f32 %v4890, %v4889
      %v4892 = vmul.f32 0.5, %v4891
      %v4893 = vsub.f32 1.5, %v4892
      %v4894 = vmul.f32 %v4889, %v4893
      %vm4895 = vweird.f32 %v4731
      %vm4896 = vweird.f32 %v4889
      %vm4897 = vmor %vm4895, %vm4896
      %v4898 = vsel %vm4897, %v4889, %v4894
      %v4899 = vrsqrt.pop %v4732
      %v4900 = vmul.f32 %v4899, %v4732
      %v4901 = vmul.f32 %v4900, %v4899
      %v4902 = vmul.f32 0.5, %v4901
      %v4903 = vsub.f32 1.5, %v4902
      %v4904 = vmul.f32 %v4899, %v4903
      %vm4905 = vweird.f32 %v4732
      %vm4906 = vweird.f32 %v4899
      %vm4907 = vmor %vm4905, %vm4906
      %v4908 = vsel %vm4907, %v4899, %v4904
      %v4909 = vrsqrt.pop %v4733
      %v4910 = vmul.f32 %v4909, %v4733
      %v4911 = vmul.f32 %v4910, %v4909
      %v4912 = vmul.f32 0.5, %v4911
      %v4913 = vsub.f32 1.5, %v4912
      %v4914 = vmul.f32 %v4909, %v4913
      %vm4915 = vweird.f32 %v4733
      %vm4916 = vweird.f32 %v4909
      %vm4917 = vmor %vm4915, %vm4916
      %v4918 = vsel %vm4917, %v4909, %v4914
      %v4919 = vrsqrt.pop %v4734
      %v4920 = vmul.f32 %v4919, %v4734
      %v4921 = vmul.f32 %v4920, %v4919
      %v4922 = vmul.f32 0.5, %v4921
      %v4923 = vsub.f32 1.5, %v4922
      %v4924 = vmul.f32 %v4919, %v4923
      %vm4925 = vweird.f32 %v4734
      %vm4926 = vweird.f32 %v4919
      %vm4927 = vmor %vm4925, %vm4926
      %v4928 = vsel %vm4927, %v4919, %v4924
      %v4929 = vrsqrt.pop %v4735
      %v4930 = vmul.f32 %v4929, %v4735
      %v4931 = vmul.f32 %v4930, %v4929
      %v4932 = vmul.f32 0.5, %v4931
      %v4933 = vsub.f32 1.5, %v4932
      %v4934 = vmul.f32 %v4929, %v4933
      %vm4935 = vweird.f32 %v4735
      %vm4936 = vweird.f32 %v4929
      %vm4937 = vmor %vm4935, %vm4936
      %v4938 = vsel %vm4937, %v4929, %v4934
      %v4939 = vrsqrt.pop %v4736
      %v4940 = vmul.f32 %v4939, %v4736
      %v4941 = vmul.f32 %v4940, %v4939
      %v4942 = vmul.f32 0.5, %v4941
      %v4943 = vsub.f32 1.5, %v4942
      %v4944 = vmul.f32 %v4939, %v4943
      %vm4945 = vweird.f32 %v4736
      %vm4946 = vweird.f32 %v4939
      %vm4947 = vmor %vm4945, %vm4946
      %v4948 = vsel %vm4947, %v4939, %v4944
      %v4949 = vrsqrt.pop %v4737
      %v4950 = vmul.f32 %v4949, %v4737
      %v4951 = vmul.f32 %v4950, %v4949
      %v4952 = vmul.f32 0.5, %v4951
      %v4953 = vsub.f32 1.5, %v4952
      %v4954 = vmul.f32 %v4949, %v4953
      %vm4955 = vweird.f32 %v4737
      %vm4956 = vweird.f32 %v4949
      %vm4957 = vmor %vm4955, %vm4956
      %v4958 = vsel %vm4957, %v4949, %v4954
      %v4959 = vrsqrt.pop %v4738
      %v4960 = vmul.f32 %v4959, %v4738
      %v4961 = vmul.f32 %v4960, %v4959
      %v4962 = vmul.f32 0.5, %v4961
      %v4963 = vsub.f32 1.5, %v4962
      %v4964 = vmul.f32 %v4959, %v4963
      %vm4965 = vweird.f32 %v4738
      %vm4966 = vweird.f32 %v4959
      %vm4967 = vmor %vm4965, %vm4966
      %v4968 = vsel %vm4967, %v4959, %v4964
      %v4969 = vrsqrt.pop %v4739
      %v4970 = vmul.f32 %v4969, %v4739
      %v4971 = vmul.f32 %v4970, %v4969
      %v4972 = vmul.f32 0.5, %v4971
      %v4973 = vsub.f32 1.5, %v4972
      %v4974 = vmul.f32 %v4969, %v4973
      %vm4975 = vweird.f32 %v4739
      %vm4976 = vweird.f32 %v4969
      %vm4977 = vmor %vm4975, %vm4976
      %v4978 = vsel %vm4977, %v4969, %v4974
      %v4979 = vrsqrt.pop %v4740
      %v4980 = vmul.f32 %v4979, %v4740
      %v4981 = vmul.f32 %v4980, %v4979
      %v4982 = vmul.f32 0.5, %v4981
      %v4983 = vsub.f32 1.5, %v4982
      %v4984 = vmul.f32 %v4979, %v4983
      %vm4985 = vweird.f32 %v4740
      %vm4986 = vweird.f32 %v4979
      %vm4987 = vmor %vm4985, %vm4986
      %v4988 = vsel %vm4987, %v4979, %v4984
      %v4989 = vrsqrt.pop %v4741
      %v4990 = vmul.f32 %v4989, %v4741
      %v4991 = vmul.f32 %v4990, %v4989
      %v4992 = vmul.f32 0.5, %v4991
      %v4993 = vsub.f32 1.5, %v4992
      %v4994 = vmul.f32 %v4989, %v4993
      %vm4995 = vweird.f32 %v4741
      %vm4996 = vweird.f32 %v4989
      %vm4997 = vmor %vm4995, %vm4996
      %v4998 = vsel %vm4997, %v4989, %v4994
      %v4999 = vrsqrt.pop %v4742
      %v5000 = vmul.f32 %v4999, %v4742
      %v5001 = vmul.f32 %v5000, %v4999
      %v5002 = vmul.f32 0.5, %v5001
      %v5003 = vsub.f32 1.5, %v5002
      %v5004 = vmul.f32 %v4999, %v5003
      %vm5005 = vweird.f32 %v4742
      %vm5006 = vweird.f32 %v4999
      %vm5007 = vmor %vm5005, %vm5006
      %v5008 = vsel %vm5007, %v4999, %v5004
      %v5009 = vrsqrt.pop %v4743
      %v5010 = vmul.f32 %v5009, %v4743
      %v5011 = vmul.f32 %v5010, %v5009
      %v5012 = vmul.f32 0.5, %v5011
      %v5013 = vsub.f32 1.5, %v5012
      %v5014 = vmul.f32 %v5009, %v5013
      %vm5015 = vweird.f32 %v4743
      %vm5016 = vweird.f32 %v5009
      %vm5017 = vmor %vm5015, %vm5016
      %v5018 = vsel %vm5017, %v5009, %v5014
      %v5019 = vrsqrt.pop %v4744
      %v5020 = vmul.f32 %v5019, %v4744
      %v5021 = vmul.f32 %v5020, %v5019
      %v5022 = vmul.f32 0.5, %v5021
      %v5023 = vsub.f32 1.5, %v5022
      %v5024 = vmul.f32 %v5019, %v5023
      %vm5025 = vweird.f32 %v4744
      %vm5026 = vweird.f32 %v5019
      %vm5027 = vmor %vm5025, %vm5026
      %v5028 = vsel %vm5027, %v5019, %v5024
      %v5029 = vrsqrt.pop %v4745
      %v5030 = vmul.f32 %v5029, %v4745
      %v5031 = vmul.f32 %v5030, %v5029
      %v5032 = vmul.f32 0.5, %v5031
      %v5033 = vsub.f32 1.5, %v5032
      %v5034 = vmul.f32 %v5029, %v5033
      %vm5035 = vweird.f32 %v4745
      %vm5036 = vweird.f32 %v5029
      %vm5037 = vmor %vm5035, %vm5036
      %v5038 = vsel %vm5037, %v5029, %v5034
      %v5039 = vrsqrt.pop %v4746
      %v5040 = vmul.f32 %v5039, %v4746
      %v5041 = vmul.f32 %v5040, %v5039
      %v5042 = vmul.f32 0.5, %v5041
      %v5043 = vsub.f32 1.5, %v5042
      %v5044 = vmul.f32 %v5039, %v5043
      %vm5045 = vweird.f32 %v4746
      %vm5046 = vweird.f32 %v5039
      %vm5047 = vmor %vm5045, %vm5046
      %v5048 = vsel %vm5047, %v5039, %v5044
      %v5049 = vrsqrt.pop %v4747
      %v5050 = vmul.f32 %v5049, %v4747
      %v5051 = vmul.f32 %v5050, %v5049
      %v5052 = vmul.f32 0.5, %v5051
      %v5053 = vsub.f32 1.5, %v5052
      %v5054 = vmul.f32 %v5049, %v5053
      %vm5055 = vweird.f32 %v4747
      %vm5056 = vweird.f32 %v5049
      %vm5057 = vmor %vm5055, %vm5056
      %v5058 = vsel %vm5057, %v5049, %v5054
      %v5059 = vrsqrt.pop %v4748
      %v5060 = vmul.f32 %v5059, %v4748
      %v5061 = vmul.f32 %v5060, %v5059
      %v5062 = vmul.f32 0.5, %v5061
      %v5063 = vsub.f32 1.5, %v5062
      %v5064 = vmul.f32 %v5059, %v5063
      %vm5065 = vweird.f32 %v4748
      %vm5066 = vweird.f32 %v5059
      %vm5067 = vmor %vm5065, %vm5066
      %v5068 = vsel %vm5067, %v5059, %v5064
      %v5069 = vmul.f32 %v4050, %v4758
      %v5070 = vmul.f32 %v4056, %v4768
      %v5071 = vmul.f32 %v4062, %v4778
      %v5072 = vmul.f32 %v4068, %v4788
      %v5073 = vmul.f32 %v4074, %v4798
      %v5074 = vmul.f32 %v4080, %v4808
      %v5075 = vmul.f32 %v4086, %v4818
      %v5076 = vmul.f32 %v4092, %v4828
      %v5077 = vmul.f32 %v4098, %v4838
      %v5078 = vmul.f32 %v4104, %v4848
      %v5079 = vmul.f32 %v4110, %v4858
      %v5080 = vmul.f32 %v4116, %v4868
      %v5081 = vmul.f32 %v4122, %v4878
      %v5082 = vmul.f32 %v4128, %v4888
      %v5083 = vmul.f32 %v4134, %v4898
      %v5084 = vmul.f32 %v4140, %v4908
      %v5085 = vmul.f32 %v4146, %v4918
      %v5086 = vmul.f32 %v4152, %v4928
      %v5087 = vmul.f32 %v4158, %v4938
      %v5088 = vmul.f32 %v4164, %v4948
      %v5089 = vmul.f32 %v4170, %v4958
      %v5090 = vmul.f32 %v4176, %v4968
      %v5091 = vmul.f32 %v4182, %v4978
      %v5092 = vmul.f32 %v4188, %v4988
      %v5093 = vmul.f32 %v4194, %v4998
      %v5094 = vmul.f32 %v4200, %v5008
      %v5095 = vmul.f32 %v4206, %v5018
      %v5096 = vmul.f32 %v4212, %v5028
      %v5097 = vmul.f32 %v4218, %v5038
      %v5098 = vmul.f32 %v4224, %v5048
      %v5099 = vmul.f32 %v4230, %v5058
      %v5100 = vmul.f32 %v4236, %v5068
      %v5101 = vmul.f32 %v240, %v3981
      %v5102 = vmul.f32 %v241, %v3982
      %v5103 = vmul.f32 %v242, %v3983
      %v5104 = vmul.f32 %v243, %v3984
      %v5105 = vmul.f32 %v244, %v3985
      %v5106 = vmul.f32 %v245, %v3986
      %v5107 = vmul.f32 %v246, %v3987
      %v5108 = vmul.f32 %v247, %v3988
      %v5109 = vmul.f32 %v248, %v3989
      %v5110 = vmul.f32 %v249, %v3990
      %v5111 = vmul.f32 %v250, %v3991
      %v5112 = vmul.f32 %v251, %v3992
      %v5113 = vmul.f32 %v252, %v3993
      %v5114 = vmul.f32 %v253, %v3994
      %v5115 = vmul.f32 %v254, %v3995
      %v5116 = vmul.f32 %v255, %v3996
      %v5117 = vmul.f32 %v256, %v3997
      %v5118 = vmul.f32 %v257, %v3998
      %v5119 = vmul.f32 %v258, %v3999
      %v5120 = vmul.f32 %v259, %v4000
      %v5121 = vmul.f32 %v260, %v4001
      %v5122 = vmul.f32 %v261, %v4002
      %v5123 = vmul.f32 %v262, %v4003
      %v5124 = vmul.f32 %v263, %v4004
      %v5125 = vmul.f32 %v264, %v4005
      %v5126 = vmul.f32 %v265, %v4006
      %v5127 = vmul.f32 %v266, %v4007
      %v5128 = vmul.f32 %v267, %v4008
      %v5129 = vmul.f32 %v268, %v4009
      %v5130 = vmul.f32 %v269, %v4010
      %v5131 = vmul.f32 %v270, %v4011
      %v5132 = vmul.f32 %v271, %v4012
      %v5133 = vrot.slane %v5101, 4
      %v5134 = vadd.f32 %v5101, %v5133
      %v5135 = vrot.slane %v5134, 2
      %v5136 = vadd.f32 %v5134, %v5135
      %v5137 = vrot.slane %v5136, 1
      %v5138 = vadd.f32 %v5136, %v5137
      %v5139 = vrot.slane %v5102, 4
      %v5140 = vadd.f32 %v5102, %v5139
      %v5141 = vrot.slane %v5140, 2
      %v5142 = vadd.f32 %v5140, %v5141
      %v5143 = vrot.slane %v5142, 1
      %v5144 = vadd.f32 %v5142, %v5143
      %v5145 = vrot.slane %v5103, 4
      %v5146 = vadd.f32 %v5103, %v5145
      %v5147 = vrot.slane %v5146, 2
      %v5148 = vadd.f32 %v5146, %v5147
      %v5149 = vrot.slane %v5148, 1
      %v5150 = vadd.f32 %v5148, %v5149
      %v5151 = vrot.slane %v5104, 4
      %v5152 = vadd.f32 %v5104, %v5151
      %v5153 = vrot.slane %v5152, 2
      %v5154 = vadd.f32 %v5152, %v5153
      %v5155 = vrot.slane %v5154, 1
      %v5156 = vadd.f32 %v5154, %v5155
      %v5157 = vrot.slane %v5105, 4
      %v5158 = vadd.f32 %v5105, %v5157
      %v5159 = vrot.slane %v5158, 2
      %v5160 = vadd.f32 %v5158, %v5159
      %v5161 = vrot.slane %v5160, 1
      %v5162 = vadd.f32 %v5160, %v5161
      %v5163 = vrot.slane %v5106, 4
      %v5164 = vadd.f32 %v5106, %v5163
      %v5165 = vrot.slane %v5164, 2
      %v5166 = vadd.f32 %v5164, %v5165
      %v5167 = vrot.slane %v5166, 1
      %v5168 = vadd.f32 %v5166, %v5167
      %v5169 = vrot.slane %v5107, 4
      %v5170 = vadd.f32 %v5107, %v5169
      %v5171 = vrot.slane %v5170, 2
      %v5172 = vadd.f32 %v5170, %v5171
      %v5173 = vrot.slane %v5172, 1
      %v5174 = vadd.f32 %v5172, %v5173
      %v5175 = vrot.slane %v5108, 4
      %v5176 = vadd.f32 %v5108, %v5175
      %v5177 = vrot.slane %v5176, 2
      %v5178 = vadd.f32 %v5176, %v5177
      %v5179 = vrot.slane %v5178, 1
      %v5180 = vadd.f32 %v5178, %v5179
      %v5181 = vrot.slane %v5109, 4
      %v5182 = vadd.f32 %v5109, %v5181
      %v5183 = vrot.slane %v5182, 2
      %v5184 = vadd.f32 %v5182, %v5183
      %v5185 = vrot.slane %v5184, 1
      %v5186 = vadd.f32 %v5184, %v5185
      %v5187 = vrot.slane %v5110, 4
      %v5188 = vadd.f32 %v5110, %v5187
      %v5189 = vrot.slane %v5188, 2
      %v5190 = vadd.f32 %v5188, %v5189
      %v5191 = vrot.slane %v5190, 1
      %v5192 = vadd.f32 %v5190, %v5191
      %v5193 = vrot.slane %v5111, 4
      %v5194 = vadd.f32 %v5111, %v5193
      %v5195 = vrot.slane %v5194, 2
      %v5196 = vadd.f32 %v5194, %v5195
      %v5197 = vrot.slane %v5196, 1
      %v5198 = vadd.f32 %v5196, %v5197
      %v5199 = vrot.slane %v5112, 4
      %v5200 = vadd.f32 %v5112, %v5199
      %v5201 = vrot.slane %v5200, 2
      %v5202 = vadd.f32 %v5200, %v5201
      %v5203 = vrot.slane %v5202, 1
      %v5204 = vadd.f32 %v5202, %v5203
      %v5205 = vrot.slane %v5113, 4
      %v5206 = vadd.f32 %v5113, %v5205
      %v5207 = vrot.slane %v5206, 2
      %v5208 = vadd.f32 %v5206, %v5207
      %v5209 = vrot.slane %v5208, 1
      %v5210 = vadd.f32 %v5208, %v5209
      %v5211 = vrot.slane %v5114, 4
      %v5212 = vadd.f32 %v5114, %v5211
      %v5213 = vrot.slane %v5212, 2
      %v5214 = vadd.f32 %v5212, %v5213
      %v5215 = vrot.slane %v5214, 1
      %v5216 = vadd.f32 %v5214, %v5215
      %v5217 = vrot.slane %v5115, 4
      %v5218 = vadd.f32 %v5115, %v5217
      %v5219 = vrot.slane %v5218, 2
      %v5220 = vadd.f32 %v5218, %v5219
      %v5221 = vrot.slane %v5220, 1
      %v5222 = vadd.f32 %v5220, %v5221
      %v5223 = vrot.slane %v5116, 4
      %v5224 = vadd.f32 %v5116, %v5223
      %v5225 = vrot.slane %v5224, 2
      %v5226 = vadd.f32 %v5224, %v5225
      %v5227 = vrot.slane %v5226, 1
      %v5228 = vadd.f32 %v5226, %v5227
      %v5229 = vrot.slane %v5117, 4
      %v5230 = vadd.f32 %v5117, %v5229
      %v5231 = vrot.slane %v5230, 2
      %v5232 = vadd.f32 %v5230, %v5231
      %v5233 = vrot.slane %v5232, 1
      %v5234 = vadd.f32 %v5232, %v5233
      %v5235 = vrot.slane %v5118, 4
      %v5236 = vadd.f32 %v5118, %v5235
      %v5237 = vrot.slane %v5236, 2
      %v5238 = vadd.f32 %v5236, %v5237
      %v5239 = vrot.slane %v5238, 1
      %v5240 = vadd.f32 %v5238, %v5239
      %v5241 = vrot.slane %v5119, 4
      %v5242 = vadd.f32 %v5119, %v5241
      %v5243 = vrot.slane %v5242, 2
      %v5244 = vadd.f32 %v5242, %v5243
      %v5245 = vrot.slane %v5244, 1
      %v5246 = vadd.f32 %v5244, %v5245
      %v5247 = vrot.slane %v5120, 4
      %v5248 = vadd.f32 %v5120, %v5247
      %v5249 = vrot.slane %v5248, 2
      %v5250 = vadd.f32 %v5248, %v5249
      %v5251 = vrot.slane %v5250, 1
      %v5252 = vadd.f32 %v5250, %v5251
      %v5253 = vrot.slane %v5121, 4
      %v5254 = vadd.f32 %v5121, %v5253
      %v5255 = vrot.slane %v5254, 2
      %v5256 = vadd.f32 %v5254, %v5255
      %v5257 = vrot.slane %v5256, 1
      %v5258 = vadd.f32 %v5256, %v5257
      %v5259 = vrot.slane %v5122, 4
      %v5260 = vadd.f32 %v5122, %v5259
      %v5261 = vrot.slane %v5260, 2
      %v5262 = vadd.f32 %v5260, %v5261
      %v5263 = vrot.slane %v5262, 1
      %v5264 = vadd.f32 %v5262, %v5263
      %v5265 = vrot.slane %v5123, 4
      %v5266 = vadd.f32 %v5123, %v5265
      %v5267 = vrot.slane %v5266, 2
      %v5268 = vadd.f32 %v5266, %v5267
      %v5269 = vrot.slane %v5268, 1
      %v5270 = vadd.f32 %v5268, %v5269
      %v5271 = vrot.slane %v5124, 4
      %v5272 = vadd.f32 %v5124, %v5271
      %v5273 = vrot.slane %v5272, 2
      %v5274 = vadd.f32 %v5272, %v5273
      %v5275 = vrot.slane %v5274, 1
      %v5276 = vadd.f32 %v5274, %v5275
      %v5277 = vrot.slane %v5125, 4
      %v5278 = vadd.f32 %v5125, %v5277
      %v5279 = vrot.slane %v5278, 2
      %v5280 = vadd.f32 %v5278, %v5279
      %v5281 = vrot.slane %v5280, 1
      %v5282 = vadd.f32 %v5280, %v5281
      %v5283 = vrot.slane %v5126, 4
      %v5284 = vadd.f32 %v5126, %v5283
      %v5285 = vrot.slane %v5284, 2
      %v5286 = vadd.f32 %v5284, %v5285
      %v5287 = vrot.slane %v5286, 1
      %v5288 = vadd.f32 %v5286, %v5287
      %v5289 = vrot.slane %v5127, 4
      %v5290 = vadd.f32 %v5127, %v5289
      %v5291 = vrot.slane %v5290, 2
      %v5292 = vadd.f32 %v5290, %v5291
      %v5293 = vrot.slane %v5292, 1
      %v5294 = vadd.f32 %v5292, %v5293
      %v5295 = vrot.slane %v5128, 4
      %v5296 = vadd.f32 %v5128, %v5295
      %v5297 = vrot.slane %v5296, 2
      %v5298 = vadd.f32 %v5296, %v5297
      %v5299 = vrot.slane %v5298, 1
      %v5300 = vadd.f32 %v5298, %v5299
      %v5301 = vrot.slane %v5129, 4
      %v5302 = vadd.f32 %v5129, %v5301
      %v5303 = vrot.slane %v5302, 2
      %v5304 = vadd.f32 %v5302, %v5303
      %v5305 = vrot.slane %v5304, 1
      %v5306 = vadd.f32 %v5304, %v5305
      %v5307 = vrot.slane %v5130, 4
      %v5308 = vadd.f32 %v5130, %v5307
      %v5309 = vrot.slane %v5308, 2
      %v5310 = vadd.f32 %v5308, %v5309
      %v5311 = vrot.slane %v5310, 1
      %v5312 = vadd.f32 %v5310, %v5311
      %v5313 = vrot.slane %v5131, 4
      %v5314 = vadd.f32 %v5131, %v5313
      %v5315 = vrot.slane %v5314, 2
      %v5316 = vadd.f32 %v5314, %v5315
      %v5317 = vrot.slane %v5316, 1
      %v5318 = vadd.f32 %v5316, %v5317
      %v5319 = vrot.slane %v5132, 4
      %v5320 = vadd.f32 %v5132, %v5319
      %v5321 = vrot.slane %v5320, 2
      %v5322 = vadd.f32 %v5320, %v5321
      %v5323 = vrot.slane %v5322, 1
      %v5324 = vadd.f32 %v5322, %v5323
      %v5325 = vmul.f32 %v240, %v240
      %v5326 = vmul.f32 %v241, %v241
      %v5327 = vmul.f32 %v242, %v242
      %v5328 = vmul.f32 %v243, %v243
      %v5329 = vmul.f32 %v244, %v244
      %v5330 = vmul.f32 %v245, %v245
      %v5331 = vmul.f32 %v246, %v246
      %v5332 = vmul.f32 %v247, %v247
      %v5333 = vmul.f32 %v248, %v248
      %v5334 = vmul.f32 %v249, %v249
      %v5335 = vmul.f32 %v250, %v250
      %v5336 = vmul.f32 %v251, %v251
      %v5337 = vmul.f32 %v252, %v252
      %v5338 = vmul.f32 %v253, %v253
      %v5339 = vmul.f32 %v254, %v254
      %v5340 = vmul.f32 %v255, %v255
      %v5341 = vmul.f32 %v256, %v256
      %v5342 = vmul.f32 %v257, %v257
      %v5343 = vmul.f32 %v258, %v258
      %v5344 = vmul.f32 %v259, %v259
      %v5345 = vmul.f32 %v260, %v260
      %v5346 = vmul.f32 %v261, %v261
      %v5347 = vmul.f32 %v262, %v262
      %v5348 = vmul.f32 %v263, %v263
      %v5349 = vmul.f32 %v264, %v264
      %v5350 = vmul.f32 %v265, %v265
      %v5351 = vmul.f32 %v266, %v266
      %v5352 = vmul.f32 %v267, %v267
      %v5353 = vmul.f32 %v268, %v268
      %v5354 = vmul.f32 %v269, %v269
      %v5355 = vmul.f32 %v270, %v270
      %v5356 = vmul.f32 %v271, %v271
      %v5357 = vrot.slane %v5325, 4
      %v5358 = vadd.f32 %v5325, %v5357
      %v5359 = vrot.slane %v5358, 2
      %v5360 = vadd.f32 %v5358, %v5359
      %v5361 = vrot.slane %v5360, 1
      %v5362 = vadd.f32 %v5360, %v5361
      %v5363 = vrot.slane %v5326, 4
      %v5364 = vadd.f32 %v5326, %v5363
      %v5365 = vrot.slane %v5364, 2
      %v5366 = vadd.f32 %v5364, %v5365
      %v5367 = vrot.slane %v5366, 1
      %v5368 = vadd.f32 %v5366, %v5367
      %v5369 = vrot.slane %v5327, 4
      %v5370 = vadd.f32 %v5327, %v5369
      %v5371 = vrot.slane %v5370, 2
      %v5372 = vadd.f32 %v5370, %v5371
      %v5373 = vrot.slane %v5372, 1
      %v5374 = vadd.f32 %v5372, %v5373
      %v5375 = vrot.slane %v5328, 4
      %v5376 = vadd.f32 %v5328, %v5375
      %v5377 = vrot.slane %v5376, 2
      %v5378 = vadd.f32 %v5376, %v5377
      %v5379 = vrot.slane %v5378, 1
      %v5380 = vadd.f32 %v5378, %v5379
      %v5381 = vrot.slane %v5329, 4
      %v5382 = vadd.f32 %v5329, %v5381
      %v5383 = vrot.slane %v5382, 2
      %v5384 = vadd.f32 %v5382, %v5383
      %v5385 = vrot.slane %v5384, 1
      %v5386 = vadd.f32 %v5384, %v5385
      %v5387 = vrot.slane %v5330, 4
      %v5388 = vadd.f32 %v5330, %v5387
      %v5389 = vrot.slane %v5388, 2
      %v5390 = vadd.f32 %v5388, %v5389
      %v5391 = vrot.slane %v5390, 1
      %v5392 = vadd.f32 %v5390, %v5391
      %v5393 = vrot.slane %v5331, 4
      %v5394 = vadd.f32 %v5331, %v5393
      %v5395 = vrot.slane %v5394, 2
      %v5396 = vadd.f32 %v5394, %v5395
      %v5397 = vrot.slane %v5396, 1
      %v5398 = vadd.f32 %v5396, %v5397
      %v5399 = vrot.slane %v5332, 4
      %v5400 = vadd.f32 %v5332, %v5399
      %v5401 = vrot.slane %v5400, 2
      %v5402 = vadd.f32 %v5400, %v5401
      %v5403 = vrot.slane %v5402, 1
      %v5404 = vadd.f32 %v5402, %v5403
      %v5405 = vrot.slane %v5333, 4
      %v5406 = vadd.f32 %v5333, %v5405
      %v5407 = vrot.slane %v5406, 2
      %v5408 = vadd.f32 %v5406, %v5407
      %v5409 = vrot.slane %v5408, 1
      %v5410 = vadd.f32 %v5408, %v5409
      %v5411 = vrot.slane %v5334, 4
      %v5412 = vadd.f32 %v5334, %v5411
      %v5413 = vrot.slane %v5412, 2
      %v5414 = vadd.f32 %v5412, %v5413
      %v5415 = vrot.slane %v5414, 1
      %v5416 = vadd.f32 %v5414, %v5415
      %v5417 = vrot.slane %v5335, 4
      %v5418 = vadd.f32 %v5335, %v5417
      %v5419 = vrot.slane %v5418, 2
      %v5420 = vadd.f32 %v5418, %v5419
      %v5421 = vrot.slane %v5420, 1
      %v5422 = vadd.f32 %v5420, %v5421
      %v5423 = vrot.slane %v5336, 4
      %v5424 = vadd.f32 %v5336, %v5423
      %v5425 = vrot.slane %v5424, 2
      %v5426 = vadd.f32 %v5424, %v5425
      %v5427 = vrot.slane %v5426, 1
      %v5428 = vadd.f32 %v5426, %v5427
      %v5429 = vrot.slane %v5337, 4
      %v5430 = vadd.f32 %v5337, %v5429
      %v5431 = vrot.slane %v5430, 2
      %v5432 = vadd.f32 %v5430, %v5431
      %v5433 = vrot.slane %v5432, 1
      %v5434 = vadd.f32 %v5432, %v5433
      %v5435 = vrot.slane %v5338, 4
      %v5436 = vadd.f32 %v5338, %v5435
      %v5437 = vrot.slane %v5436, 2
      %v5438 = vadd.f32 %v5436, %v5437
      %v5439 = vrot.slane %v5438, 1
      %v5440 = vadd.f32 %v5438, %v5439
      %v5441 = vrot.slane %v5339, 4
      %v5442 = vadd.f32 %v5339, %v5441
      %v5443 = vrot.slane %v5442, 2
      %v5444 = vadd.f32 %v5442, %v5443
      %v5445 = vrot.slane %v5444, 1
      %v5446 = vadd.f32 %v5444, %v5445
      %v5447 = vrot.slane %v5340, 4
      %v5448 = vadd.f32 %v5340, %v5447
      %v5449 = vrot.slane %v5448, 2
      %v5450 = vadd.f32 %v5448, %v5449
      %v5451 = vrot.slane %v5450, 1
      %v5452 = vadd.f32 %v5450, %v5451
      %v5453 = vrot.slane %v5341, 4
      %v5454 = vadd.f32 %v5341, %v5453
      %v5455 = vrot.slane %v5454, 2
      %v5456 = vadd.f32 %v5454, %v5455
      %v5457 = vrot.slane %v5456, 1
      %v5458 = vadd.f32 %v5456, %v5457
      %v5459 = vrot.slane %v5342, 4
      %v5460 = vadd.f32 %v5342, %v5459
      %v5461 = vrot.slane %v5460, 2
      %v5462 = vadd.f32 %v5460, %v5461
      %v5463 = vrot.slane %v5462, 1
      %v5464 = vadd.f32 %v5462, %v5463
      %v5465 = vrot.slane %v5343, 4
      %v5466 = vadd.f32 %v5343, %v5465
      %v5467 = vrot.slane %v5466, 2
      %v5468 = vadd.f32 %v5466, %v5467
      %v5469 = vrot.slane %v5468, 1
      %v5470 = vadd.f32 %v5468, %v5469
      %v5471 = vrot.slane %v5344, 4
      %v5472 = vadd.f32 %v5344, %v5471
      %v5473 = vrot.slane %v5472, 2
      %v5474 = vadd.f32 %v5472, %v5473
      %v5475 = vrot.slane %v5474, 1
      %v5476 = vadd.f32 %v5474, %v5475
      %v5477 = vrot.slane %v5345, 4
      %v5478 = vadd.f32 %v5345, %v5477
      %v5479 = vrot.slane %v5478, 2
      %v5480 = vadd.f32 %v5478, %v5479
      %v5481 = vrot.slane %v5480, 1
      %v5482 = vadd.f32 %v5480, %v5481
      %v5483 = vrot.slane %v5346, 4
      %v5484 = vadd.f32 %v5346, %v5483
      %v5485 = vrot.slane %v5484, 2
      %v5486 = vadd.f32 %v5484, %v5485
      %v5487 = vrot.slane %v5486, 1
      %v5488 = vadd.f32 %v5486, %v5487
      %v5489 = vrot.slane %v5347, 4
      %v5490 = vadd.f32 %v5347, %v5489
      %v5491 = vrot.slane %v5490, 2
      %v5492 = vadd.f32 %v5490, %v5491
      %v5493 = vrot.slane %v5492, 1
      %v5494 = vadd.f32 %v5492, %v5493
      %v5495 = vrot.slane %v5348, 4
      %v5496 = vadd.f32 %v5348, %v5495
      %v5497 = vrot.slane %v5496, 2
      %v5498 = vadd.f32 %v5496, %v5497
      %v5499 = vrot.slane %v5498, 1
      %v5500 = vadd.f32 %v5498, %v5499
      %v5501 = vrot.slane %v5349, 4
      %v5502 = vadd.f32 %v5349, %v5501
      %v5503 = vrot.slane %v5502, 2
      %v5504 = vadd.f32 %v5502, %v5503
      %v5505 = vrot.slane %v5504, 1
      %v5506 = vadd.f32 %v5504, %v5505
      %v5507 = vrot.slane %v5350, 4
      %v5508 = vadd.f32 %v5350, %v5507
      %v5509 = vrot.slane %v5508, 2
      %v5510 = vadd.f32 %v5508, %v5509
      %v5511 = vrot.slane %v5510, 1
      %v5512 = vadd.f32 %v5510, %v5511
      %v5513 = vrot.slane %v5351, 4
      %v5514 = vadd.f32 %v5351, %v5513
      %v5515 = vrot.slane %v5514, 2
      %v5516 = vadd.f32 %v5514, %v5515
      %v5517 = vrot.slane %v5516, 1
      %v5518 = vadd.f32 %v5516, %v5517
      %v5519 = vrot.slane %v5352, 4
      %v5520 = vadd.f32 %v5352, %v5519
      %v5521 = vrot.slane %v5520, 2
      %v5522 = vadd.f32 %v5520, %v5521
      %v5523 = vrot.slane %v5522, 1
      %v5524 = vadd.f32 %v5522, %v5523
      %v5525 = vrot.slane %v5353, 4
      %v5526 = vadd.f32 %v5353, %v5525
      %v5527 = vrot.slane %v5526, 2
      %v5528 = vadd.f32 %v5526, %v5527
      %v5529 = vrot.slane %v5528, 1
      %v5530 = vadd.f32 %v5528, %v5529
      %v5531 = vrot.slane %v5354, 4
      %v5532 = vadd.f32 %v5354, %v5531
      %v5533 = vrot.slane %v5532, 2
      %v5534 = vadd.f32 %v5532, %v5533
      %v5535 = vrot.slane %v5534, 1
      %v5536 = vadd.f32 %v5534, %v5535
      %v5537 = vrot.slane %v5355, 4
      %v5538 = vadd.f32 %v5355, %v5537
      %v5539 = vrot.slane %v5538, 2
      %v5540 = vadd.f32 %v5538, %v5539
      %v5541 = vrot.slane %v5540, 1
      %v5542 = vadd.f32 %v5540, %v5541
      %v5543 = vrot.slane %v5356, 4
      %v5544 = vadd.f32 %v5356, %v5543
      %v5545 = vrot.slane %v5544, 2
      %v5546 = vadd.f32 %v5544, %v5545
      %v5547 = vrot.slane %v5546, 1
      %v5548 = vadd.f32 %v5546, %v5547
      %v5549 = vmul.f32 %v3981, %v3981
      %v5550 = vmul.f32 %v3982, %v3982
      %v5551 = vmul.f32 %v3983, %v3983
      %v5552 = vmul.f32 %v3984, %v3984
      %v5553 = vmul.f32 %v3985, %v3985
      %v5554 = vmul.f32 %v3986, %v3986
      %v5555 = vmul.f32 %v3987, %v3987
      %v5556 = vmul.f32 %v3988, %v3988
      %v5557 = vmul.f32 %v3989, %v3989
      %v5558 = vmul.f32 %v3990, %v3990
      %v5559 = vmul.f32 %v3991, %v3991
      %v5560 = vmul.f32 %v3992, %v3992
      %v5561 = vmul.f32 %v3993, %v3993
      %v5562 = vmul.f32 %v3994, %v3994
      %v5563 = vmul.f32 %v3995, %v3995
      %v5564 = vmul.f32 %v3996, %v3996
      %v5565 = vmul.f32 %v3997, %v3997
      %v5566 = vmul.f32 %v3998, %v3998
      %v5567 = vmul.f32 %v3999, %v3999
      %v5568 = vmul.f32 %v4000, %v4000
      %v5569 = vmul.f32 %v4001, %v4001
      %v5570 = vmul.f32 %v4002, %v4002
      %v5571 = vmul.f32 %v4003, %v4003
      %v5572 = vmul.f32 %v4004, %v4004
      %v5573 = vmul.f32 %v4005, %v4005
      %v5574 = vmul.f32 %v4006, %v4006
      %v5575 = vmul.f32 %v4007, %v4007
      %v5576 = vmul.f32 %v4008, %v4008
      %v5577 = vmul.f32 %v4009, %v4009
      %v5578 = vmul.f32 %v4010, %v4010
      %v5579 = vmul.f32 %v4011, %v4011
      %v5580 = vmul.f32 %v4012, %v4012
      %v5581 = vrot.slane %v5549, 4
      %v5582 = vadd.f32 %v5549, %v5581
      %v5583 = vrot.slane %v5582, 2
      %v5584 = vadd.f32 %v5582, %v5583
      %v5585 = vrot.slane %v5584, 1
      %v5586 = vadd.f32 %v5584, %v5585
      %v5587 = vrot.slane %v5550, 4
      %v5588 = vadd.f32 %v5550, %v5587
      %v5589 = vrot.slane %v5588, 2
      %v5590 = vadd.f32 %v5588, %v5589
      %v5591 = vrot.slane %v5590, 1
      %v5592 = vadd.f32 %v5590, %v5591
      %v5593 = vrot.slane %v5551, 4
      %v5594 = vadd.f32 %v5551, %v5593
      %v5595 = vrot.slane %v5594, 2
      %v5596 = vadd.f32 %v5594, %v5595
      %v5597 = vrot.slane %v5596, 1
      %v5598 = vadd.f32 %v5596, %v5597
      %v5599 = vrot.slane %v5552, 4
      %v5600 = vadd.f32 %v5552, %v5599
      %v5601 = vrot.slane %v5600, 2
      %v5602 = vadd.f32 %v5600, %v5601
      %v5603 = vrot.slane %v5602, 1
      %v5604 = vadd.f32 %v5602, %v5603
      %v5605 = vrot.slane %v5553, 4
      %v5606 = vadd.f32 %v5553, %v5605
      %v5607 = vrot.slane %v5606, 2
      %v5608 = vadd.f32 %v5606, %v5607
      %v5609 = vrot.slane %v5608, 1
      %v5610 = vadd.f32 %v5608, %v5609
      %v5611 = vrot.slane %v5554, 4
      %v5612 = vadd.f32 %v5554, %v5611
      %v5613 = vrot.slane %v5612, 2
      %v5614 = vadd.f32 %v5612, %v5613
      %v5615 = vrot.slane %v5614, 1
      %v5616 = vadd.f32 %v5614, %v5615
      %v5617 = vrot.slane %v5555, 4
      %v5618 = vadd.f32 %v5555, %v5617
      %v5619 = vrot.slane %v5618, 2
      %v5620 = vadd.f32 %v5618, %v5619
      %v5621 = vrot.slane %v5620, 1
      %v5622 = vadd.f32 %v5620, %v5621
      %v5623 = vrot.slane %v5556, 4
      %v5624 = vadd.f32 %v5556, %v5623
      %v5625 = vrot.slane %v5624, 2
      %v5626 = vadd.f32 %v5624, %v5625
      %v5627 = vrot.slane %v5626, 1
      %v5628 = vadd.f32 %v5626, %v5627
      %v5629 = vrot.slane %v5557, 4
      %v5630 = vadd.f32 %v5557, %v5629
      %v5631 = vrot.slane %v5630, 2
      %v5632 = vadd.f32 %v5630, %v5631
      %v5633 = vrot.slane %v5632, 1
      %v5634 = vadd.f32 %v5632, %v5633
      %v5635 = vrot.slane %v5558, 4
      %v5636 = vadd.f32 %v5558, %v5635
      %v5637 = vrot.slane %v5636, 2
      %v5638 = vadd.f32 %v5636, %v5637
      %v5639 = vrot.slane %v5638, 1
      %v5640 = vadd.f32 %v5638, %v5639
      %v5641 = vrot.slane %v5559, 4
      %v5642 = vadd.f32 %v5559, %v5641
      %v5643 = vrot.slane %v5642, 2
      %v5644 = vadd.f32 %v5642, %v5643
      %v5645 = vrot.slane %v5644, 1
      %v5646 = vadd.f32 %v5644, %v5645
      %v5647 = vrot.slane %v5560, 4
      %v5648 = vadd.f32 %v5560, %v5647
      %v5649 = vrot.slane %v5648, 2
      %v5650 = vadd.f32 %v5648, %v5649
      %v5651 = vrot.slane %v5650, 1
      %v5652 = vadd.f32 %v5650, %v5651
      %v5653 = vrot.slane %v5561, 4
      %v5654 = vadd.f32 %v5561, %v5653
      %v5655 = vrot.slane %v5654, 2
      %v5656 = vadd.f32 %v5654, %v5655
      %v5657 = vrot.slane %v5656, 1
      %v5658 = vadd.f32 %v5656, %v5657
      %v5659 = vrot.slane %v5562, 4
      %v5660 = vadd.f32 %v5562, %v5659
      %v5661 = vrot.slane %v5660, 2
      %v5662 = vadd.f32 %v5660, %v5661
      %v5663 = vrot.slane %v5662, 1
      %v5664 = vadd.f32 %v5662, %v5663
      %v5665 = vrot.slane %v5563, 4
      %v5666 = vadd.f32 %v5563, %v5665
      %v5667 = vrot.slane %v5666, 2
      %v5668 = vadd.f32 %v5666, %v5667
      %v5669 = vrot.slane %v5668, 1
      %v5670 = vadd.f32 %v5668, %v5669
      %v5671 = vrot.slane %v5564, 4
      %v5672 = vadd.f32 %v5564, %v5671
      %v5673 = vrot.slane %v5672, 2
      %v5674 = vadd.f32 %v5672, %v5673
      %v5675 = vrot.slane %v5674, 1
      %v5676 = vadd.f32 %v5674, %v5675
      %v5677 = vrot.slane %v5565, 4
      %v5678 = vadd.f32 %v5565, %v5677
      %v5679 = vrot.slane %v5678, 2
      %v5680 = vadd.f32 %v5678, %v5679
      %v5681 = vrot.slane %v5680, 1
      %v5682 = vadd.f32 %v5680, %v5681
      %v5683 = vrot.slane %v5566, 4
      %v5684 = vadd.f32 %v5566, %v5683
      %v5685 = vrot.slane %v5684, 2
      %v5686 = vadd.f32 %v5684, %v5685
      %v5687 = vrot.slane %v5686, 1
      %v5688 = vadd.f32 %v5686, %v5687
      %v5689 = vrot.slane %v5567, 4
      %v5690 = vadd.f32 %v5567, %v5689
      %v5691 = vrot.slane %v5690, 2
      %v5692 = vadd.f32 %v5690, %v5691
      %v5693 = vrot.slane %v5692, 1
      %v5694 = vadd.f32 %v5692, %v5693
      %v5695 = vrot.slane %v5568, 4
      %v5696 = vadd.f32 %v5568, %v5695
      %v5697 = vrot.slane %v5696, 2
      %v5698 = vadd.f32 %v5696, %v5697
      %v5699 = vrot.slane %v5698, 1
      %v5700 = vadd.f32 %v5698, %v5699
      %v5701 = vrot.slane %v5569, 4
      %v5702 = vadd.f32 %v5569, %v5701
      %v5703 = vrot.slane %v5702, 2
      %v5704 = vadd.f32 %v5702, %v5703
      %v5705 = vrot.slane %v5704, 1
      %v5706 = vadd.f32 %v5704, %v5705
      %v5707 = vrot.slane %v5570, 4
      %v5708 = vadd.f32 %v5570, %v5707
      %v5709 = vrot.slane %v5708, 2
      %v5710 = vadd.f32 %v5708, %v5709
      %v5711 = vrot.slane %v5710, 1
      %v5712 = vadd.f32 %v5710, %v5711
      %v5713 = vrot.slane %v5571, 4
      %v5714 = vadd.f32 %v5571, %v5713
      %v5715 = vrot.slane %v5714, 2
      %v5716 = vadd.f32 %v5714, %v5715
      %v5717 = vrot.slane %v5716, 1
      %v5718 = vadd.f32 %v5716, %v5717
      %v5719 = vrot.slane %v5572, 4
      %v5720 = vadd.f32 %v5572, %v5719
      %v5721 = vrot.slane %v5720, 2
      %v5722 = vadd.f32 %v5720, %v5721
      %v5723 = vrot.slane %v5722, 1
      %v5724 = vadd.f32 %v5722, %v5723
      %v5725 = vrot.slane %v5573, 4
      %v5726 = vadd.f32 %v5573, %v5725
      %v5727 = vrot.slane %v5726, 2
      %v5728 = vadd.f32 %v5726, %v5727
      %v5729 = vrot.slane %v5728, 1
      %v5730 = vadd.f32 %v5728, %v5729
      %v5731 = vrot.slane %v5574, 4
      %v5732 = vadd.f32 %v5574, %v5731
      %v5733 = vrot.slane %v5732, 2
      %v5734 = vadd.f32 %v5732, %v5733
      %v5735 = vrot.slane %v5734, 1
      %v5736 = vadd.f32 %v5734, %v5735
      %v5737 = vrot.slane %v5575, 4
      %v5738 = vadd.f32 %v5575, %v5737
      %v5739 = vrot.slane %v5738, 2
      %v5740 = vadd.f32 %v5738, %v5739
      %v5741 = vrot.slane %v5740, 1
      %v5742 = vadd.f32 %v5740, %v5741
      %v5743 = vrot.slane %v5576, 4
      %v5744 = vadd.f32 %v5576, %v5743
      %v5745 = vrot.slane %v5744, 2
      %v5746 = vadd.f32 %v5744, %v5745
      %v5747 = vrot.slane %v5746, 1
      %v5748 = vadd.f32 %v5746, %v5747
      %v5749 = vrot.slane %v5577, 4
      %v5750 = vadd.f32 %v5577, %v5749
      %v5751 = vrot.slane %v5750, 2
      %v5752 = vadd.f32 %v5750, %v5751
      %v5753 = vrot.slane %v5752, 1
      %v5754 = vadd.f32 %v5752, %v5753
      %v5755 = vrot.slane %v5578, 4
      %v5756 = vadd.f32 %v5578, %v5755
      %v5757 = vrot.slane %v5756, 2
      %v5758 = vadd.f32 %v5756, %v5757
      %v5759 = vrot.slane %v5758, 1
      %v5760 = vadd.f32 %v5758, %v5759
      %v5761 = vrot.slane %v5579, 4
      %v5762 = vadd.f32 %v5579, %v5761
      %v5763 = vrot.slane %v5762, 2
      %v5764 = vadd.f32 %v5762, %v5763
      %v5765 = vrot.slane %v5764, 1
      %v5766 = vadd.f32 %v5764, %v5765
      %v5767 = vrot.slane %v5580, 4
      %v5768 = vadd.f32 %v5580, %v5767
      %v5769 = vrot.slane %v5768, 2
      %v5770 = vadd.f32 %v5768, %v5769
      %v5771 = vrot.slane %v5770, 1
      %v5772 = vadd.f32 %v5770, %v5771
      %v5773 = vmul.f32 %v5362, %v5586
      %v5774 = vmul.f32 %v5368, %v5592
      %v5775 = vmul.f32 %v5374, %v5598
      %v5776 = vmul.f32 %v5380, %v5604
      %v5777 = vmul.f32 %v5386, %v5610
      %v5778 = vmul.f32 %v5392, %v5616
      %v5779 = vmul.f32 %v5398, %v5622
      %v5780 = vmul.f32 %v5404, %v5628
      %v5781 = vmul.f32 %v5410, %v5634
      %v5782 = vmul.f32 %v5416, %v5640
      %v5783 = vmul.f32 %v5422, %v5646
      %v5784 = vmul.f32 %v5428, %v5652
      %v5785 = vmul.f32 %v5434, %v5658
      %v5786 = vmul.f32 %v5440, %v5664
      %v5787 = vmul.f32 %v5446, %v5670
      %v5788 = vmul.f32 %v5452, %v5676
      %v5789 = vmul.f32 %v5458, %v5682
      %v5790 = vmul.f32 %v5464, %v5688
      %v5791 = vmul.f32 %v5470, %v5694
      %v5792 = vmul.f32 %v5476, %v5700
      %v5793 = vmul.f32 %v5482, %v5706
      %v5794 = vmul.f32 %v5488, %v5712
      %v5795 = vmul.f32 %v5494, %v5718
      %v5796 = vmul.f32 %v5500, %v5724
      %v5797 = vmul.f32 %v5506, %v5730
      %v5798 = vmul.f32 %v5512, %v5736
      %v5799 = vmul.f32 %v5518, %v5742
      %v5800 = vmul.f32 %v5524, %v5748
      %v5801 = vmul.f32 %v5530, %v5754
      %v5802 = vmul.f32 %v5536, %v5760
      %v5803 = vmul.f32 %v5542, %v5766
      %v5804 = vmul.f32 %v5548, %v5772
      %v5805 = vmax.f32 %v5773, 1e-16
      %v5806 = vmax.f32 %v5774, 1e-16
      %v5807 = vmax.f32 %v5775, 1e-16
      %v5808 = vmax.f32 %v5776, 1e-16
      %v5809 = vmax.f32 %v5777, 1e-16
      %v5810 = vmax.f32 %v5778, 1e-16
      %v5811 = vmax.f32 %v5779, 1e-16
      %v5812 = vmax.f32 %v5780, 1e-16
      %v5813 = vmax.f32 %v5781, 1e-16
      %v5814 = vmax.f32 %v5782, 1e-16
      %v5815 = vmax.f32 %v5783, 1e-16
      %v5816 = vmax.f32 %v5784, 1e-16
      %v5817 = vmax.f32 %v5785, 1e-16
      %v5818 = vmax.f32 %v5786, 1e-16
      %v5819 = vmax.f32 %v5787, 1e-16
      %v5820 = vmax.f32 %v5788, 1e-16
      %v5821 = vmax.f32 %v5789, 1e-16
      %v5822 = vmax.f32 %v5790, 1e-16
      %v5823 = vmax.f32 %v5791, 1e-16
      %v5824 = vmax.f32 %v5792, 1e-16
      %v5825 = vmax.f32 %v5793, 1e-16
      %v5826 = vmax.f32 %v5794, 1e-16
      %v5827 = vmax.f32 %v5795, 1e-16
      %v5828 = vmax.f32 %v5796, 1e-16
      %v5829 = vmax.f32 %v5797, 1e-16
      %v5830 = vmax.f32 %v5798, 1e-16
      %v5831 = vmax.f32 %v5799, 1e-16
      %v5832 = vmax.f32 %v5800, 1e-16
      %v5833 = vmax.f32 %v5801, 1e-16
      %v5834 = vmax.f32 %v5802, 1e-16
      %v5835 = vmax.f32 %v5803, 1e-16
      %v5836 = vmax.f32 %v5804, 1e-16
      %v5837 = vrsqrt.pop %v5805
      %v5838 = vmul.f32 %v5837, %v5805
      %v5839 = vmul.f32 %v5838, %v5837
      %v5840 = vmul.f32 0.5, %v5839
      %v5841 = vsub.f32 1.5, %v5840
      %v5842 = vmul.f32 %v5837, %v5841
      %vm5843 = vweird.f32 %v5805
      %vm5844 = vweird.f32 %v5837
      %vm5845 = vmor %vm5843, %vm5844
      %v5846 = vsel %vm5845, %v5837, %v5842
      %v5847 = vrsqrt.pop %v5806
      %v5848 = vmul.f32 %v5847, %v5806
      %v5849 = vmul.f32 %v5848, %v5847
      %v5850 = vmul.f32 0.5, %v5849
      %v5851 = vsub.f32 1.5, %v5850
      %v5852 = vmul.f32 %v5847, %v5851
      %vm5853 = vweird.f32 %v5806
      %vm5854 = vweird.f32 %v5847
      %vm5855 = vmor %vm5853, %vm5854
      %v5856 = vsel %vm5855, %v5847, %v5852
      %v5857 = vrsqrt.pop %v5807
      %v5858 = vmul.f32 %v5857, %v5807
      %v5859 = vmul.f32 %v5858, %v5857
      %v5860 = vmul.f32 0.5, %v5859
      %v5861 = vsub.f32 1.5, %v5860
      %v5862 = vmul.f32 %v5857, %v5861
      %vm5863 = vweird.f32 %v5807
      %vm5864 = vweird.f32 %v5857
      %vm5865 = vmor %vm5863, %vm5864
      %v5866 = vsel %vm5865, %v5857, %v5862
      %v5867 = vrsqrt.pop %v5808
      %v5868 = vmul.f32 %v5867, %v5808
      %v5869 = vmul.f32 %v5868, %v5867
      %v5870 = vmul.f32 0.5, %v5869
      %v5871 = vsub.f32 1.5, %v5870
      %v5872 = vmul.f32 %v5867, %v5871
      %vm5873 = vweird.f32 %v5808
      %vm5874 = vweird.f32 %v5867
      %vm5875 = vmor %vm5873, %vm5874
      %v5876 = vsel %vm5875, %v5867, %v5872
      %v5877 = vrsqrt.pop %v5809
      %v5878 = vmul.f32 %v5877, %v5809
      %v5879 = vmul.f32 %v5878, %v5877
      %v5880 = vmul.f32 0.5, %v5879
      %v5881 = vsub.f32 1.5, %v5880
      %v5882 = vmul.f32 %v5877, %v5881
      %vm5883 = vweird.f32 %v5809
      %vm5884 = vweird.f32 %v5877
      %vm5885 = vmor %vm5883, %vm5884
      %v5886 = vsel %vm5885, %v5877, %v5882
      %v5887 = vrsqrt.pop %v5810
      %v5888 = vmul.f32 %v5887, %v5810
      %v5889 = vmul.f32 %v5888, %v5887
      %v5890 = vmul.f32 0.5, %v5889
      %v5891 = vsub.f32 1.5, %v5890
      %v5892 = vmul.f32 %v5887, %v5891
      %vm5893 = vweird.f32 %v5810
      %vm5894 = vweird.f32 %v5887
      %vm5895 = vmor %vm5893, %vm5894
      %v5896 = vsel %vm5895, %v5887, %v5892
      %v5897 = vrsqrt.pop %v5811
      %v5898 = vmul.f32 %v5897, %v5811
      %v5899 = vmul.f32 %v5898, %v5897
      %v5900 = vmul.f32 0.5, %v5899
      %v5901 = vsub.f32 1.5, %v5900
      %v5902 = vmul.f32 %v5897, %v5901
      %vm5903 = vweird.f32 %v5811
      %vm5904 = vweird.f32 %v5897
      %vm5905 = vmor %vm5903, %vm5904
      %v5906 = vsel %vm5905, %v5897, %v5902
      %v5907 = vrsqrt.pop %v5812
      %v5908 = vmul.f32 %v5907, %v5812
      %v5909 = vmul.f32 %v5908, %v5907
      %v5910 = vmul.f32 0.5, %v5909
      %v5911 = vsub.f32 1.5, %v5910
      %v5912 = vmul.f32 %v5907, %v5911
      %vm5913 = vweird.f32 %v5812
      %vm5914 = vweird.f32 %v5907
      %vm5915 = vmor %vm5913, %vm5914
      %v5916 = vsel %vm5915, %v5907, %v5912
      %v5917 = vrsqrt.pop %v5813
      %v5918 = vmul.f32 %v5917, %v5813
      %v5919 = vmul.f32 %v5918, %v5917
      %v5920 = vmul.f32 0.5, %v5919
      %v5921 = vsub.f32 1.5, %v5920
      %v5922 = vmul.f32 %v5917, %v5921
      %vm5923 = vweird.f32 %v5813
      %vm5924 = vweird.f32 %v5917
      %vm5925 = vmor %vm5923, %vm5924
      %v5926 = vsel %vm5925, %v5917, %v5922
      %v5927 = vrsqrt.pop %v5814
      %v5928 = vmul.f32 %v5927, %v5814
      %v5929 = vmul.f32 %v5928, %v5927
      %v5930 = vmul.f32 0.5, %v5929
      %v5931 = vsub.f32 1.5, %v5930
      %v5932 = vmul.f32 %v5927, %v5931
      %vm5933 = vweird.f32 %v5814
      %vm5934 = vweird.f32 %v5927
      %vm5935 = vmor %vm5933, %vm5934
      %v5936 = vsel %vm5935, %v5927, %v5932
      %v5937 = vrsqrt.pop %v5815
      %v5938 = vmul.f32 %v5937, %v5815
      %v5939 = vmul.f32 %v5938, %v5937
      %v5940 = vmul.f32 0.5, %v5939
      %v5941 = vsub.f32 1.5, %v5940
      %v5942 = vmul.f32 %v5937, %v5941
      %vm5943 = vweird.f32 %v5815
      %vm5944 = vweird.f32 %v5937
      %vm5945 = vmor %vm5943, %vm5944
      %v5946 = vsel %vm5945, %v5937, %v5942
      %v5947 = vrsqrt.pop %v5816
      %v5948 = vmul.f32 %v5947, %v5816
      %v5949 = vmul.f32 %v5948, %v5947
      %v5950 = vmul.f32 0.5, %v5949
      %v5951 = vsub.f32 1.5, %v5950
      %v5952 = vmul.f32 %v5947, %v5951
      %vm5953 = vweird.f32 %v5816
      %vm5954 = vweird.f32 %v5947
      %vm5955 = vmor %vm5953, %vm5954
      %v5956 = vsel %vm5955, %v5947, %v5952
      %v5957 = vrsqrt.pop %v5817
      %v5958 = vmul.f32 %v5957, %v5817
      %v5959 = vmul.f32 %v5958, %v5957
      %v5960 = vmul.f32 0.5, %v5959
      %v5961 = vsub.f32 1.5, %v5960
      %v5962 = vmul.f32 %v5957, %v5961
      %vm5963 = vweird.f32 %v5817
      %vm5964 = vweird.f32 %v5957
      %vm5965 = vmor %vm5963, %vm5964
      %v5966 = vsel %vm5965, %v5957, %v5962
      %v5967 = vrsqrt.pop %v5818
      %v5968 = vmul.f32 %v5967, %v5818
      %v5969 = vmul.f32 %v5968, %v5967
      %v5970 = vmul.f32 0.5, %v5969
      %v5971 = vsub.f32 1.5, %v5970
      %v5972 = vmul.f32 %v5967, %v5971
      %vm5973 = vweird.f32 %v5818
      %vm5974 = vweird.f32 %v5967
      %vm5975 = vmor %vm5973, %vm5974
      %v5976 = vsel %vm5975, %v5967, %v5972
      %v5977 = vrsqrt.pop %v5819
      %v5978 = vmul.f32 %v5977, %v5819
      %v5979 = vmul.f32 %v5978, %v5977
      %v5980 = vmul.f32 0.5, %v5979
      %v5981 = vsub.f32 1.5, %v5980
      %v5982 = vmul.f32 %v5977, %v5981
      %vm5983 = vweird.f32 %v5819
      %vm5984 = vweird.f32 %v5977
      %vm5985 = vmor %vm5983, %vm5984
      %v5986 = vsel %vm5985, %v5977, %v5982
      %v5987 = vrsqrt.pop %v5820
      %v5988 = vmul.f32 %v5987, %v5820
      %v5989 = vmul.f32 %v5988, %v5987
      %v5990 = vmul.f32 0.5, %v5989
      %v5991 = vsub.f32 1.5, %v5990
      %v5992 = vmul.f32 %v5987, %v5991
      %vm5993 = vweird.f32 %v5820
      %vm5994 = vweird.f32 %v5987
      %vm5995 = vmor %vm5993, %vm5994
      %v5996 = vsel %vm5995, %v5987, %v5992
      %v5997 = vrsqrt.pop %v5821
      %v5998 = vmul.f32 %v5997, %v5821
      %v5999 = vmul.f32 %v5998, %v5997
      %v6000 = vmul.f32 0.5, %v5999
      %v6001 = vsub.f32 1.5, %v6000
      %v6002 = vmul.f32 %v5997, %v6001
      %vm6003 = vweird.f32 %v5821
      %vm6004 = vweird.f32 %v5997
      %vm6005 = vmor %vm6003, %vm6004
      %v6006 = vsel %vm6005, %v5997, %v6002
      %v6007 = vrsqrt.pop %v5822
      %v6008 = vmul.f32 %v6007, %v5822
      %v6009 = vmul.f32 %v6008, %v6007
      %v6010 = vmul.f32 0.5, %v6009
      %v6011 = vsub.f32 1.5, %v6010
      %v6012 = vmul.f32 %v6007, %v6011
      %vm6013 = vweird.f32 %v5822
      %vm6014 = vweird.f32 %v6007
      %vm6015 = vmor %vm6013, %vm6014
      %v6016 = vsel %vm6015, %v6007, %v6012
      %v6017 = vrsqrt.pop %v5823
      %v6018 = vmul.f32 %v6017, %v5823
      %v6019 = vmul.f32 %v6018, %v6017
      %v6020 = vmul.f32 0.5, %v6019
      %v6021 = vsub.f32 1.5, %v6020
      %v6022 = vmul.f32 %v6017, %v6021
      %vm6023 = vweird.f32 %v5823
      %vm6024 = vweird.f32 %v6017
      %vm6025 = vmor %vm6023, %vm6024
      %v6026 = vsel %vm6025, %v6017, %v6022
      %v6027 = vrsqrt.pop %v5824
      %v6028 = vmul.f32 %v6027, %v5824
      %v6029 = vmul.f32 %v6028, %v6027
      %v6030 = vmul.f32 0.5, %v6029
      %v6031 = vsub.f32 1.5, %v6030
      %v6032 = vmul.f32 %v6027, %v6031
      %vm6033 = vweird.f32 %v5824
      %vm6034 = vweird.f32 %v6027
      %vm6035 = vmor %vm6033, %vm6034
      %v6036 = vsel %vm6035, %v6027, %v6032
      %v6037 = vrsqrt.pop %v5825
      %v6038 = vmul.f32 %v6037, %v5825
      %v6039 = vmul.f32 %v6038, %v6037
      %v6040 = vmul.f32 0.5, %v6039
      %v6041 = vsub.f32 1.5, %v6040
      %v6042 = vmul.f32 %v6037, %v6041
      %vm6043 = vweird.f32 %v5825
      %vm6044 = vweird.f32 %v6037
      %vm6045 = vmor %vm6043, %vm6044
      %v6046 = vsel %vm6045, %v6037, %v6042
      %v6047 = vrsqrt.pop %v5826
      %v6048 = vmul.f32 %v6047, %v5826
      %v6049 = vmul.f32 %v6048, %v6047
      %v6050 = vmul.f32 0.5, %v6049
      %v6051 = vsub.f32 1.5, %v6050
      %v6052 = vmul.f32 %v6047, %v6051
      %vm6053 = vweird.f32 %v5826
      %vm6054 = vweird.f32 %v6047
      %vm6055 = vmor %vm6053, %vm6054
      %v6056 = vsel %vm6055, %v6047, %v6052
      %v6057 = vrsqrt.pop %v5827
      %v6058 = vmul.f32 %v6057, %v5827
      %v6059 = vmul.f32 %v6058, %v6057
      %v6060 = vmul.f32 0.5, %v6059
      %v6061 = vsub.f32 1.5, %v6060
      %v6062 = vmul.f32 %v6057, %v6061
      %vm6063 = vweird.f32 %v5827
      %vm6064 = vweird.f32 %v6057
      %vm6065 = vmor %vm6063, %vm6064
      %v6066 = vsel %vm6065, %v6057, %v6062
      %v6067 = vrsqrt.pop %v5828
      %v6068 = vmul.f32 %v6067, %v5828
      %v6069 = vmul.f32 %v6068, %v6067
      %v6070 = vmul.f32 0.5, %v6069
      %v6071 = vsub.f32 1.5, %v6070
      %v6072 = vmul.f32 %v6067, %v6071
      %vm6073 = vweird.f32 %v5828
      %vm6074 = vweird.f32 %v6067
      %vm6075 = vmor %vm6073, %vm6074
      %v6076 = vsel %vm6075, %v6067, %v6072
      %v6077 = vrsqrt.pop %v5829
      %v6078 = vmul.f32 %v6077, %v5829
      %v6079 = vmul.f32 %v6078, %v6077
      %v6080 = vmul.f32 0.5, %v6079
      %v6081 = vsub.f32 1.5, %v6080
      %v6082 = vmul.f32 %v6077, %v6081
      %vm6083 = vweird.f32 %v5829
      %vm6084 = vweird.f32 %v6077
      %vm6085 = vmor %vm6083, %vm6084
      %v6086 = vsel %vm6085, %v6077, %v6082
      %v6087 = vrsqrt.pop %v5830
      %v6088 = vmul.f32 %v6087, %v5830
      %v6089 = vmul.f32 %v6088, %v6087
      %v6090 = vmul.f32 0.5, %v6089
      %v6091 = vsub.f32 1.5, %v6090
      %v6092 = vmul.f32 %v6087, %v6091
      %vm6093 = vweird.f32 %v5830
      %vm6094 = vweird.f32 %v6087
      %vm6095 = vmor %vm6093, %vm6094
      %v6096 = vsel %vm6095, %v6087, %v6092
      %v6097 = vrsqrt.pop %v5831
      %v6098 = vmul.f32 %v6097, %v5831
      %v6099 = vmul.f32 %v6098, %v6097
      %v6100 = vmul.f32 0.5, %v6099
      %v6101 = vsub.f32 1.5, %v6100
      %v6102 = vmul.f32 %v6097, %v6101
      %vm6103 = vweird.f32 %v5831
      %vm6104 = vweird.f32 %v6097
      %vm6105 = vmor %vm6103, %vm6104
      %v6106 = vsel %vm6105, %v6097, %v6102
      %v6107 = vrsqrt.pop %v5832
      %v6108 = vmul.f32 %v6107, %v5832
      %v6109 = vmul.f32 %v6108, %v6107
      %v6110 = vmul.f32 0.5, %v6109
      %v6111 = vsub.f32 1.5, %v6110
      %v6112 = vmul.f32 %v6107, %v6111
      %vm6113 = vweird.f32 %v5832
      %vm6114 = vweird.f32 %v6107
      %vm6115 = vmor %vm6113, %vm6114
      %v6116 = vsel %vm6115, %v6107, %v6112
      %v6117 = vrsqrt.pop %v5833
      %v6118 = vmul.f32 %v6117, %v5833
      %v6119 = vmul.f32 %v6118, %v6117
      %v6120 = vmul.f32 0.5, %v6119
      %v6121 = vsub.f32 1.5, %v6120
      %v6122 = vmul.f32 %v6117, %v6121
      %vm6123 = vweird.f32 %v5833
      %vm6124 = vweird.f32 %v6117
      %vm6125 = vmor %vm6123, %vm6124
      %v6126 = vsel %vm6125, %v6117, %v6122
      %v6127 = vrsqrt.pop %v5834
      %v6128 = vmul.f32 %v6127, %v5834
      %v6129 = vmul.f32 %v6128, %v6127
      %v6130 = vmul.f32 0.5, %v6129
      %v6131 = vsub.f32 1.5, %v6130
      %v6132 = vmul.f32 %v6127, %v6131
      %vm6133 = vweird.f32 %v5834
      %vm6134 = vweird.f32 %v6127
      %vm6135 = vmor %vm6133, %vm6134
      %v6136 = vsel %vm6135, %v6127, %v6132
      %v6137 = vrsqrt.pop %v5835
      %v6138 = vmul.f32 %v6137, %v5835
      %v6139 = vmul.f32 %v6138, %v6137
      %v6140 = vmul.f32 0.5, %v6139
      %v6141 = vsub.f32 1.5, %v6140
      %v6142 = vmul.f32 %v6137, %v6141
      %vm6143 = vweird.f32 %v5835
      %vm6144 = vweird.f32 %v6137
      %vm6145 = vmor %vm6143, %vm6144
      %v6146 = vsel %vm6145, %v6137, %v6142
      %v6147 = vrsqrt.pop %v5836
      %v6148 = vmul.f32 %v6147, %v5836
      %v6149 = vmul.f32 %v6148, %v6147
      %v6150 = vmul.f32 0.5, %v6149
      %v6151 = vsub.f32 1.5, %v6150
      %v6152 = vmul.f32 %v6147, %v6151
      %vm6153 = vweird.f32 %v5836
      %vm6154 = vweird.f32 %v6147
      %vm6155 = vmor %vm6153, %vm6154
      %v6156 = vsel %vm6155, %v6147, %v6152
      %v6157 = vmul.f32 %v5138, %v5846
      %v6158 = vmul.f32 %v5144, %v5856
      %v6159 = vmul.f32 %v5150, %v5866
      %v6160 = vmul.f32 %v5156, %v5876
      %v6161 = vmul.f32 %v5162, %v5886
      %v6162 = vmul.f32 %v5168, %v5896
      %v6163 = vmul.f32 %v5174, %v5906
      %v6164 = vmul.f32 %v5180, %v5916
      %v6165 = vmul.f32 %v5186, %v5926
      %v6166 = vmul.f32 %v5192, %v5936
      %v6167 = vmul.f32 %v5198, %v5946
      %v6168 = vmul.f32 %v5204, %v5956
      %v6169 = vmul.f32 %v5210, %v5966
      %v6170 = vmul.f32 %v5216, %v5976
      %v6171 = vmul.f32 %v5222, %v5986
      %v6172 = vmul.f32 %v5228, %v5996
      %v6173 = vmul.f32 %v5234, %v6006
      %v6174 = vmul.f32 %v5240, %v6016
      %v6175 = vmul.f32 %v5246, %v6026
      %v6176 = vmul.f32 %v5252, %v6036
      %v6177 = vmul.f32 %v5258, %v6046
      %v6178 = vmul.f32 %v5264, %v6056
      %v6179 = vmul.f32 %v5270, %v6066
      %v6180 = vmul.f32 %v5276, %v6076
      %v6181 = vmul.f32 %v5282, %v6086
      %v6182 = vmul.f32 %v5288, %v6096
      %v6183 = vmul.f32 %v5294, %v6106
      %v6184 = vmul.f32 %v5300, %v6116
      %v6185 = vmul.f32 %v5306, %v6126
      %v6186 = vmul.f32 %v5312, %v6136
      %v6187 = vmul.f32 %v5318, %v6146
      %v6188 = vmul.f32 %v5324, %v6156
      %v6189 = vsub.f32 %v5069, %v6157
      %v6190 = vsub.f32 %v5070, %v6158
      %v6191 = vsub.f32 %v5071, %v6159
      %v6192 = vsub.f32 %v5072, %v6160
      %v6193 = vsub.f32 %v5073, %v6161
      %v6194 = vsub.f32 %v5074, %v6162
      %v6195 = vsub.f32 %v5075, %v6163
      %v6196 = vsub.f32 %v5076, %v6164
      %v6197 = vsub.f32 %v5077, %v6165
      %v6198 = vsub.f32 %v5078, %v6166
      %v6199 = vsub.f32 %v5079, %v6167
      %v6200 = vsub.f32 %v5080, %v6168
      %v6201 = vsub.f32 %v5081, %v6169
      %v6202 = vsub.f32 %v5082, %v6170
      %v6203 = vsub.f32 %v5083, %v6171
      %v6204 = vsub.f32 %v5084, %v6172
      %v6205 = vsub.f32 %v5085, %v6173
      %v6206 = vsub.f32 %v5086, %v6174
      %v6207 = vsub.f32 %v5087, %v6175
      %v6208 = vsub.f32 %v5088, %v6176
      %v6209 = vsub.f32 %v5089, %v6177
      %v6210 = vsub.f32 %v5090, %v6178
      %v6211 = vsub.f32 %v5091, %v6179
      %v6212 = vsub.f32 %v5092, %v6180
      %v6213 = vsub.f32 %v5093, %v6181
      %v6214 = vsub.f32 %v5094, %v6182
      %v6215 = vsub.f32 %v5095, %v6183
      %v6216 = vsub.f32 %v5096, %v6184
      %v6217 = vsub.f32 %v5097, %v6185
      %v6218 = vsub.f32 %v5098, %v6186
      %v6219 = vsub.f32 %v5099, %v6187
      %v6220 = vsub.f32 %v5100, %v6188
      %v6221 = vmul.f32 %v6189, %v6189
      %v6222 = vmul.f32 %v6190, %v6190
      %v6223 = vmul.f32 %v6191, %v6191
      %v6224 = vmul.f32 %v6192, %v6192
      %v6225 = vmul.f32 %v6193, %v6193
      %v6226 = vmul.f32 %v6194, %v6194
      %v6227 = vmul.f32 %v6195, %v6195
      %v6228 = vmul.f32 %v6196, %v6196
      %v6229 = vmul.f32 %v6197, %v6197
      %v6230 = vmul.f32 %v6198, %v6198
      %v6231 = vmul.f32 %v6199, %v6199
      %v6232 = vmul.f32 %v6200, %v6200
      %v6233 = vmul.f32 %v6201, %v6201
      %v6234 = vmul.f32 %v6202, %v6202
      %v6235 = vmul.f32 %v6203, %v6203
      %v6236 = vmul.f32 %v6204, %v6204
      %v6237 = vmul.f32 %v6205, %v6205
      %v6238 = vmul.f32 %v6206, %v6206
      %v6239 = vmul.f32 %v6207, %v6207
      %v6240 = vmul.f32 %v6208, %v6208
      %v6241 = vmul.f32 %v6209, %v6209
      %v6242 = vmul.f32 %v6210, %v6210
      %v6243 = vmul.f32 %v6211, %v6211
      %v6244 = vmul.f32 %v6212, %v6212
      %v6245 = vmul.f32 %v6213, %v6213
      %v6246 = vmul.f32 %v6214, %v6214
      %v6247 = vmul.f32 %v6215, %v6215
      %v6248 = vmul.f32 %v6216, %v6216
      %v6249 = vmul.f32 %v6217, %v6217
      %v6250 = vmul.f32 %v6218, %v6218
      %v6251 = vmul.f32 %v6219, %v6219
      %v6252 = vmul.f32 %v6220, %v6220
      %v6253 = vadd.f32 %v6221, %v6222
      %v6254 = vadd.f32 %v6253, %v6223
      %v6255 = vadd.f32 %v6254, %v6224
      %v6256 = vadd.f32 %v6255, %v6225
      %v6257 = vadd.f32 %v6256, %v6226
      %v6258 = vadd.f32 %v6257, %v6227
      %v6259 = vadd.f32 %v6258, %v6228
      %v6260 = vadd.f32 %v6259, %v6229
      %v6261 = vadd.f32 %v6260, %v6230
      %v6262 = vadd.f32 %v6261, %v6231
      %v6263 = vadd.f32 %v6262, %v6232
      %v6264 = vadd.f32 %v6263, %v6233
      %v6265 = vadd.f32 %v6264, %v6234
      %v6266 = vadd.f32 %v6265, %v6235
      %v6267 = vadd.f32 %v6266, %v6236
      %v6268 = vadd.f32 %v6267, %v6237
      %v6269 = vadd.f32 %v6268, %v6238
      %v6270 = vadd.f32 %v6269, %v6239
      %v6271 = vadd.f32 %v6270, %v6240
      %v6272 = vadd.f32 %v6271, %v6241
      %v6273 = vadd.f32 %v6272, %v6242
      %v6274 = vadd.f32 %v6273, %v6243
      %v6275 = vadd.f32 %v6274, %v6244
      %v6276 = vadd.f32 %v6275, %v6245
      %v6277 = vadd.f32 %v6276, %v6246
      %v6278 = vadd.f32 %v6277, %v6247
      %v6279 = vadd.f32 %v6278, %v6248
      %v6280 = vadd.f32 %v6279, %v6249
      %v6281 = vadd.f32 %v6280, %v6250
      %v6282 = vadd.f32 %v6281, %v6251
      %v6283 = vadd.f32 %v6282, %v6252
      %6284 = vadd.xlane.f32.xlu0 %v6283
      %v6285 = vpop.xlane.xlu0 %6284
      %vm6286 = vcmask 0
      %6287 = vst.msk [vmem:[%s203] sm:$0x1] %vm6286, %v6285
      %p6288 = scmp.lt.s32.totalorder %s14, 1
      %s6289 = scalar_select %p6288, %s14, 1
      %s6290 = scalar_lea.vmem %s3, %s6289
      // Predicated region
      $region33: #{criterion_ifv.1} parent=31 // pred_check
        %p6291 = pneg %p110
      $region34: #{criterion_ifv.1} parent=31 // pred_check_branch
        %6293 = sbr.rel (%p6291) target = $region36
      $region35: #{criterion_ifv.1} parent=31 // pred_region
        _
      $region36: #{criterion_ifv.1} parent=31 // pred_fallthru
        _
    $region32: #{criterion_ifv.1} parent=5 // pred_fallthru
      _
    %p6294 = scmp.le.s32.totalorder 2, %s9
    // Predicated region
    $region37: #{criterion_ifv.1} parent=5 // pred_check
      %p6295 = pneg %p6294
    $region38: #{criterion_ifv.1} parent=5 // pred_check_branch
      %6297 = sbr.rel (%p6295) target = $region40
    $region39: #{criterion_ifv.1} parent=5 // pred_region
      %s6298 = ssub.s32 %s9, 2
      // Predicated region
      $region41: #{criterion_ifv.1} parent=39 // pred_check
        %p6299 = pneg %p116
      $region42: #{criterion_ifv.1} parent=39 // pred_check_branch
        %6301 = sbr.rel (%p6299) target = $region44
      $region43: #{criterion_ifv.1} parent=39 // pred_region
        %p6302 = scmp.lt.s32.totalorder %s15, 1
        %s6303 = scalar_select %p6302, %s15, 1
        %s6304 = scalar_lea.vmem %s3, %s6303
      $region44: #{criterion_ifv.1} parent=39 // pred_fallthru
        _
    $region40: #{criterion_ifv.1} parent=5 // pred_fallthru
      _
  $region6: #{criterion_ifv.1} parent=0 // loop_footer
    %s13 = sadd.s32 1, %s9
  $region7: #{criterion_ifv.1} parent=0 // loop_footer_branch
    %8 = sbr.rel target = $region3
  $region8: #{criterion_ifv.1} parent=0 // loop_exit
    _

</llo_original>
